<compile_context>
chip_gen: v7x
topology: tpu7x:2x2x1
jax: 0.10.0
libtpu: 0.0.40
codegen_flags: <defaults>
</compile_context>

<pallas_src>
import math
from functools import partial

import jax
import jax.numpy as jnp
from jax import lax
from jax.experimental import pallas as pl
from jax.experimental.pallas import tpu as pltpu


# -----------------------------------------------------------------------------
# Packed per-step vector layout (8-sublane aligned pieces)
# -----------------------------------------------------------------------------
def _vec_offsets(d, H):
    off_b2 = H                      # b1: [0, H)
    off_b3 = 2 * H                  # b2: [H, 2H)
    off_sfac = 2 * H + 2 * d        # b3 (s|t, s rows pre-scaled): [2H, 2H+2d)
    sfac_rows = ((d + 7) // 8) * 8  # pad s_fac block to 8 sublanes
    off_ansc = off_sfac + sfac_rows
    off_ansh = off_ansc + 2 * d     # ActNorm scale: D rows
    R = off_ansh + 2 * d            # ActNorm shift: D rows
    return off_b2, off_b3, off_sfac, off_ansc, off_ansh, R


# -----------------------------------------------------------------------------
# Pallas kernel (batch-on-lanes layout: every data tile is (rows, TB))
# -----------------------------------------------------------------------------
def _flow_kernel(n_steps, d, H,
                 z_ref, w1t_ref, w2t_ref, w3t_ref, vec_ref, scalars_ref,
                 x_out_ref, logp_out_ref):
    off_b2, off_b3, off_sfac, off_ansc, off_ansh, _ = _vec_offsets(d, H)

    z = z_ref[...]                                          # (D, TB) f32
    # prior log-prob + all data-independent log-det terms folded into one scalar;
    # the reduction runs on the full 8-sublane (D, TB) value.
    logp = scalars_ref[1] - 0.5 * jnp.sum(z * z, axis=0, keepdims=True)   # (1, TB)
    x_lo = z[:d]                                            # (d, TB)
    x_hi = z[d:]                                            # (d, TB)

    def step(i, even, lo, hi, lp):
        vec = vec_ref[i]                                    # (R, 1) f32
        b1 = vec[0:H]
        b2 = vec[off_b2:off_b2 + H]
        b3 = vec[off_b3:off_b3 + 2 * d]
        sfac = vec[off_sfac:off_sfac + d]
        w1 = w1t_ref[i]                                     # (H, d)
        w2 = w2t_ref[i]                                     # (H, H)
        w3 = w3t_ref[i]                                     # (2d, H), s rows pre-scaled by 1/s_fac

        xa = hi if even else lo                             # conditioner input
        h = jnp.dot(w1, xa.astype(w1.dtype), preferred_element_type=jnp.float32) + b1
        h = jnp.maximum(h, 0.0)
        h = jnp.dot(w2, h.astype(w2.dtype), preferred_element_type=jnp.float32) + b2
        h = jnp.maximum(h, 0.0)
        st = jnp.dot(w3, h.astype(w3.dtype), preferred_element_type=jnp.float32) + b3
        s = sfac * jnp.tanh(st[:d])                         # bounded log-scale (f32)
        t = st[d:]

        xb_new = (lo if even else hi) * jnp.exp(s) + t
        if even:                                            # "reversed": transform lo
            lo = xb_new
        else:
            hi = xb_new
        lp = lp - jnp.sum(s, axis=0, keepdims=True)

        # ActNorm inverse
        an_sc = vec[off_ansc:off_ansc + 2 * d]              # (D, 1) = exp(log_scale)
        an_sh = vec[off_ansh:off_ansh + 2 * d]              # (D, 1)
        lo = lo * an_sc[:d] + an_sh[:d]
        hi = hi * an_sc[d:] + an_sh[d:]
        return lo, hi, lp

    if n_steps <= 16:
        # fully static unroll: static weight slices, cross-step LLO scheduling
        for i in range(n_steps):
            x_lo, x_hi, logp = step(i, i % 2 == 0, x_lo, x_hi, logp)
    else:
        def pair_body(p, carry):
            lo, hi, lp = carry
            lo, hi, lp = step(2 * p, True, lo, hi, lp)
            lo, hi, lp = step(2 * p + 1, False, lo, hi, lp)
            return lo, hi, lp
        x_lo, x_hi, logp = lax.fori_loop(0, n_steps // 2, pair_body,
                                         (x_lo, x_hi, logp), unroll=True)
        if n_steps % 2 == 1:                                # static residual even step
            x_lo, x_hi, logp = step(n_steps - 1, True, x_lo, x_hi, logp)

    # widen: x * scaling_factor (its log-det is already inside logp_const)
    sf = scalars_ref[0]
    x_out_ref[...] = jnp.concatenate([x_lo, x_hi], axis=0) * sf   # one (D, TB) store
    logp_out_ref[...] = logp


# -----------------------------------------------------------------------------
# Parameter-only preprocessing (hoisted out of the kernel's hot loop)
# -----------------------------------------------------------------------------
def _prepare_params(params, n_steps, D, d, H, mxu_dtype):
    (w1, b1, w2, b2, w3, b3, log_sfac, an_logs, an_shift, widen) = params
    tT = lambda a: jnp.transpose(a, (0, 2, 1))
    w1t, w2t, w3t = tT(w1), tT(w2), tT(w3)                  # (n,H,d),(n,H,H),(n,2d,H)
    b1t, b2t, b3t = tT(b1), tT(b2), tT(b3)                  # (n,H,1),(n,H,1),(n,2d,1)

    sfac = jnp.exp(tT(log_sfac))                            # (n,d,1)
    isfac = 1.0 / sfac
    # fold 1/s_fac into the s-head rows so the kernel computes s = s_fac * tanh(raw)
    w3t = w3t.at[:, :d, :].multiply(isfac)
    b3t = b3t.at[:, :d, :].multiply(isfac)

    an_scale = jnp.exp(tT(an_logs))                         # (n,D,1)
    an_shift_t = tT(an_shift)                               # (n,D,1)

    _, _, _, _, _, R = _vec_offsets(d, H)
    sfac_rows = ((d + 7) // 8) * 8
    sfac_padded = jnp.zeros((n_steps, sfac_rows, 1), jnp.float32).at[:, :d].set(sfac)
    vecs = jnp.concatenate(
        [b1t, b2t, b3t, sfac_padded, an_scale, an_shift_t], axis=1
    ).astype(jnp.float32)
    assert vecs.shape == (n_steps, R, 1)

    sf = widen[0, 0]
    logp_const = (-0.5 * D * math.log(2.0 * math.pi)
                  - jnp.sum(an_logs) - D * jnp.log(sf))
    scalars = jnp.stack([sf, logp_const]).astype(jnp.float32)   # (2,) -> SMEM
    return (w1t.astype(mxu_dtype), w2t.astype(mxu_dtype), w3t.astype(mxu_dtype),
            vecs, scalars)


def _choose_batch_tile(B, target_blocks=4, max_tb=1024):
    # lane-aligned batch tile; prefer large tiles but keep >= target_blocks grid
    # steps so the BlockSpec pipeline overlaps and both v7x TCs get work.
    tb = pl.next_power_of_2(max(1, pl.cdiv(B, target_blocks)))
    return min(max(tb, 128), max_tb)


# -----------------------------------------------------------------------------
# Wrapper
# -----------------------------------------------------------------------------
def flow_model_forward(z, params, n_steps, D, d, H, tb=None, mxu_dtype=jnp.float32):
    assert D == 2 * d, "RealNVP coupling splits x into two equal halves"
    B = z.shape[0]
    if tb is None:
        tb = _choose_batch_tile(B)
    assert tb % 128 == 0, "batch tile must be lane-aligned"
    nb = pl.cdiv(B, tb)
    B_pad = nb * tb

    # batch-on-lanes: (D, B_pad); padded lanes are zeros (computed then discarded)
    zT = jnp.zeros((D, B_pad), jnp.float32).at[:, :B].set(z.astype(jnp.float32).T)

    w1t, w2t, w3t, vecs, scalars = _prepare_params(params, n_steps, D, d, H, mxu_dtype)

    def resident(a):                       # full-extent, constant block -> stays in VMEM
        nd = a.ndim
        return pl.BlockSpec(a.shape, lambda b, _nd=nd: (0,) * _nd)

    in_specs = [pl.BlockSpec((D, tb), lambda b: (0, b)),                 # z tile
                resident(w1t), resident(w2t), resident(w3t), resident(vecs),
                pl.BlockSpec(memory_space=pltpu.MemorySpace.SMEM)]       # scalars
    out_specs = (pl.BlockSpec((D, tb), lambda b: (0, b)),
                 pl.BlockSpec((1, tb), lambda b: (0, b)))
    out_shape = (jax.ShapeDtypeStruct((D, B_pad), jnp.float32),
                 jax.ShapeDtypeStruct((1, B_pad), jnp.float32))

    param_bytes = int(w1t.size * w1t.dtype.itemsize + w2t.size * w2t.dtype.itemsize
                      + w3t.size * w3t.dtype.itemsize + 4 * vecs.size)
    cost = pl.CostEstimate(
        flops=int(2 * B_pad * n_steps * (H * d + H * H + 2 * d * H)),
        transcendentals=int(2 * B_pad * n_steps * d),
        bytes_accessed=int(4 * (2 * D * B_pad + B_pad)) + param_bytes)

    x_t, logp = pl.pallas_call(
        partial(_flow_kernel, n_steps, d, H),
        grid=(nb,),
        in_specs=in_specs,
        out_specs=out_specs,
        out_shape=out_shape,
        compiler_params=pltpu.CompilerParams(
            dimension_semantics=("parallel",),
            vmem_limit_bytes=32 * 1024 * 1024),   # footprint is ~MBs on all generations
        cost_estimate=cost,
    )(zT, w1t, w2t, w3t, vecs, scalars)

    x = x_t.T[:B]                                # back to (B, D)
    return x, logp[0, :B]                        # PyTorch returns (B,) log_prob


# -----------------------------------------------------------------------------
# Pure-JAX reference (same math, original (B, D) layout)
# -----------------------------------------------------------------------------
def flow_model_forward_ref(z, params, n_steps, D, d, H):
    (w1, b1, w2, b2, w3, b3, log_sfac, an_logs, an_shift, widen) = params
    x = z.astype(jnp.float32)
    logp = -0.5 * jnp.sum(x * x, axis=-1) - 0.5 * D * math.log(2.0 * math.pi)
    for i in range(n_steps):
        reversed_ = (i % 2 == 0)
        xa = x[:, d:] if reversed_ else x[:, :d]
        xb = x[:, :d] if reversed_ else x[:, d:]
        h = jnp.maximum(xa @ w1[i] + b1[i], 0.0)
        h = jnp.maximum(h @ w2[i] + b2[i], 0.0)
        st = h @ w3[i] + b3[i]
        s_raw, t = st[:, :D - d], st[:, D - d:]
        s_fac = jnp.exp(log_sfac[i])
        s = s_fac * jnp.tanh(s_raw / s_fac)
        xb_new = xb * jnp.exp(s) + t
        x = jnp.concatenate([xb_new, xa], -1) if reversed_ else jnp.concatenate([xa, xb_new], -1)
        logp = logp - jnp.sum(s, axis=-1)
        x = x * jnp.exp(an_logs[i]) + an_shift[i]
        logp = logp - jnp.sum(an_logs[i])
    sf = widen[0, 0]
    x = x * sf
    logp = logp - D * jnp.log(sf)
    return x, logp


# -----------------------------------------------------------------------------
# Deterministic parameter init (matches module __init__ shapes)
# -----------------------------------------------------------------------------
def init_params(key, n_steps, D, d, H):
    ks = jax.random.split(key, 8)
    w1 = 0.2 * jax.random.normal(ks[0], (n_steps, d, H), jnp.float32)
    b1 = 0.05 * jax.random.normal(ks[1], (n_steps, 1, H), jnp.float32)
    w2 = 0.2 * jax.random.normal(ks[2], (n_steps, H, H), jnp.float32)
    b2 = 0.05 * jax.random.normal(ks[3], (n_steps, 1, H), jnp.float32)
    w3 = 0.2 * jax.random.normal(ks[4], (n_steps, H, 2 * (D - d)), jnp.float32)
    b3 = 0.05 * jax.random.normal(ks[5], (n_steps, 1, 2 * (D - d)), jnp.float32)
    log_sfac = jnp.zeros((n_steps, 1, D - d), jnp.float32)                  # scale-bound param
    an_logs = 0.1 * jax.random.normal(ks[6], (n_steps, 1, D), jnp.float32)  # ActNorm log-scale
    an_shift = 0.1 * jax.random.normal(ks[7], (n_steps, 1, D), jnp.float32) # ActNorm shift
    widen = jnp.full((1, 1), 1.5, jnp.float32)                              # self.scaling_factor
    return (w1, b1, w2, b2, w3, b3, log_sfac, an_logs, an_shift, widen)


if __name__ == "__main__":
    B, D = 1024, 8         # batch, x_dim (batch chosen so the grid has >=4 blocks)
    d = D // 2
    H = 4 * D              # hidden width (nodes_per_x = 4)
    n_steps = 10           # module default n_flow_steps

    key = jax.random.PRNGKey(0)
    kz, kp = jax.random.split(key)
    params = init_params(kp, n_steps, D, d, H)
    # prior sample (torch.distributions MultivariateNormal(0, I)) stays in plain JAX: glue
    z = jax.random.normal(kz, (B, D), jnp.float32)

    # f32 MXU path: faithful to the f32 PyTorch reference
    x, logp = flow_model_forward(z, params, n_steps, D, d, H)
    jax.block_until_ready((x, logp))

    x_ref, logp_ref = flow_model_forward_ref(z, params, n_steps, D, d, H)
    assert x.shape == (B, D) and logp.shape == (B,)
    assert jnp.allclose(x, x_ref, rtol=1e-3, atol=1e-3), "x mismatch (f32)"
    assert jnp.allclose(logp, logp_ref, rtol=1e-3, atol=1e-3), "log_prob mismatch (f32)"

    # bf16 MXU operands / f32 accumulation (native MXU rate on v5e/v6e/v7x);
    # all VPU/EUP math (tanh, exp, actnorm, logp) stays f32.
    x_bf, logp_bf = flow_model_forward(z, params, n_steps, D, d, H,
                                       mxu_dtype=jnp.bfloat16)
    jax.block_until_ready((x_bf, logp_bf))
    assert jnp.allclose(x_bf, x_ref, rtol=1e-1, atol=1e-1), "x mismatch (bf16 MXU)"
    assert jnp.allclose(logp_bf, logp_ref, rtol=1e-1, atol=1e-1), "log_prob mismatch (bf16 MXU)"

    print("KERNEL_OK")
</pallas_src>

<mosaic_0001>
module attributes {stable_mosaic.version = 11 : i64} {
  func.func @_flow_kernel(%arg0: i32, %arg1: memref<8x256xf32, #tpu.memory_space<vmem>>, %arg2: memref<10x32x4xf32, #tpu.memory_space<vmem>>, %arg3: memref<10x32x32xf32, #tpu.memory_space<vmem>>, %arg4: memref<10x8x32xf32, #tpu.memory_space<vmem>>, %arg5: memref<10x96x1xf32, #tpu.memory_space<vmem>>, %arg6: memref<2xf32, #tpu.memory_space<smem>>, %arg7: memref<8x256xf32, #tpu.memory_space<vmem>>, %arg8: memref<1x256xf32, #tpu.memory_space<vmem>>) attributes {dimension_semantics = [#tpu.dimension_semantics<parallel>], iteration_bounds = array<i64: 4>, scalar_prefetch = 0 : i64, scratch_operands = 0 : i64, tpu.core_type = #tpu.core_type<tc>, window_params = [{transform_indices = @transform_0, window_bounds = array<i64: 8, 256>}, {pipeline_mode = #tpu.pipeline_mode<synchronous>, transform_indices = @transform_1, window_bounds = array<i64: 10, 32, 4>}, {pipeline_mode = #tpu.pipeline_mode<synchronous>, transform_indices = @transform_2, window_bounds = array<i64: 10, 32, 32>}, {pipeline_mode = #tpu.pipeline_mode<synchronous>, transform_indices = @transform_3, window_bounds = array<i64: 10, 8, 32>}, {pipeline_mode = #tpu.pipeline_mode<synchronous>, transform_indices = @transform_4, window_bounds = array<i64: 10, 96, 1>}, {transform_indices = @transform_5, window_bounds = array<i64: 2>}, {transform_indices = @transform_6, window_bounds = array<i64: 8, 256>}, {transform_indices = @transform_7, window_bounds = array<i64: 1, 256>}]} {
    %c0 = arith.constant 0 : index
    %c0_0 = arith.constant 0 : index
    %0 = vector.load %arg1[%c0, %c0_0] : memref<8x256xf32, #tpu.memory_space<vmem>>, vector<8x256xf32>
    %c1 = arith.constant 1 : index
    %1 = memref.load %arg6[%c1] : memref<2xf32, #tpu.memory_space<smem>>
    %2 = arith.mulf %0, %0 : vector<8x256xf32>
    %cst = arith.constant dense<0.000000e+00> : vector<256xf32>
    %3 = vector.multi_reduction <add>, %2, %cst [0] : vector<8x256xf32> to vector<256xf32>
    %4 = vector.shape_cast %3 : vector<256xf32> to vector<1x256xf32>
    %cst_1 = arith.constant 5.000000e-01 : f32
    %5 = vector.broadcast %cst_1 : f32 to vector<1x256xf32>
    %6 = arith.mulf %5, %4 : vector<1x256xf32>
    %7 = vector.broadcast %1 : f32 to vector<1x256xf32>
    %8 = arith.subf %7, %6 : vector<1x256xf32>
    %9 = vector.extract_strided_slice %0 {offsets = [0, 0], sizes = [4, 256], strides = [1, 1]} : vector<8x256xf32> to vector<4x256xf32>
    %10 = vector.extract_strided_slice %0 {offsets = [4, 0], sizes = [4, 256], strides = [1, 1]} : vector<8x256xf32> to vector<4x256xf32>
    %c0_2 = arith.constant 0 : index
    %c0_3 = arith.constant 0 : index
    %c0_4 = arith.constant 0 : index
    %11 = vector.load %arg5[%c0_2, %c0_3, %c0_4] : memref<10x96x1xf32, #tpu.memory_space<vmem>>, vector<1x96x1xf32>
    %12 = vector.shape_cast %11 : vector<1x96x1xf32> to vector<96x1xf32>
    %13 = vector.extract_strided_slice %12 {offsets = [0, 0], sizes = [32, 1], strides = [1, 1]} : vector<96x1xf32> to vector<32x1xf32>
    %14 = vector.extract_strided_slice %12 {offsets = [32, 0], sizes = [32, 1], strides = [1, 1]} : vector<96x1xf32> to vector<32x1xf32>
    %15 = vector.extract_strided_slice %12 {offsets = [64, 0], sizes = [8, 1], strides = [1, 1]} : vector<96x1xf32> to vector<8x1xf32>
    %16 = vector.extract_strided_slice %12 {offsets = [72, 0], sizes = [4, 1], strides = [1, 1]} : vector<96x1xf32> to vector<4x1xf32>
    %c0_5 = arith.constant 0 : index
    %c0_6 = arith.constant 0 : index
    %c0_7 = arith.constant 0 : index
    %17 = vector.load %arg2[%c0_5, %c0_6, %c0_7] : memref<10x32x4xf32, #tpu.memory_space<vmem>>, vector<1x32x4xf32>
    %18 = vector.shape_cast %17 : vector<1x32x4xf32> to vector<32x4xf32>
    %c0_8 = arith.constant 0 : index
    %c0_9 = arith.constant 0 : index
    %c0_10 = arith.constant 0 : index
    %19 = vector.load %arg3[%c0_8, %c0_9, %c0_10] : memref<10x32x32xf32, #tpu.memory_space<vmem>>, vector<1x32x32xf32>
    %20 = vector.shape_cast %19 : vector<1x32x32xf32> to vector<32x32xf32>
    %c0_11 = arith.constant 0 : index
    %c0_12 = arith.constant 0 : index
    %c0_13 = arith.constant 0 : index
    %21 = vector.load %arg4[%c0_11, %c0_12, %c0_13] : memref<10x8x32xf32, #tpu.memory_space<vmem>>, vector<1x8x32xf32>
    %22 = vector.shape_cast %21 : vector<1x8x32xf32> to vector<8x32xf32>
    %cst_14 = arith.constant dense<0.000000e+00> : vector<32x256xf32>
    %23 = tpu.matmul %18, %10, %cst_14 {dimension_numbers = #tpu.dot_dimension_numbers<[1], [0], [0], [1], [0, 0, 1, 1], [], []>} : vector<32x4xf32>, vector<4x256xf32>, vector<32x256xf32> -> vector<32x256xf32>
    %24 = vector.broadcast %13 : vector<32x1xf32> to vector<32x256xf32>
    %25 = arith.addf %23, %24 : vector<32x256xf32>
    %cst_15 = arith.constant 0.000000e+00 : f32
    %26 = vector.broadcast %cst_15 : f32 to vector<32x256xf32>
    %27 = arith.maximumf %25, %26 : vector<32x256xf32>
    %cst_16 = arith.constant dense<0.000000e+00> : vector<32x256xf32>
    %28 = tpu.matmul %20, %27, %cst_16 {dimension_numbers = #tpu.dot_dimension_numbers<[1], [0], [0], [1], [0, 0, 1, 1], [], []>} : vector<32x32xf32>, vector<32x256xf32>, vector<32x256xf32> -> vector<32x256xf32>
    %29 = vector.broadcast %14 : vector<32x1xf32> to vector<32x256xf32>
    %30 = arith.addf %28, %29 : vector<32x256xf32>
    %cst_17 = arith.constant 0.000000e+00 : f32
    %31 = vector.broadcast %cst_17 : f32 to vector<32x256xf32>
    %32 = arith.maximumf %30, %31 : vector<32x256xf32>
    %cst_18 = arith.constant dense<0.000000e+00> : vector<8x256xf32>
    %33 = tpu.matmul %22, %32, %cst_18 {dimension_numbers = #tpu.dot_dimension_numbers<[1], [0], [0], [1], [0, 0, 1, 1], [], []>} : vector<8x32xf32>, vector<32x256xf32>, vector<8x256xf32> -> vector<8x256xf32>
    %34 = vector.broadcast %15 : vector<8x1xf32> to vector<8x256xf32>
    %35 = arith.addf %33, %34 : vector<8x256xf32>
    %36 = vector.extract_strided_slice %35 {offsets = [0, 0], sizes = [4, 256], strides = [1, 1]} : vector<8x256xf32> to vector<4x256xf32>
    %37 = math.tanh %36 : vector<4x256xf32>
    %38 = vector.broadcast %16 : vector<4x1xf32> to vector<4x256xf32>
    %39 = arith.mulf %38, %37 : vector<4x256xf32>
    %40 = vector.extract_strided_slice %35 {offsets = [4, 0], sizes = [4, 256], strides = [1, 1]} : vector<8x256xf32> to vector<4x256xf32>
    %41 = math.exp %39 : vector<4x256xf32>
    %42 = arith.mulf %9, %41 : vector<4x256xf32>
    %43 = arith.addf %42, %40 : vector<4x256xf32>
    %cst_19 = arith.constant dense<0.000000e+00> : vector<256xf32>
    %44 = vector.multi_reduction <add>, %39, %cst_19 [0] : vector<4x256xf32> to vector<256xf32>
    %45 = vector.shape_cast %44 : vector<256xf32> to vector<1x256xf32>
    %46 = arith.subf %8, %45 : vector<1x256xf32>
    %47 = vector.extract_strided_slice %12 {offsets = [80, 0], sizes = [8, 1], strides = [1, 1]} : vector<96x1xf32> to vector<8x1xf32>
    %48 = vector.extract_strided_slice %12 {offsets = [88, 0], sizes = [8, 1], strides = [1, 1]} : vector<96x1xf32> to vector<8x1xf32>
    %49 = vector.extract_strided_slice %47 {offsets = [0, 0], sizes = [4, 1], strides = [1, 1]} : vector<8x1xf32> to vector<4x1xf32>
    %50 = vector.broadcast %49 : vector<4x1xf32> to vector<4x256xf32>
    %51 = arith.mulf %43, %50 : vector<4x256xf32>
    %52 = vector.extract_strided_slice %48 {offsets = [0, 0], sizes = [4, 1], strides = [1, 1]} : vector<8x1xf32> to vector<4x1xf32>
    %53 = vector.broadcast %52 : vector<4x1xf32> to vector<4x256xf32>
    %54 = arith.addf %51, %53 : vector<4x256xf32>
    %55 = vector.extract_strided_slice %47 {offsets = [4, 0], sizes = [4, 1], strides = [1, 1]} : vector<8x1xf32> to vector<4x1xf32>
    %56 = vector.broadcast %55 : vector<4x1xf32> to vector<4x256xf32>
    %57 = arith.mulf %10, %56 : vector<4x256xf32>
    %58 = vector.extract_strided_slice %48 {offsets = [4, 0], sizes = [4, 1], strides = [1, 1]} : vector<8x1xf32> to vector<4x1xf32>
    %59 = vector.broadcast %58 : vector<4x1xf32> to vector<4x256xf32>
    %60 = arith.addf %57, %59 : vector<4x256xf32>
    %c1_20 = arith.constant 1 : index
    %c0_21 = arith.constant 0 : index
    %c0_22 = arith.constant 0 : index
    %61 = vector.load %arg5[%c1_20, %c0_21, %c0_22] : memref<10x96x1xf32, #tpu.memory_space<vmem>>, vector<1x96x1xf32>
    %62 = vector.shape_cast %61 : vector<1x96x1xf32> to vector<96x1xf32>
    %63 = vector.extract_strided_slice %62 {offsets = [0, 0], sizes = [32, 1], strides = [1, 1]} : vector<96x1xf32> to vector<32x1xf32>
    %64 = vector.extract_strided_slice %62 {offsets = [32, 0], sizes = [32, 1], strides = [1, 1]} : vector<96x1xf32> to vector<32x1xf32>
    %65 = vector.extract_strided_slice %62 {offsets = [64, 0], sizes = [8, 1], strides = [1, 1]} : vector<96x1xf32> to vector<8x1xf32>
    %66 = vector.extract_strided_slice %62 {offsets = [72, 0], sizes = [4, 1], strides = [1, 1]} : vector<96x1xf32> to vector<4x1xf32>
    %c1_23 = arith.constant 1 : index
    %c0_24 = arith.constant 0 : index
    %c0_25 = arith.constant 0 : index
    %67 = vector.load %arg2[%c1_23, %c0_24, %c0_25] : memref<10x32x4xf32, #tpu.memory_space<vmem>>, vector<1x32x4xf32>
    %68 = vector.shape_cast %67 : vector<1x32x4xf32> to vector<32x4xf32>
    %c1_26 = arith.constant 1 : index
    %c0_27 = arith.constant 0 : index
    %c0_28 = arith.constant 0 : index
    %69 = vector.load %arg3[%c1_26, %c0_27, %c0_28] : memref<10x32x32xf32, #tpu.memory_space<vmem>>, vector<1x32x32xf32>
    %70 = vector.shape_cast %69 : vector<1x32x32xf32> to vector<32x32xf32>
    %c1_29 = arith.constant 1 : index
    %c0_30 = arith.constant 0 : index
    %c0_31 = arith.constant 0 : index
    %71 = vector.load %arg4[%c1_29, %c0_30, %c0_31] : memref<10x8x32xf32, #tpu.memory_space<vmem>>, vector<1x8x32xf32>
    %72 = vector.shape_cast %71 : vector<1x8x32xf32> to vector<8x32xf32>
    %cst_32 = arith.constant dense<0.000000e+00> : vector<32x256xf32>
    %73 = tpu.matmul %68, %54, %cst_32 {dimension_numbers = #tpu.dot_dimension_numbers<[1], [0], [0], [1], [0, 0, 1, 1], [], []>} : vector<32x4xf32>, vector<4x256xf32>, vector<32x256xf32> -> vector<32x256xf32>
    %74 = vector.broadcast %63 : vector<32x1xf32> to vector<32x256xf32>
    %75 = arith.addf %73, %74 : vector<32x256xf32>
    %cst_33 = arith.constant 0.000000e+00 : f32
    %76 = vector.broadcast %cst_33 : f32 to vector<32x256xf32>
    %77 = arith.maximumf %75, %76 : vector<32x256xf32>
    %cst_34 = arith.constant dense<0.000000e+00> : vector<32x256xf32>
    %78 = tpu.matmul %70, %77, %cst_34 {dimension_numbers = #tpu.dot_dimension_numbers<[1], [0], [0], [1], [0, 0, 1, 1], [], []>} : vector<32x32xf32>, vector<32x256xf32>, vector<32x256xf32> -> vector<32x256xf32>
    %79 = vector.broadcast %64 : vector<32x1xf32> to vector<32x256xf32>
    %80 = arith.addf %78, %79 : vector<32x256xf32>
    %cst_35 = arith.constant 0.000000e+00 : f32
    %81 = vector.broadcast %cst_35 : f32 to vector<32x256xf32>
    %82 = arith.maximumf %80, %81 : vector<32x256xf32>
    %cst_36 = arith.constant dense<0.000000e+00> : vector<8x256xf32>
    %83 = tpu.matmul %72, %82, %cst_36 {dimension_numbers = #tpu.dot_dimension_numbers<[1], [0], [0], [1], [0, 0, 1, 1], [], []>} : vector<8x32xf32>, vector<32x256xf32>, vector<8x256xf32> -> vector<8x256xf32>
    %84 = vector.broadcast %65 : vector<8x1xf32> to vector<8x256xf32>
    %85 = arith.addf %83, %84 : vector<8x256xf32>
    %86 = vector.extract_strided_slice %85 {offsets = [0, 0], sizes = [4, 256], strides = [1, 1]} : vector<8x256xf32> to vector<4x256xf32>
    %87 = math.tanh %86 : vector<4x256xf32>
    %88 = vector.broadcast %66 : vector<4x1xf32> to vector<4x256xf32>
    %89 = arith.mulf %88, %87 : vector<4x256xf32>
    %90 = vector.extract_strided_slice %85 {offsets = [4, 0], sizes = [4, 256], strides = [1, 1]} : vector<8x256xf32> to vector<4x256xf32>
    %91 = math.exp %89 : vector<4x256xf32>
    %92 = arith.mulf %60, %91 : vector<4x256xf32>
    %93 = arith.addf %92, %90 : vector<4x256xf32>
    %cst_37 = arith.constant dense<0.000000e+00> : vector<256xf32>
    %94 = vector.multi_reduction <add>, %89, %cst_37 [0] : vector<4x256xf32> to vector<256xf32>
    %95 = vector.shape_cast %94 : vector<256xf32> to vector<1x256xf32>
    %96 = arith.subf %46, %95 : vector<1x256xf32>
    %97 = vector.extract_strided_slice %62 {offsets = [80, 0], sizes = [8, 1], strides = [1, 1]} : vector<96x1xf32> to vector<8x1xf32>
    %98 = vector.extract_strided_slice %62 {offsets = [88, 0], sizes = [8, 1], strides = [1, 1]} : vector<96x1xf32> to vector<8x1xf32>
    %99 = vector.extract_strided_slice %97 {offsets = [0, 0], sizes = [4, 1], strides = [1, 1]} : vector<8x1xf32> to vector<4x1xf32>
    %100 = vector.broadcast %99 : vector<4x1xf32> to vector<4x256xf32>
    %101 = arith.mulf %54, %100 : vector<4x256xf32>
    %102 = vector.extract_strided_slice %98 {offsets = [0, 0], sizes = [4, 1], strides = [1, 1]} : vector<8x1xf32> to vector<4x1xf32>
    %103 = vector.broadcast %102 : vector<4x1xf32> to vector<4x256xf32>
    %104 = arith.addf %101, %103 : vector<4x256xf32>
    %105 = vector.extract_strided_slice %97 {offsets = [4, 0], sizes = [4, 1], strides = [1, 1]} : vector<8x1xf32> to vector<4x1xf32>
    %106 = vector.broadcast %105 : vector<4x1xf32> to vector<4x256xf32>
    %107 = arith.mulf %93, %106 : vector<4x256xf32>
    %108 = vector.extract_strided_slice %98 {offsets = [4, 0], sizes = [4, 1], strides = [1, 1]} : vector<8x1xf32> to vector<4x1xf32>
    %109 = vector.broadcast %108 : vector<4x1xf32> to vector<4x256xf32>
    %110 = arith.addf %107, %109 : vector<4x256xf32>
    %c2 = arith.constant 2 : index
    %c0_38 = arith.constant 0 : index
    %c0_39 = arith.constant 0 : index
    %111 = vector.load %arg5[%c2, %c0_38, %c0_39] : memref<10x96x1xf32, #tpu.memory_space<vmem>>, vector<1x96x1xf32>
    %112 = vector.shape_cast %111 : vector<1x96x1xf32> to vector<96x1xf32>
    %113 = vector.extract_strided_slice %112 {offsets = [0, 0], sizes = [32, 1], strides = [1, 1]} : vector<96x1xf32> to vector<32x1xf32>
    %114 = vector.extract_strided_slice %112 {offsets = [32, 0], sizes = [32, 1], strides = [1, 1]} : vector<96x1xf32> to vector<32x1xf32>
    %115 = vector.extract_strided_slice %112 {offsets = [64, 0], sizes = [8, 1], strides = [1, 1]} : vector<96x1xf32> to vector<8x1xf32>
    %116 = vector.extract_strided_slice %112 {offsets = [72, 0], sizes = [4, 1], strides = [1, 1]} : vector<96x1xf32> to vector<4x1xf32>
    %c2_40 = arith.constant 2 : index
    %c0_41 = arith.constant 0 : index
    %c0_42 = arith.constant 0 : index
    %117 = vector.load %arg2[%c2_40, %c0_41, %c0_42] : memref<10x32x4xf32, #tpu.memory_space<vmem>>, vector<1x32x4xf32>
    %118 = vector.shape_cast %117 : vector<1x32x4xf32> to vector<32x4xf32>
    %c2_43 = arith.constant 2 : index
    %c0_44 = arith.constant 0 : index
    %c0_45 = arith.constant 0 : index
    %119 = vector.load %arg3[%c2_43, %c0_44, %c0_45] : memref<10x32x32xf32, #tpu.memory_space<vmem>>, vector<1x32x32xf32>
    %120 = vector.shape_cast %119 : vector<1x32x32xf32> to vector<32x32xf32>
    %c2_46 = arith.constant 2 : index
    %c0_47 = arith.constant 0 : index
    %c0_48 = arith.constant 0 : index
    %121 = vector.load %arg4[%c2_46, %c0_47, %c0_48] : memref<10x8x32xf32, #tpu.memory_space<vmem>>, vector<1x8x32xf32>
    %122 = vector.shape_cast %121 : vector<1x8x32xf32> to vector<8x32xf32>
    %cst_49 = arith.constant dense<0.000000e+00> : vector<32x256xf32>
    %123 = tpu.matmul %118, %110, %cst_49 {dimension_numbers = #tpu.dot_dimension_numbers<[1], [0], [0], [1], [0, 0, 1, 1], [], []>} : vector<32x4xf32>, vector<4x256xf32>, vector<32x256xf32> -> vector<32x256xf32>
    %124 = vector.broadcast %113 : vector<32x1xf32> to vector<32x256xf32>
    %125 = arith.addf %123, %124 : vector<32x256xf32>
    %cst_50 = arith.constant 0.000000e+00 : f32
    %126 = vector.broadcast %cst_50 : f32 to vector<32x256xf32>
    %127 = arith.maximumf %125, %126 : vector<32x256xf32>
    %cst_51 = arith.constant dense<0.000000e+00> : vector<32x256xf32>
    %128 = tpu.matmul %120, %127, %cst_51 {dimension_numbers = #tpu.dot_dimension_numbers<[1], [0], [0], [1], [0, 0, 1, 1], [], []>} : vector<32x32xf32>, vector<32x256xf32>, vector<32x256xf32> -> vector<32x256xf32>
    %129 = vector.broadcast %114 : vector<32x1xf32> to vector<32x256xf32>
    %130 = arith.addf %128, %129 : vector<32x256xf32>
    %cst_52 = arith.constant 0.000000e+00 : f32
    %131 = vector.broadcast %cst_52 : f32 to vector<32x256xf32>
    %132 = arith.maximumf %130, %131 : vector<32x256xf32>
    %cst_53 = arith.constant dense<0.000000e+00> : vector<8x256xf32>
    %133 = tpu.matmul %122, %132, %cst_53 {dimension_numbers = #tpu.dot_dimension_numbers<[1], [0], [0], [1], [0, 0, 1, 1], [], []>} : vector<8x32xf32>, vector<32x256xf32>, vector<8x256xf32> -> vector<8x256xf32>
    %134 = vector.broadcast %115 : vector<8x1xf32> to vector<8x256xf32>
    %135 = arith.addf %133, %134 : vector<8x256xf32>
    %136 = vector.extract_strided_slice %135 {offsets = [0, 0], sizes = [4, 256], strides = [1, 1]} : vector<8x256xf32> to vector<4x256xf32>
    %137 = math.tanh %136 : vector<4x256xf32>
    %138 = vector.broadcast %116 : vector<4x1xf32> to vector<4x256xf32>
    %139 = arith.mulf %138, %137 : vector<4x256xf32>
    %140 = vector.extract_strided_slice %135 {offsets = [4, 0], sizes = [4, 256], strides = [1, 1]} : vector<8x256xf32> to vector<4x256xf32>
    %141 = math.exp %139 : vector<4x256xf32>
    %142 = arith.mulf %104, %141 : vector<4x256xf32>
    %143 = arith.addf %142, %140 : vector<4x256xf32>
    %cst_54 = arith.constant dense<0.000000e+00> : vector<256xf32>
    %144 = vector.multi_reduction <add>, %139, %cst_54 [0] : vector<4x256xf32> to vector<256xf32>
    %145 = vector.shape_cast %144 : vector<256xf32> to vector<1x256xf32>
    %146 = arith.subf %96, %145 : vector<1x256xf32>
    %147 = vector.extract_strided_slice %112 {offsets = [80, 0], sizes = [8, 1], strides = [1, 1]} : vector<96x1xf32> to vector<8x1xf32>
    %148 = vector.extract_strided_slice %112 {offsets = [88, 0], sizes = [8, 1], strides = [1, 1]} : vector<96x1xf32> to vector<8x1xf32>
    %149 = vector.extract_strided_slice %147 {offsets = [0, 0], sizes = [4, 1], strides = [1, 1]} : vector<8x1xf32> to vector<4x1xf32>
    %150 = vector.broadcast %149 : vector<4x1xf32> to vector<4x256xf32>
    %151 = arith.mulf %143, %150 : vector<4x256xf32>
    %152 = vector.extract_strided_slice %148 {offsets = [0, 0], sizes = [4, 1], strides = [1, 1]} : vector<8x1xf32> to vector<4x1xf32>
    %153 = vector.broadcast %152 : vector<4x1xf32> to vector<4x256xf32>
    %154 = arith.addf %151, %153 : vector<4x256xf32>
    %155 = vector.extract_strided_slice %147 {offsets = [4, 0], sizes = [4, 1], strides = [1, 1]} : vector<8x1xf32> to vector<4x1xf32>
    %156 = vector.broadcast %155 : vector<4x1xf32> to vector<4x256xf32>
    %157 = arith.mulf %110, %156 : vector<4x256xf32>
    %158 = vector.extract_strided_slice %148 {offsets = [4, 0], sizes = [4, 1], strides = [1, 1]} : vector<8x1xf32> to vector<4x1xf32>
    %159 = vector.broadcast %158 : vector<4x1xf32> to vector<4x256xf32>
    %160 = arith.addf %157, %159 : vector<4x256xf32>
    %c3 = arith.constant 3 : index
    %c0_55 = arith.constant 0 : index
    %c0_56 = arith.constant 0 : index
    %161 = vector.load %arg5[%c3, %c0_55, %c0_56] : memref<10x96x1xf32, #tpu.memory_space<vmem>>, vector<1x96x1xf32>
    %162 = vector.shape_cast %161 : vector<1x96x1xf32> to vector<96x1xf32>
    %163 = vector.extract_strided_slice %162 {offsets = [0, 0], sizes = [32, 1], strides = [1, 1]} : vector<96x1xf32> to vector<32x1xf32>
    %164 = vector.extract_strided_slice %162 {offsets = [32, 0], sizes = [32, 1], strides = [1, 1]} : vector<96x1xf32> to vector<32x1xf32>
    %165 = vector.extract_strided_slice %162 {offsets = [64, 0], sizes = [8, 1], strides = [1, 1]} : vector<96x1xf32> to vector<8x1xf32>
    %166 = vector.extract_strided_slice %162 {offsets = [72, 0], sizes = [4, 1], strides = [1, 1]} : vector<96x1xf32> to vector<4x1xf32>
    %c3_57 = arith.constant 3 : index
    %c0_58 = arith.constant 0 : index
    %c0_59 = arith.constant 0 : index
    %167 = vector.load %arg2[%c3_57, %c0_58, %c0_59] : memref<10x32x4xf32, #tpu.memory_space<vmem>>, vector<1x32x4xf32>
    %168 = vector.shape_cast %167 : vector<1x32x4xf32> to vector<32x4xf32>
    %c3_60 = arith.constant 3 : index
    %c0_61 = arith.constant 0 : index
    %c0_62 = arith.constant 0 : index
    %169 = vector.load %arg3[%c3_60, %c0_61, %c0_62] : memref<10x32x32xf32, #tpu.memory_space<vmem>>, vector<1x32x32xf32>
    %170 = vector.shape_cast %169 : vector<1x32x32xf32> to vector<32x32xf32>
    %c3_63 = arith.constant 3 : index
    %c0_64 = arith.constant 0 : index
    %c0_65 = arith.constant 0 : index
    %171 = vector.load %arg4[%c3_63, %c0_64, %c0_65] : memref<10x8x32xf32, #tpu.memory_space<vmem>>, vector<1x8x32xf32>
    %172 = vector.shape_cast %171 : vector<1x8x32xf32> to vector<8x32xf32>
    %cst_66 = arith.constant dense<0.000000e+00> : vector<32x256xf32>
    %173 = tpu.matmul %168, %154, %cst_66 {dimension_numbers = #tpu.dot_dimension_numbers<[1], [0], [0], [1], [0, 0, 1, 1], [], []>} : vector<32x4xf32>, vector<4x256xf32>, vector<32x256xf32> -> vector<32x256xf32>
    %174 = vector.broadcast %163 : vector<32x1xf32> to vector<32x256xf32>
    %175 = arith.addf %173, %174 : vector<32x256xf32>
    %cst_67 = arith.constant 0.000000e+00 : f32
    %176 = vector.broadcast %cst_67 : f32 to vector<32x256xf32>
    %177 = arith.maximumf %175, %176 : vector<32x256xf32>
    %cst_68 = arith.constant dense<0.000000e+00> : vector<32x256xf32>
    %178 = tpu.matmul %170, %177, %cst_68 {dimension_numbers = #tpu.dot_dimension_numbers<[1], [0], [0], [1], [0, 0, 1, 1], [], []>} : vector<32x32xf32>, vector<32x256xf32>, vector<32x256xf32> -> vector<32x256xf32>
    %179 = vector.broadcast %164 : vector<32x1xf32> to vector<32x256xf32>
    %180 = arith.addf %178, %179 : vector<32x256xf32>
    %cst_69 = arith.constant 0.000000e+00 : f32
    %181 = vector.broadcast %cst_69 : f32 to vector<32x256xf32>
    %182 = arith.maximumf %180, %181 : vector<32x256xf32>
    %cst_70 = arith.constant dense<0.000000e+00> : vector<8x256xf32>
    %183 = tpu.matmul %172, %182, %cst_70 {dimension_numbers = #tpu.dot_dimension_numbers<[1], [0], [0], [1], [0, 0, 1, 1], [], []>} : vector<8x32xf32>, vector<32x256xf32>, vector<8x256xf32> -> vector<8x256xf32>
    %184 = vector.broadcast %165 : vector<8x1xf32> to vector<8x256xf32>
    %185 = arith.addf %183, %184 : vector<8x256xf32>
    %186 = vector.extract_strided_slice %185 {offsets = [0, 0], sizes = [4, 256], strides = [1, 1]} : vector<8x256xf32> to vector<4x256xf32>
    %187 = math.tanh %186 : vector<4x256xf32>
    %188 = vector.broadcast %166 : vector<4x1xf32> to vector<4x256xf32>
    %189 = arith.mulf %188, %187 : vector<4x256xf32>
    %190 = vector.extract_strided_slice %185 {offsets = [4, 0], sizes = [4, 256], strides = [1, 1]} : vector<8x256xf32> to vector<4x256xf32>
    %191 = math.exp %189 : vector<4x256xf32>
    %192 = arith.mulf %160, %191 : vector<4x256xf32>
    %193 = arith.addf %192, %190 : vector<4x256xf32>
    %cst_71 = arith.constant dense<0.000000e+00> : vector<256xf32>
    %194 = vector.multi_reduction <add>, %189, %cst_71 [0] : vector<4x256xf32> to vector<256xf32>
    %195 = vector.shape_cast %194 : vector<256xf32> to vector<1x256xf32>
    %196 = arith.subf %146, %195 : vector<1x256xf32>
    %197 = vector.extract_strided_slice %162 {offsets = [80, 0], sizes = [8, 1], strides = [1, 1]} : vector<96x1xf32> to vector<8x1xf32>
    %198 = vector.extract_strided_slice %162 {offsets = [88, 0], sizes = [8, 1], strides = [1, 1]} : vector<96x1xf32> to vector<8x1xf32>
    %199 = vector.extract_strided_slice %197 {offsets = [0, 0], sizes = [4, 1], strides = [1, 1]} : vector<8x1xf32> to vector<4x1xf32>
    %200 = vector.broadcast %199 : vector<4x1xf32> to vector<4x256xf32>
    %201 = arith.mulf %154, %200 : vector<4x256xf32>
    %202 = vector.extract_strided_slice %198 {offsets = [0, 0], sizes = [4, 1], strides = [1, 1]} : vector<8x1xf32> to vector<4x1xf32>
    %203 = vector.broadcast %202 : vector<4x1xf32> to vector<4x256xf32>
    %204 = arith.addf %201, %203 : vector<4x256xf32>
    %205 = vector.extract_strided_slice %197 {offsets = [4, 0], sizes = [4, 1], strides = [1, 1]} : vector<8x1xf32> to vector<4x1xf32>
    %206 = vector.broadcast %205 : vector<4x1xf32> to vector<4x256xf32>
    %207 = arith.mulf %193, %206 : vector<4x256xf32>
    %208 = vector.extract_strided_slice %198 {offsets = [4, 0], sizes = [4, 1], strides = [1, 1]} : vector<8x1xf32> to vector<4x1xf32>
    %209 = vector.broadcast %208 : vector<4x1xf32> to vector<4x256xf32>
    %210 = arith.addf %207, %209 : vector<4x256xf32>
    %c4 = arith.constant 4 : index
    %c0_72 = arith.constant 0 : index
    %c0_73 = arith.constant 0 : index
    %211 = vector.load %arg5[%c4, %c0_72, %c0_73] : memref<10x96x1xf32, #tpu.memory_space<vmem>>, vector<1x96x1xf32>
    %212 = vector.shape_cast %211 : vector<1x96x1xf32> to vector<96x1xf32>
    %213 = vector.extract_strided_slice %212 {offsets = [0, 0], sizes = [32, 1], strides = [1, 1]} : vector<96x1xf32> to vector<32x1xf32>
    %214 = vector.extract_strided_slice %212 {offsets = [32, 0], sizes = [32, 1], strides = [1, 1]} : vector<96x1xf32> to vector<32x1xf32>
    %215 = vector.extract_strided_slice %212 {offsets = [64, 0], sizes = [8, 1], strides = [1, 1]} : vector<96x1xf32> to vector<8x1xf32>
    %216 = vector.extract_strided_slice %212 {offsets = [72, 0], sizes = [4, 1], strides = [1, 1]} : vector<96x1xf32> to vector<4x1xf32>
    %c4_74 = arith.constant 4 : index
    %c0_75 = arith.constant 0 : index
    %c0_76 = arith.constant 0 : index
    %217 = vector.load %arg2[%c4_74, %c0_75, %c0_76] : memref<10x32x4xf32, #tpu.memory_space<vmem>>, vector<1x32x4xf32>
    %218 = vector.shape_cast %217 : vector<1x32x4xf32> to vector<32x4xf32>
    %c4_77 = arith.constant 4 : index
    %c0_78 = arith.constant 0 : index
    %c0_79 = arith.constant 0 : index
    %219 = vector.load %arg3[%c4_77, %c0_78, %c0_79] : memref<10x32x32xf32, #tpu.memory_space<vmem>>, vector<1x32x32xf32>
    %220 = vector.shape_cast %219 : vector<1x32x32xf32> to vector<32x32xf32>
    %c4_80 = arith.constant 4 : index
    %c0_81 = arith.constant 0 : index
    %c0_82 = arith.constant 0 : index
    %221 = vector.load %arg4[%c4_80, %c0_81, %c0_82] : memref<10x8x32xf32, #tpu.memory_space<vmem>>, vector<1x8x32xf32>
    %222 = vector.shape_cast %221 : vector<1x8x32xf32> to vector<8x32xf32>
    %cst_83 = arith.constant dense<0.000000e+00> : vector<32x256xf32>
    %223 = tpu.matmul %218, %210, %cst_83 {dimension_numbers = #tpu.dot_dimension_numbers<[1], [0], [0], [1], [0, 0, 1, 1], [], []>} : vector<32x4xf32>, vector<4x256xf32>, vector<32x256xf32> -> vector<32x256xf32>
    %224 = vector.broadcast %213 : vector<32x1xf32> to vector<32x256xf32>
    %225 = arith.addf %223, %224 : vector<32x256xf32>
    %cst_84 = arith.constant 0.000000e+00 : f32
    %226 = vector.broadcast %cst_84 : f32 to vector<32x256xf32>
    %227 = arith.maximumf %225, %226 : vector<32x256xf32>
    %cst_85 = arith.constant dense<0.000000e+00> : vector<32x256xf32>
    %228 = tpu.matmul %220, %227, %cst_85 {dimension_numbers = #tpu.dot_dimension_numbers<[1], [0], [0], [1], [0, 0, 1, 1], [], []>} : vector<32x32xf32>, vector<32x256xf32>, vector<32x256xf32> -> vector<32x256xf32>
    %229 = vector.broadcast %214 : vector<32x1xf32> to vector<32x256xf32>
    %230 = arith.addf %228, %229 : vector<32x256xf32>
    %cst_86 = arith.constant 0.000000e+00 : f32
    %231 = vector.broadcast %cst_86 : f32 to vector<32x256xf32>
    %232 = arith.maximumf %230, %231 : vector<32x256xf32>
    %cst_87 = arith.constant dense<0.000000e+00> : vector<8x256xf32>
    %233 = tpu.matmul %222, %232, %cst_87 {dimension_numbers = #tpu.dot_dimension_numbers<[1], [0], [0], [1], [0, 0, 1, 1], [], []>} : vector<8x32xf32>, vector<32x256xf32>, vector<8x256xf32> -> vector<8x256xf32>
    %234 = vector.broadcast %215 : vector<8x1xf32> to vector<8x256xf32>
    %235 = arith.addf %233, %234 : vector<8x256xf32>
    %236 = vector.extract_strided_slice %235 {offsets = [0, 0], sizes = [4, 256], strides = [1, 1]} : vector<8x256xf32> to vector<4x256xf32>
    %237 = math.tanh %236 : vector<4x256xf32>
    %238 = vector.broadcast %216 : vector<4x1xf32> to vector<4x256xf32>
    %239 = arith.mulf %238, %237 : vector<4x256xf32>
    %240 = vector.extract_strided_slice %235 {offsets = [4, 0], sizes = [4, 256], strides = [1, 1]} : vector<8x256xf32> to vector<4x256xf32>
    %241 = math.exp %239 : vector<4x256xf32>
    %242 = arith.mulf %204, %241 : vector<4x256xf32>
    %243 = arith.addf %242, %240 : vector<4x256xf32>
    %cst_88 = arith.constant dense<0.000000e+00> : vector<256xf32>
    %244 = vector.multi_reduction <add>, %239, %cst_88 [0] : vector<4x256xf32> to vector<256xf32>
    %245 = vector.shape_cast %244 : vector<256xf32> to vector<1x256xf32>
    %246 = arith.subf %196, %245 : vector<1x256xf32>
    %247 = vector.extract_strided_slice %212 {offsets = [80, 0], sizes = [8, 1], strides = [1, 1]} : vector<96x1xf32> to vector<8x1xf32>
    %248 = vector.extract_strided_slice %212 {offsets = [88, 0], sizes = [8, 1], strides = [1, 1]} : vector<96x1xf32> to vector<8x1xf32>
    %249 = vector.extract_strided_slice %247 {offsets = [0, 0], sizes = [4, 1], strides = [1, 1]} : vector<8x1xf32> to vector<4x1xf32>
    %250 = vector.broadcast %249 : vector<4x1xf32> to vector<4x256xf32>
    %251 = arith.mulf %243, %250 : vector<4x256xf32>
    %252 = vector.extract_strided_slice %248 {offsets = [0, 0], sizes = [4, 1], strides = [1, 1]} : vector<8x1xf32> to vector<4x1xf32>
    %253 = vector.broadcast %252 : vector<4x1xf32> to vector<4x256xf32>
    %254 = arith.addf %251, %253 : vector<4x256xf32>
    %255 = vector.extract_strided_slice %247 {offsets = [4, 0], sizes = [4, 1], strides = [1, 1]} : vector<8x1xf32> to vector<4x1xf32>
    %256 = vector.broadcast %255 : vector<4x1xf32> to vector<4x256xf32>
    %257 = arith.mulf %210, %256 : vector<4x256xf32>
    %258 = vector.extract_strided_slice %248 {offsets = [4, 0], sizes = [4, 1], strides = [1, 1]} : vector<8x1xf32> to vector<4x1xf32>
    %259 = vector.broadcast %258 : vector<4x1xf32> to vector<4x256xf32>
    %260 = arith.addf %257, %259 : vector<4x256xf32>
    %c5 = arith.constant 5 : index
    %c0_89 = arith.constant 0 : index
    %c0_90 = arith.constant 0 : index
    %261 = vector.load %arg5[%c5, %c0_89, %c0_90] : memref<10x96x1xf32, #tpu.memory_space<vmem>>, vector<1x96x1xf32>
    %262 = vector.shape_cast %261 : vector<1x96x1xf32> to vector<96x1xf32>
    %263 = vector.extract_strided_slice %262 {offsets = [0, 0], sizes = [32, 1], strides = [1, 1]} : vector<96x1xf32> to vector<32x1xf32>
    %264 = vector.extract_strided_slice %262 {offsets = [32, 0], sizes = [32, 1], strides = [1, 1]} : vector<96x1xf32> to vector<32x1xf32>
    %265 = vector.extract_strided_slice %262 {offsets = [64, 0], sizes = [8, 1], strides = [1, 1]} : vector<96x1xf32> to vector<8x1xf32>
    %266 = vector.extract_strided_slice %262 {offsets = [72, 0], sizes = [4, 1], strides = [1, 1]} : vector<96x1xf32> to vector<4x1xf32>
    %c5_91 = arith.constant 5 : index
    %c0_92 = arith.constant 0 : index
    %c0_93 = arith.constant 0 : index
    %267 = vector.load %arg2[%c5_91, %c0_92, %c0_93] : memref<10x32x4xf32, #tpu.memory_space<vmem>>, vector<1x32x4xf32>
    %268 = vector.shape_cast %267 : vector<1x32x4xf32> to vector<32x4xf32>
    %c5_94 = arith.constant 5 : index
    %c0_95 = arith.constant 0 : index
    %c0_96 = arith.constant 0 : index
    %269 = vector.load %arg3[%c5_94, %c0_95, %c0_96] : memref<10x32x32xf32, #tpu.memory_space<vmem>>, vector<1x32x32xf32>
    %270 = vector.shape_cast %269 : vector<1x32x32xf32> to vector<32x32xf32>
    %c5_97 = arith.constant 5 : index
    %c0_98 = arith.constant 0 : index
    %c0_99 = arith.constant 0 : index
    %271 = vector.load %arg4[%c5_97, %c0_98, %c0_99] : memref<10x8x32xf32, #tpu.memory_space<vmem>>, vector<1x8x32xf32>
    %272 = vector.shape_cast %271 : vector<1x8x32xf32> to vector<8x32xf32>
    %cst_100 = arith.constant dense<0.000000e+00> : vector<32x256xf32>
    %273 = tpu.matmul %268, %254, %cst_100 {dimension_numbers = #tpu.dot_dimension_numbers<[1], [0], [0], [1], [0, 0, 1, 1], [], []>} : vector<32x4xf32>, vector<4x256xf32>, vector<32x256xf32> -> vector<32x256xf32>
    %274 = vector.broadcast %263 : vector<32x1xf32> to vector<32x256xf32>
    %275 = arith.addf %273, %274 : vector<32x256xf32>
    %cst_101 = arith.constant 0.000000e+00 : f32
    %276 = vector.broadcast %cst_101 : f32 to vector<32x256xf32>
    %277 = arith.maximumf %275, %276 : vector<32x256xf32>
    %cst_102 = arith.constant dense<0.000000e+00> : vector<32x256xf32>
    %278 = tpu.matmul %270, %277, %cst_102 {dimension_numbers = #tpu.dot_dimension_numbers<[1], [0], [0], [1], [0, 0, 1, 1], [], []>} : vector<32x32xf32>, vector<32x256xf32>, vector<32x256xf32> -> vector<32x256xf32>
    %279 = vector.broadcast %264 : vector<32x1xf32> to vector<32x256xf32>
    %280 = arith.addf %278, %279 : vector<32x256xf32>
    %cst_103 = arith.constant 0.000000e+00 : f32
    %281 = vector.broadcast %cst_103 : f32 to vector<32x256xf32>
    %282 = arith.maximumf %280, %281 : vector<32x256xf32>
    %cst_104 = arith.constant dense<0.000000e+00> : vector<8x256xf32>
    %283 = tpu.matmul %272, %282, %cst_104 {dimension_numbers = #tpu.dot_dimension_numbers<[1], [0], [0], [1], [0, 0, 1, 1], [], []>} : vector<8x32xf32>, vector<32x256xf32>, vector<8x256xf32> -> vector<8x256xf32>
    %284 = vector.broadcast %265 : vector<8x1xf32> to vector<8x256xf32>
    %285 = arith.addf %283, %284 : vector<8x256xf32>
    %286 = vector.extract_strided_slice %285 {offsets = [0, 0], sizes = [4, 256], strides = [1, 1]} : vector<8x256xf32> to vector<4x256xf32>
    %287 = math.tanh %286 : vector<4x256xf32>
    %288 = vector.broadcast %266 : vector<4x1xf32> to vector<4x256xf32>
    %289 = arith.mulf %288, %287 : vector<4x256xf32>
    %290 = vector.extract_strided_slice %285 {offsets = [4, 0], sizes = [4, 256], strides = [1, 1]} : vector<8x256xf32> to vector<4x256xf32>
    %291 = math.exp %289 : vector<4x256xf32>
    %292 = arith.mulf %260, %291 : vector<4x256xf32>
    %293 = arith.addf %292, %290 : vector<4x256xf32>
    %cst_105 = arith.constant dense<0.000000e+00> : vector<256xf32>
    %294 = vector.multi_reduction <add>, %289, %cst_105 [0] : vector<4x256xf32> to vector<256xf32>
    %295 = vector.shape_cast %294 : vector<256xf32> to vector<1x256xf32>
    %296 = arith.subf %246, %295 : vector<1x256xf32>
    %297 = vector.extract_strided_slice %262 {offsets = [80, 0], sizes = [8, 1], strides = [1, 1]} : vector<96x1xf32> to vector<8x1xf32>
    %298 = vector.extract_strided_slice %262 {offsets = [88, 0], sizes = [8, 1], strides = [1, 1]} : vector<96x1xf32> to vector<8x1xf32>
    %299 = vector.extract_strided_slice %297 {offsets = [0, 0], sizes = [4, 1], strides = [1, 1]} : vector<8x1xf32> to vector<4x1xf32>
    %300 = vector.broadcast %299 : vector<4x1xf32> to vector<4x256xf32>
    %301 = arith.mulf %254, %300 : vector<4x256xf32>
    %302 = vector.extract_strided_slice %298 {offsets = [0, 0], sizes = [4, 1], strides = [1, 1]} : vector<8x1xf32> to vector<4x1xf32>
    %303 = vector.broadcast %302 : vector<4x1xf32> to vector<4x256xf32>
    %304 = arith.addf %301, %303 : vector<4x256xf32>
    %305 = vector.extract_strided_slice %297 {offsets = [4, 0], sizes = [4, 1], strides = [1, 1]} : vector<8x1xf32> to vector<4x1xf32>
    %306 = vector.broadcast %305 : vector<4x1xf32> to vector<4x256xf32>
    %307 = arith.mulf %293, %306 : vector<4x256xf32>
    %308 = vector.extract_strided_slice %298 {offsets = [4, 0], sizes = [4, 1], strides = [1, 1]} : vector<8x1xf32> to vector<4x1xf32>
    %309 = vector.broadcast %308 : vector<4x1xf32> to vector<4x256xf32>
    %310 = arith.addf %307, %309 : vector<4x256xf32>
    %c6 = arith.constant 6 : index
    %c0_106 = arith.constant 0 : index
    %c0_107 = arith.constant 0 : index
    %311 = vector.load %arg5[%c6, %c0_106, %c0_107] : memref<10x96x1xf32, #tpu.memory_space<vmem>>, vector<1x96x1xf32>
    %312 = vector.shape_cast %311 : vector<1x96x1xf32> to vector<96x1xf32>
    %313 = vector.extract_strided_slice %312 {offsets = [0, 0], sizes = [32, 1], strides = [1, 1]} : vector<96x1xf32> to vector<32x1xf32>
    %314 = vector.extract_strided_slice %312 {offsets = [32, 0], sizes = [32, 1], strides = [1, 1]} : vector<96x1xf32> to vector<32x1xf32>
    %315 = vector.extract_strided_slice %312 {offsets = [64, 0], sizes = [8, 1], strides = [1, 1]} : vector<96x1xf32> to vector<8x1xf32>
    %316 = vector.extract_strided_slice %312 {offsets = [72, 0], sizes = [4, 1], strides = [1, 1]} : vector<96x1xf32> to vector<4x1xf32>
    %c6_108 = arith.constant 6 : index
    %c0_109 = arith.constant 0 : index
    %c0_110 = arith.constant 0 : index
    %317 = vector.load %arg2[%c6_108, %c0_109, %c0_110] : memref<10x32x4xf32, #tpu.memory_space<vmem>>, vector<1x32x4xf32>
    %318 = vector.shape_cast %317 : vector<1x32x4xf32> to vector<32x4xf32>
    %c6_111 = arith.constant 6 : index
    %c0_112 = arith.constant 0 : index
    %c0_113 = arith.constant 0 : index
    %319 = vector.load %arg3[%c6_111, %c0_112, %c0_113] : memref<10x32x32xf32, #tpu.memory_space<vmem>>, vector<1x32x32xf32>
    %320 = vector.shape_cast %319 : vector<1x32x32xf32> to vector<32x32xf32>
    %c6_114 = arith.constant 6 : index
    %c0_115 = arith.constant 0 : index
    %c0_116 = arith.constant 0 : index
    %321 = vector.load %arg4[%c6_114, %c0_115, %c0_116] : memref<10x8x32xf32, #tpu.memory_space<vmem>>, vector<1x8x32xf32>
    %322 = vector.shape_cast %321 : vector<1x8x32xf32> to vector<8x32xf32>
    %cst_117 = arith.constant dense<0.000000e+00> : vector<32x256xf32>
    %323 = tpu.matmul %318, %310, %cst_117 {dimension_numbers = #tpu.dot_dimension_numbers<[1], [0], [0], [1], [0, 0, 1, 1], [], []>} : vector<32x4xf32>, vector<4x256xf32>, vector<32x256xf32> -> vector<32x256xf32>
    %324 = vector.broadcast %313 : vector<32x1xf32> to vector<32x256xf32>
    %325 = arith.addf %323, %324 : vector<32x256xf32>
    %cst_118 = arith.constant 0.000000e+00 : f32
    %326 = vector.broadcast %cst_118 : f32 to vector<32x256xf32>
    %327 = arith.maximumf %325, %326 : vector<32x256xf32>
    %cst_119 = arith.constant dense<0.000000e+00> : vector<32x256xf32>
    %328 = tpu.matmul %320, %327, %cst_119 {dimension_numbers = #tpu.dot_dimension_numbers<[1], [0], [0], [1], [0, 0, 1, 1], [], []>} : vector<32x32xf32>, vector<32x256xf32>, vector<32x256xf32> -> vector<32x256xf32>
    %329 = vector.broadcast %314 : vector<32x1xf32> to vector<32x256xf32>
    %330 = arith.addf %328, %329 : vector<32x256xf32>
    %cst_120 = arith.constant 0.000000e+00 : f32
    %331 = vector.broadcast %cst_120 : f32 to vector<32x256xf32>
    %332 = arith.maximumf %330, %331 : vector<32x256xf32>
    %cst_121 = arith.constant dense<0.000000e+00> : vector<8x256xf32>
    %333 = tpu.matmul %322, %332, %cst_121 {dimension_numbers = #tpu.dot_dimension_numbers<[1], [0], [0], [1], [0, 0, 1, 1], [], []>} : vector<8x32xf32>, vector<32x256xf32>, vector<8x256xf32> -> vector<8x256xf32>
    %334 = vector.broadcast %315 : vector<8x1xf32> to vector<8x256xf32>
    %335 = arith.addf %333, %334 : vector<8x256xf32>
    %336 = vector.extract_strided_slice %335 {offsets = [0, 0], sizes = [4, 256], strides = [1, 1]} : vector<8x256xf32> to vector<4x256xf32>
    %337 = math.tanh %336 : vector<4x256xf32>
    %338 = vector.broadcast %316 : vector<4x1xf32> to vector<4x256xf32>
    %339 = arith.mulf %338, %337 : vector<4x256xf32>
    %340 = vector.extract_strided_slice %335 {offsets = [4, 0], sizes = [4, 256], strides = [1, 1]} : vector<8x256xf32> to vector<4x256xf32>
    %341 = math.exp %339 : vector<4x256xf32>
    %342 = arith.mulf %304, %341 : vector<4x256xf32>
    %343 = arith.addf %342, %340 : vector<4x256xf32>
    %cst_122 = arith.constant dense<0.000000e+00> : vector<256xf32>
    %344 = vector.multi_reduction <add>, %339, %cst_122 [0] : vector<4x256xf32> to vector<256xf32>
    %345 = vector.shape_cast %344 : vector<256xf32> to vector<1x256xf32>
    %346 = arith.subf %296, %345 : vector<1x256xf32>
    %347 = vector.extract_strided_slice %312 {offsets = [80, 0], sizes = [8, 1], strides = [1, 1]} : vector<96x1xf32> to vector<8x1xf32>
    %348 = vector.extract_strided_slice %312 {offsets = [88, 0], sizes = [8, 1], strides = [1, 1]} : vector<96x1xf32> to vector<8x1xf32>
    %349 = vector.extract_strided_slice %347 {offsets = [0, 0], sizes = [4, 1], strides = [1, 1]} : vector<8x1xf32> to vector<4x1xf32>
    %350 = vector.broadcast %349 : vector<4x1xf32> to vector<4x256xf32>
    %351 = arith.mulf %343, %350 : vector<4x256xf32>
    %352 = vector.extract_strided_slice %348 {offsets = [0, 0], sizes = [4, 1], strides = [1, 1]} : vector<8x1xf32> to vector<4x1xf32>
    %353 = vector.broadcast %352 : vector<4x1xf32> to vector<4x256xf32>
    %354 = arith.addf %351, %353 : vector<4x256xf32>
    %355 = vector.extract_strided_slice %347 {offsets = [4, 0], sizes = [4, 1], strides = [1, 1]} : vector<8x1xf32> to vector<4x1xf32>
    %356 = vector.broadcast %355 : vector<4x1xf32> to vector<4x256xf32>
    %357 = arith.mulf %310, %356 : vector<4x256xf32>
    %358 = vector.extract_strided_slice %348 {offsets = [4, 0], sizes = [4, 1], strides = [1, 1]} : vector<8x1xf32> to vector<4x1xf32>
    %359 = vector.broadcast %358 : vector<4x1xf32> to vector<4x256xf32>
    %360 = arith.addf %357, %359 : vector<4x256xf32>
    %c7 = arith.constant 7 : index
    %c0_123 = arith.constant 0 : index
    %c0_124 = arith.constant 0 : index
    %361 = vector.load %arg5[%c7, %c0_123, %c0_124] : memref<10x96x1xf32, #tpu.memory_space<vmem>>, vector<1x96x1xf32>
    %362 = vector.shape_cast %361 : vector<1x96x1xf32> to vector<96x1xf32>
    %363 = vector.extract_strided_slice %362 {offsets = [0, 0], sizes = [32, 1], strides = [1, 1]} : vector<96x1xf32> to vector<32x1xf32>
    %364 = vector.extract_strided_slice %362 {offsets = [32, 0], sizes = [32, 1], strides = [1, 1]} : vector<96x1xf32> to vector<32x1xf32>
    %365 = vector.extract_strided_slice %362 {offsets = [64, 0], sizes = [8, 1], strides = [1, 1]} : vector<96x1xf32> to vector<8x1xf32>
    %366 = vector.extract_strided_slice %362 {offsets = [72, 0], sizes = [4, 1], strides = [1, 1]} : vector<96x1xf32> to vector<4x1xf32>
    %c7_125 = arith.constant 7 : index
    %c0_126 = arith.constant 0 : index
    %c0_127 = arith.constant 0 : index
    %367 = vector.load %arg2[%c7_125, %c0_126, %c0_127] : memref<10x32x4xf32, #tpu.memory_space<vmem>>, vector<1x32x4xf32>
    %368 = vector.shape_cast %367 : vector<1x32x4xf32> to vector<32x4xf32>
    %c7_128 = arith.constant 7 : index
    %c0_129 = arith.constant 0 : index
    %c0_130 = arith.constant 0 : index
    %369 = vector.load %arg3[%c7_128, %c0_129, %c0_130] : memref<10x32x32xf32, #tpu.memory_space<vmem>>, vector<1x32x32xf32>
    %370 = vector.shape_cast %369 : vector<1x32x32xf32> to vector<32x32xf32>
    %c7_131 = arith.constant 7 : index
    %c0_132 = arith.constant 0 : index
    %c0_133 = arith.constant 0 : index
    %371 = vector.load %arg4[%c7_131, %c0_132, %c0_133] : memref<10x8x32xf32, #tpu.memory_space<vmem>>, vector<1x8x32xf32>
    %372 = vector.shape_cast %371 : vector<1x8x32xf32> to vector<8x32xf32>
    %cst_134 = arith.constant dense<0.000000e+00> : vector<32x256xf32>
    %373 = tpu.matmul %368, %354, %cst_134 {dimension_numbers = #tpu.dot_dimension_numbers<[1], [0], [0], [1], [0, 0, 1, 1], [], []>} : vector<32x4xf32>, vector<4x256xf32>, vector<32x256xf32> -> vector<32x256xf32>
    %374 = vector.broadcast %363 : vector<32x1xf32> to vector<32x256xf32>
    %375 = arith.addf %373, %374 : vector<32x256xf32>
    %cst_135 = arith.constant 0.000000e+00 : f32
    %376 = vector.broadcast %cst_135 : f32 to vector<32x256xf32>
    %377 = arith.maximumf %375, %376 : vector<32x256xf32>
    %cst_136 = arith.constant dense<0.000000e+00> : vector<32x256xf32>
    %378 = tpu.matmul %370, %377, %cst_136 {dimension_numbers = #tpu.dot_dimension_numbers<[1], [0], [0], [1], [0, 0, 1, 1], [], []>} : vector<32x32xf32>, vector<32x256xf32>, vector<32x256xf32> -> vector<32x256xf32>
    %379 = vector.broadcast %364 : vector<32x1xf32> to vector<32x256xf32>
    %380 = arith.addf %378, %379 : vector<32x256xf32>
    %cst_137 = arith.constant 0.000000e+00 : f32
    %381 = vector.broadcast %cst_137 : f32 to vector<32x256xf32>
    %382 = arith.maximumf %380, %381 : vector<32x256xf32>
    %cst_138 = arith.constant dense<0.000000e+00> : vector<8x256xf32>
    %383 = tpu.matmul %372, %382, %cst_138 {dimension_numbers = #tpu.dot_dimension_numbers<[1], [0], [0], [1], [0, 0, 1, 1], [], []>} : vector<8x32xf32>, vector<32x256xf32>, vector<8x256xf32> -> vector<8x256xf32>
    %384 = vector.broadcast %365 : vector<8x1xf32> to vector<8x256xf32>
    %385 = arith.addf %383, %384 : vector<8x256xf32>
    %386 = vector.extract_strided_slice %385 {offsets = [0, 0], sizes = [4, 256], strides = [1, 1]} : vector<8x256xf32> to vector<4x256xf32>
    %387 = math.tanh %386 : vector<4x256xf32>
    %388 = vector.broadcast %366 : vector<4x1xf32> to vector<4x256xf32>
    %389 = arith.mulf %388, %387 : vector<4x256xf32>
    %390 = vector.extract_strided_slice %385 {offsets = [4, 0], sizes = [4, 256], strides = [1, 1]} : vector<8x256xf32> to vector<4x256xf32>
    %391 = math.exp %389 : vector<4x256xf32>
    %392 = arith.mulf %360, %391 : vector<4x256xf32>
    %393 = arith.addf %392, %390 : vector<4x256xf32>
    %cst_139 = arith.constant dense<0.000000e+00> : vector<256xf32>
    %394 = vector.multi_reduction <add>, %389, %cst_139 [0] : vector<4x256xf32> to vector<256xf32>
    %395 = vector.shape_cast %394 : vector<256xf32> to vector<1x256xf32>
    %396 = arith.subf %346, %395 : vector<1x256xf32>
    %397 = vector.extract_strided_slice %362 {offsets = [80, 0], sizes = [8, 1], strides = [1, 1]} : vector<96x1xf32> to vector<8x1xf32>
    %398 = vector.extract_strided_slice %362 {offsets = [88, 0], sizes = [8, 1], strides = [1, 1]} : vector<96x1xf32> to vector<8x1xf32>
    %399 = vector.extract_strided_slice %397 {offsets = [0, 0], sizes = [4, 1], strides = [1, 1]} : vector<8x1xf32> to vector<4x1xf32>
    %400 = vector.broadcast %399 : vector<4x1xf32> to vector<4x256xf32>
    %401 = arith.mulf %354, %400 : vector<4x256xf32>
    %402 = vector.extract_strided_slice %398 {offsets = [0, 0], sizes = [4, 1], strides = [1, 1]} : vector<8x1xf32> to vector<4x1xf32>
    %403 = vector.broadcast %402 : vector<4x1xf32> to vector<4x256xf32>
    %404 = arith.addf %401, %403 : vector<4x256xf32>
    %405 = vector.extract_strided_slice %397 {offsets = [4, 0], sizes = [4, 1], strides = [1, 1]} : vector<8x1xf32> to vector<4x1xf32>
    %406 = vector.broadcast %405 : vector<4x1xf32> to vector<4x256xf32>
    %407 = arith.mulf %393, %406 : vector<4x256xf32>
    %408 = vector.extract_strided_slice %398 {offsets = [4, 0], sizes = [4, 1], strides = [1, 1]} : vector<8x1xf32> to vector<4x1xf32>
    %409 = vector.broadcast %408 : vector<4x1xf32> to vector<4x256xf32>
    %410 = arith.addf %407, %409 : vector<4x256xf32>
    %c8 = arith.constant 8 : index
    %c0_140 = arith.constant 0 : index
    %c0_141 = arith.constant 0 : index
    %411 = vector.load %arg5[%c8, %c0_140, %c0_141] : memref<10x96x1xf32, #tpu.memory_space<vmem>>, vector<1x96x1xf32>
    %412 = vector.shape_cast %411 : vector<1x96x1xf32> to vector<96x1xf32>
    %413 = vector.extract_strided_slice %412 {offsets = [0, 0], sizes = [32, 1], strides = [1, 1]} : vector<96x1xf32> to vector<32x1xf32>
    %414 = vector.extract_strided_slice %412 {offsets = [32, 0], sizes = [32, 1], strides = [1, 1]} : vector<96x1xf32> to vector<32x1xf32>
    %415 = vector.extract_strided_slice %412 {offsets = [64, 0], sizes = [8, 1], strides = [1, 1]} : vector<96x1xf32> to vector<8x1xf32>
    %416 = vector.extract_strided_slice %412 {offsets = [72, 0], sizes = [4, 1], strides = [1, 1]} : vector<96x1xf32> to vector<4x1xf32>
    %c8_142 = arith.constant 8 : index
    %c0_143 = arith.constant 0 : index
    %c0_144 = arith.constant 0 : index
    %417 = vector.load %arg2[%c8_142, %c0_143, %c0_144] : memref<10x32x4xf32, #tpu.memory_space<vmem>>, vector<1x32x4xf32>
    %418 = vector.shape_cast %417 : vector<1x32x4xf32> to vector<32x4xf32>
    %c8_145 = arith.constant 8 : index
    %c0_146 = arith.constant 0 : index
    %c0_147 = arith.constant 0 : index
    %419 = vector.load %arg3[%c8_145, %c0_146, %c0_147] : memref<10x32x32xf32, #tpu.memory_space<vmem>>, vector<1x32x32xf32>
    %420 = vector.shape_cast %419 : vector<1x32x32xf32> to vector<32x32xf32>
    %c8_148 = arith.constant 8 : index
    %c0_149 = arith.constant 0 : index
    %c0_150 = arith.constant 0 : index
    %421 = vector.load %arg4[%c8_148, %c0_149, %c0_150] : memref<10x8x32xf32, #tpu.memory_space<vmem>>, vector<1x8x32xf32>
    %422 = vector.shape_cast %421 : vector<1x8x32xf32> to vector<8x32xf32>
    %cst_151 = arith.constant dense<0.000000e+00> : vector<32x256xf32>
    %423 = tpu.matmul %418, %410, %cst_151 {dimension_numbers = #tpu.dot_dimension_numbers<[1], [0], [0], [1], [0, 0, 1, 1], [], []>} : vector<32x4xf32>, vector<4x256xf32>, vector<32x256xf32> -> vector<32x256xf32>
    %424 = vector.broadcast %413 : vector<32x1xf32> to vector<32x256xf32>
    %425 = arith.addf %423, %424 : vector<32x256xf32>
    %cst_152 = arith.constant 0.000000e+00 : f32
    %426 = vector.broadcast %cst_152 : f32 to vector<32x256xf32>
    %427 = arith.maximumf %425, %426 : vector<32x256xf32>
    %cst_153 = arith.constant dense<0.000000e+00> : vector<32x256xf32>
    %428 = tpu.matmul %420, %427, %cst_153 {dimension_numbers = #tpu.dot_dimension_numbers<[1], [0], [0], [1], [0, 0, 1, 1], [], []>} : vector<32x32xf32>, vector<32x256xf32>, vector<32x256xf32> -> vector<32x256xf32>
    %429 = vector.broadcast %414 : vector<32x1xf32> to vector<32x256xf32>
    %430 = arith.addf %428, %429 : vector<32x256xf32>
    %cst_154 = arith.constant 0.000000e+00 : f32
    %431 = vector.broadcast %cst_154 : f32 to vector<32x256xf32>
    %432 = arith.maximumf %430, %431 : vector<32x256xf32>
    %cst_155 = arith.constant dense<0.000000e+00> : vector<8x256xf32>
    %433 = tpu.matmul %422, %432, %cst_155 {dimension_numbers = #tpu.dot_dimension_numbers<[1], [0], [0], [1], [0, 0, 1, 1], [], []>} : vector<8x32xf32>, vector<32x256xf32>, vector<8x256xf32> -> vector<8x256xf32>
    %434 = vector.broadcast %415 : vector<8x1xf32> to vector<8x256xf32>
    %435 = arith.addf %433, %434 : vector<8x256xf32>
    %436 = vector.extract_strided_slice %435 {offsets = [0, 0], sizes = [4, 256], strides = [1, 1]} : vector<8x256xf32> to vector<4x256xf32>
    %437 = math.tanh %436 : vector<4x256xf32>
    %438 = vector.broadcast %416 : vector<4x1xf32> to vector<4x256xf32>
    %439 = arith.mulf %438, %437 : vector<4x256xf32>
    %440 = vector.extract_strided_slice %435 {offsets = [4, 0], sizes = [4, 256], strides = [1, 1]} : vector<8x256xf32> to vector<4x256xf32>
    %441 = math.exp %439 : vector<4x256xf32>
    %442 = arith.mulf %404, %441 : vector<4x256xf32>
    %443 = arith.addf %442, %440 : vector<4x256xf32>
    %cst_156 = arith.constant dense<0.000000e+00> : vector<256xf32>
    %444 = vector.multi_reduction <add>, %439, %cst_156 [0] : vector<4x256xf32> to vector<256xf32>
    %445 = vector.shape_cast %444 : vector<256xf32> to vector<1x256xf32>
    %446 = arith.subf %396, %445 : vector<1x256xf32>
    %447 = vector.extract_strided_slice %412 {offsets = [80, 0], sizes = [8, 1], strides = [1, 1]} : vector<96x1xf32> to vector<8x1xf32>
    %448 = vector.extract_strided_slice %412 {offsets = [88, 0], sizes = [8, 1], strides = [1, 1]} : vector<96x1xf32> to vector<8x1xf32>
    %449 = vector.extract_strided_slice %447 {offsets = [0, 0], sizes = [4, 1], strides = [1, 1]} : vector<8x1xf32> to vector<4x1xf32>
    %450 = vector.broadcast %449 : vector<4x1xf32> to vector<4x256xf32>
    %451 = arith.mulf %443, %450 : vector<4x256xf32>
    %452 = vector.extract_strided_slice %448 {offsets = [0, 0], sizes = [4, 1], strides = [1, 1]} : vector<8x1xf32> to vector<4x1xf32>
    %453 = vector.broadcast %452 : vector<4x1xf32> to vector<4x256xf32>
    %454 = arith.addf %451, %453 : vector<4x256xf32>
    %455 = vector.extract_strided_slice %447 {offsets = [4, 0], sizes = [4, 1], strides = [1, 1]} : vector<8x1xf32> to vector<4x1xf32>
    %456 = vector.broadcast %455 : vector<4x1xf32> to vector<4x256xf32>
    %457 = arith.mulf %410, %456 : vector<4x256xf32>
    %458 = vector.extract_strided_slice %448 {offsets = [4, 0], sizes = [4, 1], strides = [1, 1]} : vector<8x1xf32> to vector<4x1xf32>
    %459 = vector.broadcast %458 : vector<4x1xf32> to vector<4x256xf32>
    %460 = arith.addf %457, %459 : vector<4x256xf32>
    %c9 = arith.constant 9 : index
    %c0_157 = arith.constant 0 : index
    %c0_158 = arith.constant 0 : index
    %461 = vector.load %arg5[%c9, %c0_157, %c0_158] : memref<10x96x1xf32, #tpu.memory_space<vmem>>, vector<1x96x1xf32>
    %462 = vector.shape_cast %461 : vector<1x96x1xf32> to vector<96x1xf32>
    %463 = vector.extract_strided_slice %462 {offsets = [0, 0], sizes = [32, 1], strides = [1, 1]} : vector<96x1xf32> to vector<32x1xf32>
    %464 = vector.extract_strided_slice %462 {offsets = [32, 0], sizes = [32, 1], strides = [1, 1]} : vector<96x1xf32> to vector<32x1xf32>
    %465 = vector.extract_strided_slice %462 {offsets = [64, 0], sizes = [8, 1], strides = [1, 1]} : vector<96x1xf32> to vector<8x1xf32>
    %466 = vector.extract_strided_slice %462 {offsets = [72, 0], sizes = [4, 1], strides = [1, 1]} : vector<96x1xf32> to vector<4x1xf32>
    %c9_159 = arith.constant 9 : index
    %c0_160 = arith.constant 0 : index
    %c0_161 = arith.constant 0 : index
    %467 = vector.load %arg2[%c9_159, %c0_160, %c0_161] : memref<10x32x4xf32, #tpu.memory_space<vmem>>, vector<1x32x4xf32>
    %468 = vector.shape_cast %467 : vector<1x32x4xf32> to vector<32x4xf32>
    %c9_162 = arith.constant 9 : index
    %c0_163 = arith.constant 0 : index
    %c0_164 = arith.constant 0 : index
    %469 = vector.load %arg3[%c9_162, %c0_163, %c0_164] : memref<10x32x32xf32, #tpu.memory_space<vmem>>, vector<1x32x32xf32>
    %470 = vector.shape_cast %469 : vector<1x32x32xf32> to vector<32x32xf32>
    %c9_165 = arith.constant 9 : index
    %c0_166 = arith.constant 0 : index
    %c0_167 = arith.constant 0 : index
    %471 = vector.load %arg4[%c9_165, %c0_166, %c0_167] : memref<10x8x32xf32, #tpu.memory_space<vmem>>, vector<1x8x32xf32>
    %472 = vector.shape_cast %471 : vector<1x8x32xf32> to vector<8x32xf32>
    %cst_168 = arith.constant dense<0.000000e+00> : vector<32x256xf32>
    %473 = tpu.matmul %468, %454, %cst_168 {dimension_numbers = #tpu.dot_dimension_numbers<[1], [0], [0], [1], [0, 0, 1, 1], [], []>} : vector<32x4xf32>, vector<4x256xf32>, vector<32x256xf32> -> vector<32x256xf32>
    %474 = vector.broadcast %463 : vector<32x1xf32> to vector<32x256xf32>
    %475 = arith.addf %473, %474 : vector<32x256xf32>
    %cst_169 = arith.constant 0.000000e+00 : f32
    %476 = vector.broadcast %cst_169 : f32 to vector<32x256xf32>
    %477 = arith.maximumf %475, %476 : vector<32x256xf32>
    %cst_170 = arith.constant dense<0.000000e+00> : vector<32x256xf32>
    %478 = tpu.matmul %470, %477, %cst_170 {dimension_numbers = #tpu.dot_dimension_numbers<[1], [0], [0], [1], [0, 0, 1, 1], [], []>} : vector<32x32xf32>, vector<32x256xf32>, vector<32x256xf32> -> vector<32x256xf32>
    %479 = vector.broadcast %464 : vector<32x1xf32> to vector<32x256xf32>
    %480 = arith.addf %478, %479 : vector<32x256xf32>
    %cst_171 = arith.constant 0.000000e+00 : f32
    %481 = vector.broadcast %cst_171 : f32 to vector<32x256xf32>
    %482 = arith.maximumf %480, %481 : vector<32x256xf32>
    %cst_172 = arith.constant dense<0.000000e+00> : vector<8x256xf32>
    %483 = tpu.matmul %472, %482, %cst_172 {dimension_numbers = #tpu.dot_dimension_numbers<[1], [0], [0], [1], [0, 0, 1, 1], [], []>} : vector<8x32xf32>, vector<32x256xf32>, vector<8x256xf32> -> vector<8x256xf32>
    %484 = vector.broadcast %465 : vector<8x1xf32> to vector<8x256xf32>
    %485 = arith.addf %483, %484 : vector<8x256xf32>
    %486 = vector.extract_strided_slice %485 {offsets = [0, 0], sizes = [4, 256], strides = [1, 1]} : vector<8x256xf32> to vector<4x256xf32>
    %487 = math.tanh %486 : vector<4x256xf32>
    %488 = vector.broadcast %466 : vector<4x1xf32> to vector<4x256xf32>
    %489 = arith.mulf %488, %487 : vector<4x256xf32>
    %490 = vector.extract_strided_slice %485 {offsets = [4, 0], sizes = [4, 256], strides = [1, 1]} : vector<8x256xf32> to vector<4x256xf32>
    %491 = math.exp %489 : vector<4x256xf32>
    %492 = arith.mulf %460, %491 : vector<4x256xf32>
    %493 = arith.addf %492, %490 : vector<4x256xf32>
    %cst_173 = arith.constant dense<0.000000e+00> : vector<256xf32>
    %494 = vector.multi_reduction <add>, %489, %cst_173 [0] : vector<4x256xf32> to vector<256xf32>
    %495 = vector.shape_cast %494 : vector<256xf32> to vector<1x256xf32>
    %496 = arith.subf %446, %495 : vector<1x256xf32>
    %497 = vector.extract_strided_slice %462 {offsets = [80, 0], sizes = [8, 1], strides = [1, 1]} : vector<96x1xf32> to vector<8x1xf32>
    %498 = vector.extract_strided_slice %462 {offsets = [88, 0], sizes = [8, 1], strides = [1, 1]} : vector<96x1xf32> to vector<8x1xf32>
    %499 = vector.extract_strided_slice %497 {offsets = [0, 0], sizes = [4, 1], strides = [1, 1]} : vector<8x1xf32> to vector<4x1xf32>
    %500 = vector.broadcast %499 : vector<4x1xf32> to vector<4x256xf32>
    %501 = arith.mulf %454, %500 : vector<4x256xf32>
    %502 = vector.extract_strided_slice %498 {offsets = [0, 0], sizes = [4, 1], strides = [1, 1]} : vector<8x1xf32> to vector<4x1xf32>
    %503 = vector.broadcast %502 : vector<4x1xf32> to vector<4x256xf32>
    %504 = arith.addf %501, %503 : vector<4x256xf32>
    %505 = vector.extract_strided_slice %497 {offsets = [4, 0], sizes = [4, 1], strides = [1, 1]} : vector<8x1xf32> to vector<4x1xf32>
    %506 = vector.broadcast %505 : vector<4x1xf32> to vector<4x256xf32>
    %507 = arith.mulf %493, %506 : vector<4x256xf32>
    %508 = vector.extract_strided_slice %498 {offsets = [4, 0], sizes = [4, 1], strides = [1, 1]} : vector<8x1xf32> to vector<4x1xf32>
    %509 = vector.broadcast %508 : vector<4x1xf32> to vector<4x256xf32>
    %510 = arith.addf %507, %509 : vector<4x256xf32>
    %c0_174 = arith.constant 0 : index
    %511 = memref.load %arg6[%c0_174] : memref<2xf32, #tpu.memory_space<smem>>
    %512 = tpu.concatenate %504, %510 in 0 : vector<4x256xf32>, vector<4x256xf32> -> vector<8x256xf32>
    %513 = vector.broadcast %511 : f32 to vector<8x256xf32>
    %514 = arith.mulf %512, %513 : vector<8x256xf32>
    %c0_175 = arith.constant 0 : index
    %c0_176 = arith.constant 0 : index
    %515 = vector.load %arg7[%c0_175, %c0_176] : memref<8x256xf32, #tpu.memory_space<vmem>>, vector<8x256xf32>
    tpu.vector_store %arg7[%c0_175, %c0_176], %514 {strides = array<i32>} : memref<8x256xf32, #tpu.memory_space<vmem>>, vector<8x256xf32>,
    %c0_177 = arith.constant 0 : index
    %c0_178 = arith.constant 0 : index
    %516 = vector.load %arg8[%c0_177, %c0_178] : memref<1x256xf32, #tpu.memory_space<vmem>>, vector<1x256xf32>
    tpu.vector_store %arg8[%c0_177, %c0_178], %496 {strides = array<i32>} : memref<1x256xf32, #tpu.memory_space<vmem>>, vector<1x256xf32>,
    return
  }
  func.func @transform_0(%arg0: i32) -> (i32, i32) {
    %c0_i32 = arith.constant 0 : i32
    %c0_i32_0 = arith.constant 0 : i32
    return %c0_i32, %arg0 : i32, i32
  }
  func.func @transform_1(%arg0: i32) -> (i32, i32, i32) {
    %c0_i32 = arith.constant 0 : i32
    %c0_i32_0 = arith.constant 0 : i32
    %c0_i32_1 = arith.constant 0 : i32
    %c0_i32_2 = arith.constant 0 : i32
    return %c0_i32, %c0_i32_0, %c0_i32_1 : i32, i32, i32
  }
  func.func @transform_2(%arg0: i32) -> (i32, i32, i32) {
    %c0_i32 = arith.constant 0 : i32
    %c0_i32_0 = arith.constant 0 : i32
    %c0_i32_1 = arith.constant 0 : i32
    %c0_i32_2 = arith.constant 0 : i32
    return %c0_i32, %c0_i32_0, %c0_i32_1 : i32, i32, i32
  }
  func.func @transform_3(%arg0: i32) -> (i32, i32, i32) {
    %c0_i32 = arith.constant 0 : i32
    %c0_i32_0 = arith.constant 0 : i32
    %c0_i32_1 = arith.constant 0 : i32
    %c0_i32_2 = arith.constant 0 : i32
    return %c0_i32, %c0_i32_0, %c0_i32_1 : i32, i32, i32
  }
  func.func @transform_4(%arg0: i32) -> (i32, i32, i32) {
    %c0_i32 = arith.constant 0 : i32
    %c0_i32_0 = arith.constant 0 : i32
    %c0_i32_1 = arith.constant 0 : i32
    %c0_i32_2 = arith.constant 0 : i32
    return %c0_i32, %c0_i32_0, %c0_i32_1 : i32, i32, i32
  }
  func.func @transform_5(%arg0: i32) -> i32 {
    %c0_i32 = arith.constant 0 : i32
    %c0_i32_0 = arith.constant 0 : i32
    return %c0_i32 : i32
  }
  func.func @transform_6(%arg0: i32) -> (i32, i32) {
    %c0_i32 = arith.constant 0 : i32
    %c0_i32_0 = arith.constant 0 : i32
    return %c0_i32, %arg0 : i32, i32
  }
  func.func @transform_7(%arg0: i32) -> (i32, i32) {
    %c0_i32 = arith.constant 0 : i32
    %c0_i32_0 = arith.constant 0 : i32
    return %c0_i32, %arg0 : i32, i32
  }
}

</mosaic_0001>

<llo_original>
// kernel: tpu_custom_call.1
$region0: #{tpu_custom_call.1}
  #allocation0 [shape = 'u32[]', space=smem, size = 0x4, offset = 0x4, fixed_abs, tag = 'smem constant byte address 0x4 - core index']
  #allocation1 [shape = 'u32[144,128]{1,0:T(1,128)}', space=vmem, size = 0x12000, scoped, tag = 'internal scratch']
  %s0 = inlined_call_operand.vmem [shape: f32[8,1024], index: 0, kind: input, shape index: {}]
  %s1 = inlined_call_operand.vmem [shape: f32[10,32,4], index: 1, kind: input, shape index: {}]
  %s2 = inlined_call_operand.vmem [shape: f32[10,32,32], index: 2, kind: input, shape index: {}]
  %s3 = inlined_call_operand.vmem [shape: f32[10,8,32], index: 3, kind: input, shape index: {}]
  %s4 = inlined_call_operand.vmem [shape: f32[10,96,1], index: 4, kind: input, shape index: {}]
  %s5 = inlined_call_operand.vmem [shape: f32[2], index: 5, kind: input, shape index: {}]
  %s6 = inlined_call_operand.hbm [shape: f32[8,1024], index: 6, kind: output, shape index: {0}]
  %s7 = inlined_call_operand.hbm [shape: f32[1,1024], index: 7, kind: output, shape index: {1}]
  %8 = xla_tuple %s6, %s7
  %s9 = sld [smem:[#allocation0]]
  $region69: #{tpu_custom_call.1} parent=0
    _
  %s11 = ssub.s32 1, %s9
  %s12 = scalar_select 0, %s11, %s9
  $region1: #{tpu_custom_call.1} parent=0
    #allocation2 [shape = 'u8[512]{0}', space=smem, size = 0x200, scoped, tag = 'input window, operand 5, single buffered']
    #allocation3 [shape = 's32[2]{0}', space=sflag, size = 0x8, scoped, tag = 'scoped memory for tpu_custom_call.1']
    #allocation4 [shape = 's32[2]{0}', space=sflag, size = 0x8, scoped, tag = 'scoped memory for tpu_custom_call.1']
    #allocation5 [shape = 'u8[16384]{0}', space=vmem, size = 0x4000, scoped, tag = 'output window, operand 0']
    #allocation6 [shape = 'u8[2048]{0}', space=vmem, size = 0x800, scoped, tag = 'output window, operand 1']
    #allocation7 [shape = 's32[2]{0}', space=sflag, size = 0x8, scoped, tag = 'scoped memory for tpu_custom_call.1']
    %13 = vsyncpa [#allocation4], 0
    %14 = vsyncpa [#allocation3], 0
    %s15 = scalar_lea.sflag [#allocation3], 1
    %16 = vsyncpa %s15, 0
    %17 = vsyncpa [#allocation7], 0
    %s18 = scalar_lea.sflag [#allocation7], 1
    %19 = vsyncpa %s18, 0
    loop: start=0, step=1, limit=6
    $region2: #{tpu_custom_call.1} parent=1 // loop_pre_header
      _
    $region3: #{tpu_custom_call.1} parent=1 // loop_header
      %s21 = sphi 0, %s25
      %p22 = scmp.ge.s32.totalorder %s21, 6
      %s31 = sphi 0, %s33
      %s34 = sphi 0, %s31
      %s35 = sphi 0, %s34
      %s51 = sphi 0, %s35
      %s55 = sphi 0, %s55
      %s57 = sphi 0, %s55
      %s58 = sphi 0, %s57
      %s72 = sphi 0, %s58
      %s76 = sphi 0, %s76
      %s78 = sphi 0, %s76
      %s79 = sphi 0, %s78
      %s93 = sphi 0, %s79
      %s97 = sphi 0, %s97
      %s99 = sphi 0, %s97
      %s100 = sphi 0, %s99
      %s114 = sphi 0, %s100
      %s118 = sphi 0, %s118
      %s120 = sphi 0, %s118
      %s121 = sphi 0, %s120
      %s135 = sphi 0, %s121
      %s139 = sphi 0, %s139
      %s141 = sphi 0, %s139
      %s142 = sphi 0, %s141
      %s156 = sphi 0, %s142
      %s162 = sphi 0, %s164
      %s165 = sphi 0, %s162
      %s166 = sphi 0, %s165
      %s182 = sphi 0, %s166
      %s188 = sphi 0, %s190
      %s191 = sphi 0, %s188
      %s192 = sphi 0, %s191
      %s208 = sphi 0, %s192
    $region4: #{tpu_custom_call.1} parent=1 // loop_header_branch
      %24 = sbr.rel (%p22) target = $region8
    $region5: #{tpu_custom_call.1} parent=1 // loop_body
      %s26 = ssub.s32 %s21, 1
      %s27 = ssub.s32 %s21, 2
      %s28 = sadd.s32 %s21, 1
      %s29 = ssub.s32 %s21, %s28
      %p30 = scmp.eq.s32.totalorder %s29, 0
      %s32 = sadd.s32 %s31, 1
      %s33 = scalar_select %p30, %s31, %s32
      %p36 = pneg %p30
      %p37 = scmp.eq.s32.totalorder %s21, 3
      %p38 = por %p36, %p37
      %p39 = scmp.ne.s32.totalorder %s31, %s34
      %p40 = scmp.eq.s32.totalorder %s21, 0
      %p41 = por %p39, %p40
      %p42 = scmp.ne.s32.totalorder %s31, %s34
      %p43 = scmp.eq.s32.totalorder %s26, 3
      %p44 = por %p42, %p43
      %p45 = scmp.ne.s32.totalorder %s34, %s35
      %p46 = scmp.eq.s32.totalorder %s26, 0
      %p47 = por %p45, %p46
      %p48 = scmp.ne.s32.totalorder %s34, %s35
      %p49 = scmp.eq.s32.totalorder %s27, 3
      %p50 = por %p48, %p49
      %p52 = scmp.ne.s32.totalorder %s35, %s51
      %p53 = scmp.eq.s32.totalorder %s27, 0
      %p54 = por %p52, %p53
      %s56 = sadd.s32 %s55, 1
      %p59 = scmp.eq.s32.totalorder %s21, 3
      %p60 = scmp.ne.s32.totalorder %s55, %s57
      %p61 = scmp.eq.s32.totalorder %s21, 0
      %p62 = por %p60, %p61
      %p63 = scmp.ne.s32.totalorder %s55, %s57
      %p64 = scmp.eq.s32.totalorder %s26, 3
      %p65 = por %p63, %p64
      %p66 = scmp.ne.s32.totalorder %s57, %s58
      %p67 = scmp.eq.s32.totalorder %s26, 0
      %p68 = por %p66, %p67
      %p69 = scmp.ne.s32.totalorder %s57, %s58
      %p70 = scmp.eq.s32.totalorder %s27, 3
      %p71 = por %p69, %p70
      %p73 = scmp.ne.s32.totalorder %s58, %s72
      %p74 = scmp.eq.s32.totalorder %s27, 0
      %p75 = por %p73, %p74
      %s77 = sadd.s32 %s76, 1
      %p80 = scmp.eq.s32.totalorder %s21, 3
      %p81 = scmp.ne.s32.totalorder %s76, %s78
      %p82 = scmp.eq.s32.totalorder %s21, 0
      %p83 = por %p81, %p82
      %p84 = scmp.ne.s32.totalorder %s76, %s78
      %p85 = scmp.eq.s32.totalorder %s26, 3
      %p86 = por %p84, %p85
      %p87 = scmp.ne.s32.totalorder %s78, %s79
      %p88 = scmp.eq.s32.totalorder %s26, 0
      %p89 = por %p87, %p88
      %p90 = scmp.ne.s32.totalorder %s78, %s79
      %p91 = scmp.eq.s32.totalorder %s27, 3
      %p92 = por %p90, %p91
      %p94 = scmp.ne.s32.totalorder %s79, %s93
      %p95 = scmp.eq.s32.totalorder %s27, 0
      %p96 = por %p94, %p95
      %s98 = sadd.s32 %s97, 1
      %p101 = scmp.eq.s32.totalorder %s21, 3
      %p102 = scmp.ne.s32.totalorder %s97, %s99
      %p103 = scmp.eq.s32.totalorder %s21, 0
      %p104 = por %p102, %p103
      %p105 = scmp.ne.s32.totalorder %s97, %s99
      %p106 = scmp.eq.s32.totalorder %s26, 3
      %p107 = por %p105, %p106
      %p108 = scmp.ne.s32.totalorder %s99, %s100
      %p109 = scmp.eq.s32.totalorder %s26, 0
      %p110 = por %p108, %p109
      %p111 = scmp.ne.s32.totalorder %s99, %s100
      %p112 = scmp.eq.s32.totalorder %s27, 3
      %p113 = por %p111, %p112
      %p115 = scmp.ne.s32.totalorder %s100, %s114
      %p116 = scmp.eq.s32.totalorder %s27, 0
      %p117 = por %p115, %p116
      %s119 = sadd.s32 %s118, 1
      %p122 = scmp.eq.s32.totalorder %s21, 3
      %p123 = scmp.ne.s32.totalorder %s118, %s120
      %p124 = scmp.eq.s32.totalorder %s21, 0
      %p125 = por %p123, %p124
      %p126 = scmp.ne.s32.totalorder %s118, %s120
      %p127 = scmp.eq.s32.totalorder %s26, 3
      %p128 = por %p126, %p127
      %p129 = scmp.ne.s32.totalorder %s120, %s121
      %p130 = scmp.eq.s32.totalorder %s26, 0
      %p131 = por %p129, %p130
      %p132 = scmp.ne.s32.totalorder %s120, %s121
      %p133 = scmp.eq.s32.totalorder %s27, 3
      %p134 = por %p132, %p133
      %p136 = scmp.ne.s32.totalorder %s121, %s135
      %p137 = scmp.eq.s32.totalorder %s27, 0
      %p138 = por %p136, %p137
      %s140 = sadd.s32 %s139, 1
      %p143 = scmp.eq.s32.totalorder %s21, 3
      %p144 = scmp.ne.s32.totalorder %s139, %s141
      %p145 = scmp.eq.s32.totalorder %s21, 0
      %p146 = por %p144, %p145
      %p147 = scmp.ne.s32.totalorder %s139, %s141
      %p148 = scmp.eq.s32.totalorder %s26, 3
      %p149 = por %p147, %p148
      %p150 = scmp.ne.s32.totalorder %s141, %s142
      %p151 = scmp.eq.s32.totalorder %s26, 0
      %p152 = por %p150, %p151
      %p153 = scmp.ne.s32.totalorder %s141, %s142
      %p154 = scmp.eq.s32.totalorder %s27, 3
      %p155 = por %p153, %p154
      %p157 = scmp.ne.s32.totalorder %s142, %s156
      %p158 = scmp.eq.s32.totalorder %s27, 0
      %p159 = por %p157, %p158
      %s160 = ssub.s32 %s21, %s28
      %p161 = scmp.eq.s32.totalorder %s160, 0
      %s163 = sadd.s32 %s162, 1
      %s164 = scalar_select %p161, %s162, %s163
      %p167 = pneg %p161
      %p168 = scmp.eq.s32.totalorder %s21, 3
      %p169 = por %p167, %p168
      %p170 = scmp.ne.s32.totalorder %s162, %s165
      %p171 = scmp.eq.s32.totalorder %s21, 0
      %p172 = por %p170, %p171
      %p173 = scmp.ne.s32.totalorder %s162, %s165
      %p174 = scmp.eq.s32.totalorder %s26, 3
      %p175 = por %p173, %p174
      %p176 = scmp.ne.s32.totalorder %s165, %s166
      %p177 = scmp.eq.s32.totalorder %s26, 0
      %p178 = por %p176, %p177
      %p179 = scmp.ne.s32.totalorder %s165, %s166
      %p180 = scmp.eq.s32.totalorder %s27, 3
      %p181 = por %p179, %p180
      %p183 = scmp.ne.s32.totalorder %s166, %s182
      %p184 = scmp.eq.s32.totalorder %s27, 0
      %p185 = por %p183, %p184
      %s186 = ssub.s32 %s21, %s28
      %p187 = scmp.eq.s32.totalorder %s186, 0
      %s189 = sadd.s32 %s188, 1
      %s190 = scalar_select %p187, %s188, %s189
      %p193 = pneg %p187
      %p194 = scmp.eq.s32.totalorder %s21, 3
      %p195 = por %p193, %p194
      %p196 = scmp.ne.s32.totalorder %s188, %s191
      %p197 = scmp.eq.s32.totalorder %s21, 0
      %p198 = por %p196, %p197
      %p199 = scmp.ne.s32.totalorder %s188, %s191
      %p200 = scmp.eq.s32.totalorder %s26, 3
      %p201 = por %p199, %p200
      %p202 = scmp.ne.s32.totalorder %s191, %s192
      %p203 = scmp.eq.s32.totalorder %s26, 0
      %p204 = por %p202, %p203
      %p205 = scmp.ne.s32.totalorder %s191, %s192
      %p206 = scmp.eq.s32.totalorder %s27, 3
      %p207 = por %p205, %p206
      %p209 = scmp.ne.s32.totalorder %s192, %s208
      %p210 = scmp.eq.s32.totalorder %s27, 0
      %p211 = por %p209, %p210
      %p212 = scmp.le.s32.totalorder 1, %s21
      %p213 = scmp.lt.s32.totalorder %s21, 5
      %p214 = pnand %p212, %p213
      %p215 = pneg %p214
      // Predicated region
      $region9: #{tpu_custom_call.1} parent=5 // pred_check
        _
      $region10: #{tpu_custom_call.1} parent=5 // pred_check_branch
        %217 = sbr.rel (%p214) target = $region12
      $region11: #{tpu_custom_call.1} parent=5 // pred_region
        %s218 = ssub.s32 %s21, 1
        // Predicated region
        $region13: #{tpu_custom_call.1} parent=11 // pred_check
          %p219 = pneg %p68
        $region14: #{tpu_custom_call.1} parent=11 // pred_check_branch
          %221 = sbr.rel (%p219) target = $region16
        $region15: #{tpu_custom_call.1} parent=11 // pred_region
          _
        $region16: #{tpu_custom_call.1} parent=11 // pred_fallthru
          _
        // Predicated region
        $region17: #{tpu_custom_call.1} parent=11 // pred_check
          %p222 = pneg %p89
        $region18: #{tpu_custom_call.1} parent=11 // pred_check_branch
          %224 = sbr.rel (%p222) target = $region20
        $region19: #{tpu_custom_call.1} parent=11 // pred_region
          _
        $region20: #{tpu_custom_call.1} parent=11 // pred_fallthru
          _
        // Predicated region
        $region21: #{tpu_custom_call.1} parent=11 // pred_check
          %p225 = pneg %p110
        $region22: #{tpu_custom_call.1} parent=11 // pred_check_branch
          %227 = sbr.rel (%p225) target = $region24
        $region23: #{tpu_custom_call.1} parent=11 // pred_region
          _
        $region24: #{tpu_custom_call.1} parent=11 // pred_fallthru
          _
        // Predicated region
        $region25: #{tpu_custom_call.1} parent=11 // pred_check
          %p228 = pneg %p131
        $region26: #{tpu_custom_call.1} parent=11 // pred_check_branch
          %230 = sbr.rel (%p228) target = $region28
        $region27: #{tpu_custom_call.1} parent=11 // pred_region
          _
        $region28: #{tpu_custom_call.1} parent=11 // pred_fallthru
          _
        // Predicated region
        $region29: #{tpu_custom_call.1} parent=11 // pred_check
          %p231 = pneg %p152
        $region30: #{tpu_custom_call.1} parent=11 // pred_check_branch
          %233 = sbr.rel (%p231) target = $region32
        $region31: #{tpu_custom_call.1} parent=11 // pred_region
          %s235 = ssub.s32 16, 16
          %236 = vsyncadd [#allocation4], %s235
          %s238 = sshll.u32 %s5, 4
          %s239 = int_to_ptr.vmem [resolvable:$true] %s238
          %241 = dma.vmem_to_smem %s239, 16, [#allocation2], [#allocation4]
        $region32: #{tpu_custom_call.1} parent=11 // pred_fallthru
          _
      $region12: #{tpu_custom_call.1} parent=5 // pred_fallthru
        _
      %p242 = scmp.lt.s32.totalorder %s21, 4
      // Predicated region
      $region33: #{tpu_custom_call.1} parent=5 // pred_check
        %p243 = pneg %p242
      $region34: #{tpu_custom_call.1} parent=5 // pred_check_branch
        %245 = sbr.rel (%p243) target = $region36
      $region35: #{tpu_custom_call.1} parent=5 // pred_region
        // Predicated region
        $region37: #{tpu_custom_call.1} parent=35 // pred_check
          %p246 = pneg %p41
        $region38: #{tpu_custom_call.1} parent=35 // pred_check_branch
          %248 = sbr.rel (%p246) target = $region40
        $region39: #{tpu_custom_call.1} parent=35 // pred_region
          %s249 = smul.u32 2, %s21
          %p250 = scmp.lt.s32.totalorder %s249, 7
          %s251 = scalar_select %p250, %s249, 7
          %s252 = smul.addr %s251, 8
          %s253 = scalar_lea.vmem %s0, %s252
          %s254 = smul.u32 2, %s21
        $region40: #{tpu_custom_call.1} parent=35 // pred_fallthru
          _
      $region36: #{tpu_custom_call.1} parent=5 // pred_fallthru
        _
      %p255 = scmp.le.s32.totalorder 1, %s21
      %p256 = scmp.lt.s32.totalorder %s21, 5
      %p257 = pnand %p255, %p256
      %p258 = pneg %p257
      // Predicated region
      $region41: #{tpu_custom_call.1} parent=5 // pred_check
        _
      $region42: #{tpu_custom_call.1} parent=5 // pred_check_branch
        %260 = sbr.rel (%p257) target = $region44
      $region43: #{tpu_custom_call.1} parent=5 // pred_region
        %s261 = ssub.s32 %s21, 1
        // Predicated region
        $region45: #{tpu_custom_call.1} parent=43 // pred_check
          %p262 = pneg %p152
        $region46: #{tpu_custom_call.1} parent=43 // pred_check_branch
          %264 = sbr.rel (%p262) target = $region48
        $region47: #{tpu_custom_call.1} parent=43 // pred_region
          %265 = dma.done [#allocation4], 16
        $region48: #{tpu_custom_call.1} parent=43 // pred_fallthru
          _
        %266 = sfence
        %s267 = smul.u32 2, %s26
        %p268 = scmp.lt.s32.totalorder %s267, 7
        %s269 = scalar_select %p268, %s267, 7
        %s270 = smul.addr %s269, 8
        %s271 = scalar_lea.vmem %s0, %s270
        %p272 = pneg %p47
        %p273 = pneg %p44
        %p274 = pneg %p68
        %p275 = pneg %p65
        %p276 = pneg %p89
        %p277 = pneg %p86
        %p278 = pneg %p110
        %p279 = pneg %p107
        %p280 = pneg %p131
        %p281 = pneg %p128
        %p282 = pneg %p152
        %p283 = pneg %p149
        %p284 = pneg %p178
        %p285 = pneg %p175
        %s286 = sand.u32 %s165, 1
        %s287 = scalar_lea.sflag [#allocation3], %s286
        %s288 = sand.u32 %s165, 1
        %s289 = smul.addr %s288, 16
        %s290 = scalar_lea.vmem [#allocation5], %s289
        %p291 = pneg %p204
        %p292 = pneg %p201
        %s293 = sand.u32 %s191, 1
        %s294 = scalar_lea.sflag [#allocation7], %s293
        %s295 = sand.u32 %s191, 1
        %s296 = smul.addr %s295, 2
        %s297 = scalar_lea.vmem [#allocation6], %s296
        %s298 = smul.u32 2, %s26
        %p299 = scmp.lt.s32.totalorder %s298, 7
        %s300 = scalar_select %p299, %s298, 7
        %s301 = smul.addr %s300, 8
        %s302 = scalar_lea.vmem %s0, %s301
        %s303 = smul.u32 2, %s26
        %s304 = smul.u32 2, %s26
        %s305 = smul.u32 2, %s26
        %v306 = vld [vmem:[%s302] sm:$0xff]
        %v307 = vld [vmem:[%s302 + $0x8] sm:$0xff]
        %s308 = sld [smem:[#allocation2 + $0x1]]
        %v309 = vmul.f32 %v306, %v306
        %v310 = vmul.f32 %v307, %v307
        %v311 = vrot.slane %v309, 4
        %v312 = vadd.f32 %v309, %v311
        %v313 = vrot.slane %v312, 2
        %v314 = vadd.f32 %v312, %v313
        %v315 = vrot.slane %v314, 1
        %v316 = vadd.f32 %v314, %v315
        %v317 = vrot.slane %v310, 4
        %v318 = vadd.f32 %v310, %v317
        %v319 = vrot.slane %v318, 2
        %v320 = vadd.f32 %v318, %v319
        %v321 = vrot.slane %v320, 1
        %v322 = vadd.f32 %v320, %v321
        %v323 = vmul.f32 %v316, 0.5
        %v324 = vmul.f32 %v322, 0.5
        %v325 = vstv %s308
        %v326 = vsub.f32 %v325, %v323
        %v327 = vsub.f32 %v325, %v324
        %v328 = vld [vmem:[%s4] sm:$0xff]
        %v329 = vld [vmem:[%s4 + $0x8] sm:$0xff]
        %v330 = vld [vmem:[%s4 + $0x10] sm:$0xff]
        %v331 = vld [vmem:[%s4 + $0x18] sm:$0xff]
        %v332 = vld [vmem:[%s4 + $0x20] sm:$0xff]
        %v333 = vld [vmem:[%s4 + $0x28] sm:$0xff]
        %v334 = vld [vmem:[%s4 + $0x30] sm:$0xff]
        %v335 = vld [vmem:[%s4 + $0x38] sm:$0xff]
        %v336 = vld [vmem:[%s4 + $0x40] sm:$0xff]
        %v337 = vld [vmem:[%s4 + $0x48] sm:$0xff]
        %v338 = vld [vmem:[%s4 + $0x50] sm:$0xff]
        %v339 = vld [vmem:[%s4 + $0x58] sm:$0xff]
        %v340 = vld [vmem:[%s1] sm:$0xff]
        %v341 = vld [vmem:[%s1 + $0x8] sm:$0xff]
        %v342 = vld [vmem:[%s1 + $0x10] sm:$0xff]
        %v343 = vld [vmem:[%s1 + $0x18] sm:$0xff]
        %v344 = vld [vmem:[%s2] sm:$0xff]
        %v345 = vld [vmem:[%s2 + $0x8] sm:$0xff]
        %v346 = vld [vmem:[%s2 + $0x10] sm:$0xff]
        %v347 = vld [vmem:[%s2 + $0x18] sm:$0xff]
        %v348 = vld [vmem:[%s3] sm:$0xff]
        %350 = vset.pattern.permute.xlu0 0
        %351 = vperm.xlu0 %350, %v328
        %v352 = vpop.permute.xlu0 %351
        %355 = vset.pattern.permute.xlu0 0
        %356 = vperm.xlu0 %355, %v329
        %v357 = vpop.permute.xlu0 %356
        %360 = vset.pattern.permute.xlu0 0
        %361 = vperm.xlu0 %360, %v330
        %v362 = vpop.permute.xlu0 %361
        %365 = vset.pattern.permute.xlu0 0
        %366 = vperm.xlu0 %365, %v331
        %v367 = vpop.permute.xlu0 %366
        %v371 = vrot.slane %v306, 4
        %v372 = vrot.slane %v307, 4
        %vm373 = vcmask 31744
        %v375 = vsel %vm373, %v340, 0
        %v378 = vsel %vm373, %v341, 0
        %v381 = vsel %vm373, %v342, 0
        %v384 = vsel %vm373, %v343, 0
        %vm386 = vcmask 1043456
        %v387 = vsel %vm386, %v371, 0
        %v389 = vsel %vm386, %v372, 0
        %391 = vmatprep.subr.mxu0 %v389
        %392 = vmatpush1.msra.mxu0 %v387
        %393 = vmatprep.subr.mxu0 0.0
        %394 = vmatpush1.msra.mxu0 0.0
        %395 = vmatprep.subr.mxu0 0.0
        %396 = vmatpush1.msra.mxu0 0.0
        %397 = vmatprep.subr.mxu0 0.0
        %398 = vmatpush1.msra.mxu0 0.0
        %399 = vmatprep.subr.mxu0 0.0
        %400 = vmatpush1.msra.mxu0 0.0
        %401 = vmatprep.subr.mxu0 0.0
        %402 = vmatpush1.msra.mxu0 0.0
        %403 = vmatprep.subr.mxu0 0.0
        %404 = vmatpush1.msra.mxu0 0.0
        %405 = vmatprep.subr.mxu0 0.0
        %406 = vmatpush1.msra.mxu0 0.0
        %407 = vmatprep.subr.mxu0 0.0
        %408 = vmatpush1.msra.mxu0 0.0
        %409 = vmatprep.subr.mxu0 0.0
        %410 = vmatpush1.msra.mxu0 0.0
        %411 = vmatprep.subr.mxu0 0.0
        %412 = vmatpush1.msra.mxu0 0.0
        %413 = vmatprep.subr.mxu0 0.0
        %414 = vmatpush1.msra.mxu0 0.0
        %415 = vmatprep.subr.mxu0 0.0
        %416 = vmatpush1.msra.mxu0 0.0
        %417 = vmatprep.subr.mxu0 0.0
        %418 = vmatpush1.msra.mxu0 0.0
        %419 = vmatprep.subr.mxu0 0.0
        %420 = vmatpush1.msra.mxu0 0.0
        %421 = vmatprep.subr.mxu0 0.0
        %422 = vmatpush1.msra.mxu0 0.0
        %423 = vmatprep.subr.mxu0 0.0
        %424 = vmatpush1.msra.mxu0 0.0
        %425 = vmatprep.subr.mxu0 0.0
        %426 = vmatpush1.msra.mxu0 0.0
        %427 = vmatprep.subr.mxu0 0.0
        %428 = vmatpush1.msra.mxu0 0.0
        %429 = vmatprep.subr.mxu0 0.0
        %430 = vmatpush1.msra.mxu0 0.0
        %431 = vmatprep.subr.mxu0 0.0
        %432 = vmatpush1.msra.mxu0 0.0
        %433 = vmatprep.subr.mxu0 0.0
        %434 = vmatpush1.msra.mxu0 0.0
        %435 = vmatprep.subr.mxu0 0.0
        %436 = vmatpush1.msra.mxu0 0.0
        %437 = vmatprep.subr.mxu0 0.0
        %438 = vmatpush1.msra.mxu0 0.0
        %439 = vmatprep.subr.mxu0 0.0
        %440 = vmatpush1.msra.mxu0 0.0
        %441 = vmatprep.subr.mxu0 0.0
        %442 = vmatpush1.msra.mxu0 0.0
        %443 = vmatprep.subr.mxu0 0.0
        %444 = vmatpush1.msra.mxu0 0.0
        %445 = vmatprep.subr.mxu0 0.0
        %446 = vmatpush1.msra.mxu0 0.0
        %447 = vmatprep.subr.mxu0 0.0
        %448 = vmatpush1.msra.mxu0 0.0
        %449 = vmatprep.subr.mxu0 0.0
        %450 = vmatpush1.msra.mxu0 0.0
        %451 = vmatprep.subr.mxu0 0.0
        %452 = vmatpush1.msra.mxu0 0.0
        %453 = vmatprep.subr.mxu0 0.0
        %454 = vmatpush1.msra.mxu0 0.0
        %455 = vmatprep.mubr.f32.mxu0 0.0
        %456 = vmatmul.mubr.f32.gmra.mrb[0].mxu0 %v375
        %v457 = vpop.f32.mrb[0].mxu0
        %v458 = vadd.f32 %v352, %v457
        %v459 = vpop.f32.mrb[0].mxu0
        %v460 = vadd.f32 %v352, %v459
        %461 = vmatprep.mubr.f32.mxu0 0.0
        %462 = vmatmul.mubr.f32.gmra.mrb[0].mxu0 %v378
        %v463 = vpop.f32.mrb[0].mxu0
        %v464 = vadd.f32 %v357, %v463
        %v465 = vpop.f32.mrb[0].mxu0
        %v466 = vadd.f32 %v357, %v465
        %467 = vmatprep.mubr.f32.mxu0 0.0
        %468 = vmatmul.mubr.f32.gmra.mrb[0].mxu0 %v381
        %v469 = vpop.f32.mrb[0].mxu0
        %v470 = vadd.f32 %v362, %v469
        %v471 = vpop.f32.mrb[0].mxu0
        %v472 = vadd.f32 %v362, %v471
        %473 = vmatprep.mubr.f32.mxu0 0.0
        %474 = vmatmul.mubr.f32.gmra.mrb[0].mxu0 %v384
        %v475 = vpop.f32.mrb[0].mxu0
        %v476 = vadd.f32 %v367, %v475
        %v477 = vpop.f32.mrb[0].mxu0
        %v478 = vadd.f32 %v367, %v477
        %479 = vdwg.mxu0
        %v480 = vmax.f32 %v458, 0.0
        %v481 = vmax.f32 %v460, 0.0
        %v482 = vmax.f32 %v464, 0.0
        %v483 = vmax.f32 %v466, 0.0
        %v484 = vmax.f32 %v470, 0.0
        %v485 = vmax.f32 %v472, 0.0
        %v486 = vmax.f32 %v476, 0.0
        %v487 = vmax.f32 %v478, 0.0
        %489 = vset.pattern.permute.xlu0 0
        %490 = vperm.xlu0 %489, %v332
        %v491 = vpop.permute.xlu0 %490
        %494 = vset.pattern.permute.xlu0 0
        %495 = vperm.xlu0 %494, %v333
        %v496 = vpop.permute.xlu0 %495
        %499 = vset.pattern.permute.xlu0 0
        %500 = vperm.xlu0 %499, %v334
        %v501 = vpop.permute.xlu0 %500
        %504 = vset.pattern.permute.xlu0 0
        %505 = vperm.xlu0 %504, %v335
        %v506 = vpop.permute.xlu0 %505
        %vm508 = vcmask 261120
        %v510 = vsel %vm508, %v344, 0
        %v513 = vsel %vm508, %v345, 0
        %v516 = vsel %vm508, %v346, 0
        %v519 = vsel %vm508, %v347, 0
        %521 = vmatprep.subr.mxu0 %v481
        %522 = vmatpush1.msra.mxu0 %v480
        %523 = vmatprep.subr.mxu0 %v483
        %524 = vmatpush1.msra.mxu0 %v482
        %525 = vmatprep.subr.mxu0 %v485
        %526 = vmatpush1.msra.mxu0 %v484
        %527 = vmatprep.subr.mxu0 %v487
        %528 = vmatpush1.msra.mxu0 %v486
        %529 = vmatprep.subr.mxu0 0.0
        %530 = vmatpush1.msra.mxu0 0.0
        %531 = vmatprep.subr.mxu0 0.0
        %532 = vmatpush1.msra.mxu0 0.0
        %533 = vmatprep.subr.mxu0 0.0
        %534 = vmatpush1.msra.mxu0 0.0
        %535 = vmatprep.subr.mxu0 0.0
        %536 = vmatpush1.msra.mxu0 0.0
        %537 = vmatprep.subr.mxu0 0.0
        %538 = vmatpush1.msra.mxu0 0.0
        %539 = vmatprep.subr.mxu0 0.0
        %540 = vmatpush1.msra.mxu0 0.0
        %541 = vmatprep.subr.mxu0 0.0
        %542 = vmatpush1.msra.mxu0 0.0
        %543 = vmatprep.subr.mxu0 0.0
        %544 = vmatpush1.msra.mxu0 0.0
        %545 = vmatprep.subr.mxu0 0.0
        %546 = vmatpush1.msra.mxu0 0.0
        %547 = vmatprep.subr.mxu0 0.0
        %548 = vmatpush1.msra.mxu0 0.0
        %549 = vmatprep.subr.mxu0 0.0
        %550 = vmatpush1.msra.mxu0 0.0
        %551 = vmatprep.subr.mxu0 0.0
        %552 = vmatpush1.msra.mxu0 0.0
        %553 = vmatprep.subr.mxu0 0.0
        %554 = vmatpush1.msra.mxu0 0.0
        %555 = vmatprep.subr.mxu0 0.0
        %556 = vmatpush1.msra.mxu0 0.0
        %557 = vmatprep.subr.mxu0 0.0
        %558 = vmatpush1.msra.mxu0 0.0
        %559 = vmatprep.subr.mxu0 0.0
        %560 = vmatpush1.msra.mxu0 0.0
        %561 = vmatprep.subr.mxu0 0.0
        %562 = vmatpush1.msra.mxu0 0.0
        %563 = vmatprep.subr.mxu0 0.0
        %564 = vmatpush1.msra.mxu0 0.0
        %565 = vmatprep.subr.mxu0 0.0
        %566 = vmatpush1.msra.mxu0 0.0
        %567 = vmatprep.subr.mxu0 0.0
        %568 = vmatpush1.msra.mxu0 0.0
        %569 = vmatprep.subr.mxu0 0.0
        %570 = vmatpush1.msra.mxu0 0.0
        %571 = vmatprep.subr.mxu0 0.0
        %572 = vmatpush1.msra.mxu0 0.0
        %573 = vmatprep.subr.mxu0 0.0
        %574 = vmatpush1.msra.mxu0 0.0
        %575 = vmatprep.subr.mxu0 0.0
        %576 = vmatpush1.msra.mxu0 0.0
        %577 = vmatprep.subr.mxu0 0.0
        %578 = vmatpush1.msra.mxu0 0.0
        %579 = vmatprep.subr.mxu0 0.0
        %580 = vmatpush1.msra.mxu0 0.0
        %581 = vmatprep.subr.mxu0 0.0
        %582 = vmatpush1.msra.mxu0 0.0
        %583 = vmatprep.subr.mxu0 0.0
        %584 = vmatpush1.msra.mxu0 0.0
        %585 = vmatprep.mubr.f32.mxu0 0.0
        %586 = vmatmul.mubr.f32.gmra.mrb[0].mxu0 %v510
        %v587 = vpop.f32.mrb[0].mxu0
        %v588 = vadd.f32 %v491, %v587
        %v589 = vpop.f32.mrb[0].mxu0
        %v590 = vadd.f32 %v491, %v589
        %591 = vmatprep.mubr.f32.mxu0 0.0
        %592 = vmatmul.mubr.f32.gmra.mrb[0].mxu0 %v513
        %v593 = vpop.f32.mrb[0].mxu0
        %v594 = vadd.f32 %v496, %v593
        %v595 = vpop.f32.mrb[0].mxu0
        %v596 = vadd.f32 %v496, %v595
        %597 = vmatprep.mubr.f32.mxu0 0.0
        %598 = vmatmul.mubr.f32.gmra.mrb[0].mxu0 %v516
        %v599 = vpop.f32.mrb[0].mxu0
        %v600 = vadd.f32 %v501, %v599
        %v601 = vpop.f32.mrb[0].mxu0
        %v602 = vadd.f32 %v501, %v601
        %603 = vmatprep.mubr.f32.mxu0 0.0
        %604 = vmatmul.mubr.f32.gmra.mrb[0].mxu0 %v519
        %v605 = vpop.f32.mrb[0].mxu0
        %v606 = vadd.f32 %v506, %v605
        %v607 = vpop.f32.mrb[0].mxu0
        %v608 = vadd.f32 %v506, %v607
        %609 = vdwg.mxu0
        %v610 = vmax.f32 %v588, 0.0
        %v611 = vmax.f32 %v590, 0.0
        %v612 = vmax.f32 %v594, 0.0
        %v613 = vmax.f32 %v596, 0.0
        %v614 = vmax.f32 %v600, 0.0
        %v615 = vmax.f32 %v602, 0.0
        %v616 = vmax.f32 %v606, 0.0
        %v617 = vmax.f32 %v608, 0.0
        %619 = vset.pattern.permute.xlu0 0
        %620 = vperm.xlu0 %619, %v336
        %v621 = vpop.permute.xlu0 %620
        %v624 = vsel %vm508, %v348, 0
        %626 = vmatprep.subr.mxu0 %v611
        %627 = vmatpush1.msra.mxu0 %v610
        %628 = vmatprep.subr.mxu0 %v613
        %629 = vmatpush1.msra.mxu0 %v612
        %630 = vmatprep.subr.mxu0 %v615
        %631 = vmatpush1.msra.mxu0 %v614
        %632 = vmatprep.subr.mxu0 %v617
        %633 = vmatpush1.msra.mxu0 %v616
        %634 = vmatprep.subr.mxu0 0.0
        %635 = vmatpush1.msra.mxu0 0.0
        %636 = vmatprep.subr.mxu0 0.0
        %637 = vmatpush1.msra.mxu0 0.0
        %638 = vmatprep.subr.mxu0 0.0
        %639 = vmatpush1.msra.mxu0 0.0
        %640 = vmatprep.subr.mxu0 0.0
        %641 = vmatpush1.msra.mxu0 0.0
        %642 = vmatprep.subr.mxu0 0.0
        %643 = vmatpush1.msra.mxu0 0.0
        %644 = vmatprep.subr.mxu0 0.0
        %645 = vmatpush1.msra.mxu0 0.0
        %646 = vmatprep.subr.mxu0 0.0
        %647 = vmatpush1.msra.mxu0 0.0
        %648 = vmatprep.subr.mxu0 0.0
        %649 = vmatpush1.msra.mxu0 0.0
        %650 = vmatprep.subr.mxu0 0.0
        %651 = vmatpush1.msra.mxu0 0.0
        %652 = vmatprep.subr.mxu0 0.0
        %653 = vmatpush1.msra.mxu0 0.0
        %654 = vmatprep.subr.mxu0 0.0
        %655 = vmatpush1.msra.mxu0 0.0
        %656 = vmatprep.subr.mxu0 0.0
        %657 = vmatpush1.msra.mxu0 0.0
        %658 = vmatprep.subr.mxu0 0.0
        %659 = vmatpush1.msra.mxu0 0.0
        %660 = vmatprep.subr.mxu0 0.0
        %661 = vmatpush1.msra.mxu0 0.0
        %662 = vmatprep.subr.mxu0 0.0
        %663 = vmatpush1.msra.mxu0 0.0
        %664 = vmatprep.subr.mxu0 0.0
        %665 = vmatpush1.msra.mxu0 0.0
        %666 = vmatprep.subr.mxu0 0.0
        %667 = vmatpush1.msra.mxu0 0.0
        %668 = vmatprep.subr.mxu0 0.0
        %669 = vmatpush1.msra.mxu0 0.0
        %670 = vmatprep.subr.mxu0 0.0
        %671 = vmatpush1.msra.mxu0 0.0
        %672 = vmatprep.subr.mxu0 0.0
        %673 = vmatpush1.msra.mxu0 0.0
        %674 = vmatprep.subr.mxu0 0.0
        %675 = vmatpush1.msra.mxu0 0.0
        %676 = vmatprep.subr.mxu0 0.0
        %677 = vmatpush1.msra.mxu0 0.0
        %678 = vmatprep.subr.mxu0 0.0
        %679 = vmatpush1.msra.mxu0 0.0
        %680 = vmatprep.subr.mxu0 0.0
        %681 = vmatpush1.msra.mxu0 0.0
        %682 = vmatprep.subr.mxu0 0.0
        %683 = vmatpush1.msra.mxu0 0.0
        %684 = vmatprep.subr.mxu0 0.0
        %685 = vmatpush1.msra.mxu0 0.0
        %686 = vmatprep.subr.mxu0 0.0
        %687 = vmatpush1.msra.mxu0 0.0
        %688 = vmatprep.subr.mxu0 0.0
        %689 = vmatpush1.msra.mxu0 0.0
        %690 = vmatprep.mubr.f32.mxu0 0.0
        %691 = vmatmul.mubr.f32.gmra.mrb[0].mxu0 %v624
        %v692 = vpop.f32.mrb[0].mxu0
        %v693 = vadd.f32 %v621, %v692
        %v694 = vpop.f32.mrb[0].mxu0
        %v695 = vadd.f32 %v621, %v694
        %696 = vdwg.mxu0
        %v697 = vtanh.pop %v693
        %v698 = vtanh.pop %v695
        %700 = vset.pattern.permute.xlu0 0
        %701 = vperm.xlu0 %700, %v337
        %v702 = vpop.permute.xlu0 %701
        %v704 = vmul.f32 %v702, %v697
        %v705 = vmul.f32 %v702, %v698
        %v706 = vmul.f32 %v704, 1.442695
        %v707 = vpow.pop %v706
        %v708 = vmul.f32 %v705, 1.442695
        %v709 = vpow.pop %v708
        %v710 = vmul.f32 %v306, %v707
        %v711 = vmul.f32 %v307, %v709
        %v714 = vrot.slane %v693, 4
        %v715 = vrot.slane %v695, 4
        %v718 = vadd.f32 %v710, %v714
        %v719 = vadd.f32 %v711, %v715
        %v720 = vsel %vm386, %v704, 0.0
        %v721 = vrot.slane %v720, 4
        %v722 = vadd.f32 %v720, %v721
        %v723 = vrot.slane %v722, 2
        %v724 = vadd.f32 %v722, %v723
        %v725 = vrot.slane %v724, 1
        %v726 = vadd.f32 %v724, %v725
        %v727 = vsel %vm386, %v705, 0.0
        %v728 = vrot.slane %v727, 4
        %v729 = vadd.f32 %v727, %v728
        %v730 = vrot.slane %v729, 2
        %v731 = vadd.f32 %v729, %v730
        %v732 = vrot.slane %v731, 1
        %v733 = vadd.f32 %v731, %v732
        %v734 = vsub.f32 %v326, %v726
        %v735 = vsub.f32 %v327, %v733
        %737 = vset.pattern.permute.xlu0 0
        %738 = vperm.xlu0 %737, %v338
        %v739 = vpop.permute.xlu0 %738
        %v741 = vmul.f32 %v718, %v739
        %v742 = vmul.f32 %v719, %v739
        %744 = vset.pattern.permute.xlu0 0
        %745 = vperm.xlu0 %744, %v339
        %v746 = vpop.permute.xlu0 %745
        %v748 = vadd.f32 %v741, %v746
        %v749 = vadd.f32 %v742, %v746
        %v750 = vmul.f32 %v306, %v739
        %v751 = vmul.f32 %v307, %v739
        %v752 = vadd.f32 %v750, %v746
        %v753 = vadd.f32 %v751, %v746
        %s754 = scalar_lea.vmem %s4, 96
        %v755 = vld [vmem:[%s754] sm:$0xff]
        %v756 = vld [vmem:[%s754 + $0x8] sm:$0xff]
        %v757 = vld [vmem:[%s754 + $0x10] sm:$0xff]
        %v758 = vld [vmem:[%s754 + $0x18] sm:$0xff]
        %v759 = vld [vmem:[%s754 + $0x20] sm:$0xff]
        %v760 = vld [vmem:[%s754 + $0x28] sm:$0xff]
        %v761 = vld [vmem:[%s754 + $0x30] sm:$0xff]
        %v762 = vld [vmem:[%s754 + $0x38] sm:$0xff]
        %v763 = vld [vmem:[%s754 + $0x40] sm:$0xff]
        %v764 = vld [vmem:[%s754 + $0x48] sm:$0xff]
        %v765 = vld [vmem:[%s754 + $0x50] sm:$0xff]
        %v766 = vld [vmem:[%s754 + $0x58] sm:$0xff]
        %s767 = scalar_lea.vmem %s1, 32
        %v768 = vld [vmem:[%s767] sm:$0xff]
        %v769 = vld [vmem:[%s767 + $0x8] sm:$0xff]
        %v770 = vld [vmem:[%s767 + $0x10] sm:$0xff]
        %v771 = vld [vmem:[%s767 + $0x18] sm:$0xff]
        %s772 = scalar_lea.vmem %s2, 32
        %v773 = vld [vmem:[%s772] sm:$0xff]
        %v774 = vld [vmem:[%s772 + $0x8] sm:$0xff]
        %v775 = vld [vmem:[%s772 + $0x10] sm:$0xff]
        %v776 = vld [vmem:[%s772 + $0x18] sm:$0xff]
        %s777 = scalar_lea.vmem %s3, 8
        %v778 = vld [vmem:[%s777] sm:$0xff]
        %780 = vset.pattern.permute.xlu0 0
        %781 = vperm.xlu0 %780, %v755
        %v782 = vpop.permute.xlu0 %781
        %785 = vset.pattern.permute.xlu0 0
        %786 = vperm.xlu0 %785, %v756
        %v787 = vpop.permute.xlu0 %786
        %790 = vset.pattern.permute.xlu0 0
        %791 = vperm.xlu0 %790, %v757
        %v792 = vpop.permute.xlu0 %791
        %795 = vset.pattern.permute.xlu0 0
        %796 = vperm.xlu0 %795, %v758
        %v797 = vpop.permute.xlu0 %796
        %v800 = vsel %vm373, %v768, 0
        %v803 = vsel %vm373, %v769, 0
        %v806 = vsel %vm373, %v770, 0
        %v809 = vsel %vm373, %v771, 0
        %v812 = vsel %vm386, %v748, 0
        %v815 = vsel %vm386, %v749, 0
        %817 = vmatprep.subr.mxu0 %v815
        %818 = vmatpush1.msra.mxu0 %v812
        %819 = vmatprep.subr.mxu0 0.0
        %820 = vmatpush1.msra.mxu0 0.0
        %821 = vmatprep.subr.mxu0 0.0
        %822 = vmatpush1.msra.mxu0 0.0
        %823 = vmatprep.subr.mxu0 0.0
        %824 = vmatpush1.msra.mxu0 0.0
        %825 = vmatprep.subr.mxu0 0.0
        %826 = vmatpush1.msra.mxu0 0.0
        %827 = vmatprep.subr.mxu0 0.0
        %828 = vmatpush1.msra.mxu0 0.0
        %829 = vmatprep.subr.mxu0 0.0
        %830 = vmatpush1.msra.mxu0 0.0
        %831 = vmatprep.subr.mxu0 0.0
        %832 = vmatpush1.msra.mxu0 0.0
        %833 = vmatprep.subr.mxu0 0.0
        %834 = vmatpush1.msra.mxu0 0.0
        %835 = vmatprep.subr.mxu0 0.0
        %836 = vmatpush1.msra.mxu0 0.0
        %837 = vmatprep.subr.mxu0 0.0
        %838 = vmatpush1.msra.mxu0 0.0
        %839 = vmatprep.subr.mxu0 0.0
        %840 = vmatpush1.msra.mxu0 0.0
        %841 = vmatprep.subr.mxu0 0.0
        %842 = vmatpush1.msra.mxu0 0.0
        %843 = vmatprep.subr.mxu0 0.0
        %844 = vmatpush1.msra.mxu0 0.0
        %845 = vmatprep.subr.mxu0 0.0
        %846 = vmatpush1.msra.mxu0 0.0
        %847 = vmatprep.subr.mxu0 0.0
        %848 = vmatpush1.msra.mxu0 0.0
        %849 = vmatprep.subr.mxu0 0.0
        %850 = vmatpush1.msra.mxu0 0.0
        %851 = vmatprep.subr.mxu0 0.0
        %852 = vmatpush1.msra.mxu0 0.0
        %853 = vmatprep.subr.mxu0 0.0
        %854 = vmatpush1.msra.mxu0 0.0
        %855 = vmatprep.subr.mxu0 0.0
        %856 = vmatpush1.msra.mxu0 0.0
        %857 = vmatprep.subr.mxu0 0.0
        %858 = vmatpush1.msra.mxu0 0.0
        %859 = vmatprep.subr.mxu0 0.0
        %860 = vmatpush1.msra.mxu0 0.0
        %861 = vmatprep.subr.mxu0 0.0
        %862 = vmatpush1.msra.mxu0 0.0
        %863 = vmatprep.subr.mxu0 0.0
        %864 = vmatpush1.msra.mxu0 0.0
        %865 = vmatprep.subr.mxu0 0.0
        %866 = vmatpush1.msra.mxu0 0.0
        %867 = vmatprep.subr.mxu0 0.0
        %868 = vmatpush1.msra.mxu0 0.0
        %869 = vmatprep.subr.mxu0 0.0
        %870 = vmatpush1.msra.mxu0 0.0
        %871 = vmatprep.subr.mxu0 0.0
        %872 = vmatpush1.msra.mxu0 0.0
        %873 = vmatprep.subr.mxu0 0.0
        %874 = vmatpush1.msra.mxu0 0.0
        %875 = vmatprep.subr.mxu0 0.0
        %876 = vmatpush1.msra.mxu0 0.0
        %877 = vmatprep.subr.mxu0 0.0
        %878 = vmatpush1.msra.mxu0 0.0
        %879 = vmatprep.subr.mxu0 0.0
        %880 = vmatpush1.msra.mxu0 0.0
        %881 = vmatprep.mubr.f32.mxu0 0.0
        %882 = vmatmul.mubr.f32.gmra.mrb[0].mxu0 %v800
        %v883 = vpop.f32.mrb[0].mxu0
        %v884 = vadd.f32 %v782, %v883
        %v885 = vpop.f32.mrb[0].mxu0
        %v886 = vadd.f32 %v782, %v885
        %887 = vmatprep.mubr.f32.mxu0 0.0
        %888 = vmatmul.mubr.f32.gmra.mrb[0].mxu0 %v803
        %v889 = vpop.f32.mrb[0].mxu0
        %v890 = vadd.f32 %v787, %v889
        %v891 = vpop.f32.mrb[0].mxu0
        %v892 = vadd.f32 %v787, %v891
        %893 = vmatprep.mubr.f32.mxu0 0.0
        %894 = vmatmul.mubr.f32.gmra.mrb[0].mxu0 %v806
        %v895 = vpop.f32.mrb[0].mxu0
        %v896 = vadd.f32 %v792, %v895
        %v897 = vpop.f32.mrb[0].mxu0
        %v898 = vadd.f32 %v792, %v897
        %899 = vmatprep.mubr.f32.mxu0 0.0
        %900 = vmatmul.mubr.f32.gmra.mrb[0].mxu0 %v809
        %v901 = vpop.f32.mrb[0].mxu0
        %v902 = vadd.f32 %v797, %v901
        %v903 = vpop.f32.mrb[0].mxu0
        %v904 = vadd.f32 %v797, %v903
        %905 = vdwg.mxu0
        %v906 = vmax.f32 %v884, 0.0
        %v907 = vmax.f32 %v886, 0.0
        %v908 = vmax.f32 %v890, 0.0
        %v909 = vmax.f32 %v892, 0.0
        %v910 = vmax.f32 %v896, 0.0
        %v911 = vmax.f32 %v898, 0.0
        %v912 = vmax.f32 %v902, 0.0
        %v913 = vmax.f32 %v904, 0.0
        %915 = vset.pattern.permute.xlu0 0
        %916 = vperm.xlu0 %915, %v759
        %v917 = vpop.permute.xlu0 %916
        %920 = vset.pattern.permute.xlu0 0
        %921 = vperm.xlu0 %920, %v760
        %v922 = vpop.permute.xlu0 %921
        %925 = vset.pattern.permute.xlu0 0
        %926 = vperm.xlu0 %925, %v761
        %v927 = vpop.permute.xlu0 %926
        %930 = vset.pattern.permute.xlu0 0
        %931 = vperm.xlu0 %930, %v762
        %v932 = vpop.permute.xlu0 %931
        %v935 = vsel %vm508, %v773, 0
        %v938 = vsel %vm508, %v774, 0
        %v941 = vsel %vm508, %v775, 0
        %v944 = vsel %vm508, %v776, 0
        %946 = vmatprep.subr.mxu0 %v907
        %947 = vmatpush1.msra.mxu0 %v906
        %948 = vmatprep.subr.mxu0 %v909
        %949 = vmatpush1.msra.mxu0 %v908
        %950 = vmatprep.subr.mxu0 %v911
        %951 = vmatpush1.msra.mxu0 %v910
        %952 = vmatprep.subr.mxu0 %v913
        %953 = vmatpush1.msra.mxu0 %v912
        %954 = vmatprep.subr.mxu0 0.0
        %955 = vmatpush1.msra.mxu0 0.0
        %956 = vmatprep.subr.mxu0 0.0
        %957 = vmatpush1.msra.mxu0 0.0
        %958 = vmatprep.subr.mxu0 0.0
        %959 = vmatpush1.msra.mxu0 0.0
        %960 = vmatprep.subr.mxu0 0.0
        %961 = vmatpush1.msra.mxu0 0.0
        %962 = vmatprep.subr.mxu0 0.0
        %963 = vmatpush1.msra.mxu0 0.0
        %964 = vmatprep.subr.mxu0 0.0
        %965 = vmatpush1.msra.mxu0 0.0
        %966 = vmatprep.subr.mxu0 0.0
        %967 = vmatpush1.msra.mxu0 0.0
        %968 = vmatprep.subr.mxu0 0.0
        %969 = vmatpush1.msra.mxu0 0.0
        %970 = vmatprep.subr.mxu0 0.0
        %971 = vmatpush1.msra.mxu0 0.0
        %972 = vmatprep.subr.mxu0 0.0
        %973 = vmatpush1.msra.mxu0 0.0
        %974 = vmatprep.subr.mxu0 0.0
        %975 = vmatpush1.msra.mxu0 0.0
        %976 = vmatprep.subr.mxu0 0.0
        %977 = vmatpush1.msra.mxu0 0.0
        %978 = vmatprep.subr.mxu0 0.0
        %979 = vmatpush1.msra.mxu0 0.0
        %980 = vmatprep.subr.mxu0 0.0
        %981 = vmatpush1.msra.mxu0 0.0
        %982 = vmatprep.subr.mxu0 0.0
        %983 = vmatpush1.msra.mxu0 0.0
        %984 = vmatprep.subr.mxu0 0.0
        %985 = vmatpush1.msra.mxu0 0.0
        %986 = vmatprep.subr.mxu0 0.0
        %987 = vmatpush1.msra.mxu0 0.0
        %988 = vmatprep.subr.mxu0 0.0
        %989 = vmatpush1.msra.mxu0 0.0
        %990 = vmatprep.subr.mxu0 0.0
        %991 = vmatpush1.msra.mxu0 0.0
        %992 = vmatprep.subr.mxu0 0.0
        %993 = vmatpush1.msra.mxu0 0.0
        %994 = vmatprep.subr.mxu0 0.0
        %995 = vmatpush1.msra.mxu0 0.0
        %996 = vmatprep.subr.mxu0 0.0
        %997 = vmatpush1.msra.mxu0 0.0
        %998 = vmatprep.subr.mxu0 0.0
        %999 = vmatpush1.msra.mxu0 0.0
        %1000 = vmatprep.subr.mxu0 0.0
        %1001 = vmatpush1.msra.mxu0 0.0
        %1002 = vmatprep.subr.mxu0 0.0
        %1003 = vmatpush1.msra.mxu0 0.0
        %1004 = vmatprep.subr.mxu0 0.0
        %1005 = vmatpush1.msra.mxu0 0.0
        %1006 = vmatprep.subr.mxu0 0.0
        %1007 = vmatpush1.msra.mxu0 0.0
        %1008 = vmatprep.subr.mxu0 0.0
        %1009 = vmatpush1.msra.mxu0 0.0
        %1010 = vmatprep.mubr.f32.mxu0 0.0
        %1011 = vmatmul.mubr.f32.gmra.mrb[0].mxu0 %v935
        %v1012 = vpop.f32.mrb[0].mxu0
        %v1013 = vadd.f32 %v917, %v1012
        %v1014 = vpop.f32.mrb[0].mxu0
        %v1015 = vadd.f32 %v917, %v1014
        %1016 = vmatprep.mubr.f32.mxu0 0.0
        %1017 = vmatmul.mubr.f32.gmra.mrb[0].mxu0 %v938
        %v1018 = vpop.f32.mrb[0].mxu0
        %v1019 = vadd.f32 %v922, %v1018
        %v1020 = vpop.f32.mrb[0].mxu0
        %v1021 = vadd.f32 %v922, %v1020
        %1022 = vmatprep.mubr.f32.mxu0 0.0
        %1023 = vmatmul.mubr.f32.gmra.mrb[0].mxu0 %v941
        %v1024 = vpop.f32.mrb[0].mxu0
        %v1025 = vadd.f32 %v927, %v1024
        %v1026 = vpop.f32.mrb[0].mxu0
        %v1027 = vadd.f32 %v927, %v1026
        %1028 = vmatprep.mubr.f32.mxu0 0.0
        %1029 = vmatmul.mubr.f32.gmra.mrb[0].mxu0 %v944
        %v1030 = vpop.f32.mrb[0].mxu0
        %v1031 = vadd.f32 %v932, %v1030
        %v1032 = vpop.f32.mrb[0].mxu0
        %v1033 = vadd.f32 %v932, %v1032
        %1034 = vdwg.mxu0
        %v1035 = vmax.f32 %v1013, 0.0
        %v1036 = vmax.f32 %v1015, 0.0
        %v1037 = vmax.f32 %v1019, 0.0
        %v1038 = vmax.f32 %v1021, 0.0
        %v1039 = vmax.f32 %v1025, 0.0
        %v1040 = vmax.f32 %v1027, 0.0
        %v1041 = vmax.f32 %v1031, 0.0
        %v1042 = vmax.f32 %v1033, 0.0
        %1044 = vset.pattern.permute.xlu0 0
        %1045 = vperm.xlu0 %1044, %v763
        %v1046 = vpop.permute.xlu0 %1045
        %v1049 = vsel %vm508, %v778, 0
        %1051 = vmatprep.subr.mxu0 %v1036
        %1052 = vmatpush1.msra.mxu0 %v1035
        %1053 = vmatprep.subr.mxu0 %v1038
        %1054 = vmatpush1.msra.mxu0 %v1037
        %1055 = vmatprep.subr.mxu0 %v1040
        %1056 = vmatpush1.msra.mxu0 %v1039
        %1057 = vmatprep.subr.mxu0 %v1042
        %1058 = vmatpush1.msra.mxu0 %v1041
        %1059 = vmatprep.subr.mxu0 0.0
        %1060 = vmatpush1.msra.mxu0 0.0
        %1061 = vmatprep.subr.mxu0 0.0
        %1062 = vmatpush1.msra.mxu0 0.0
        %1063 = vmatprep.subr.mxu0 0.0
        %1064 = vmatpush1.msra.mxu0 0.0
        %1065 = vmatprep.subr.mxu0 0.0
        %1066 = vmatpush1.msra.mxu0 0.0
        %1067 = vmatprep.subr.mxu0 0.0
        %1068 = vmatpush1.msra.mxu0 0.0
        %1069 = vmatprep.subr.mxu0 0.0
        %1070 = vmatpush1.msra.mxu0 0.0
        %1071 = vmatprep.subr.mxu0 0.0
        %1072 = vmatpush1.msra.mxu0 0.0
        %1073 = vmatprep.subr.mxu0 0.0
        %1074 = vmatpush1.msra.mxu0 0.0
        %1075 = vmatprep.subr.mxu0 0.0
        %1076 = vmatpush1.msra.mxu0 0.0
        %1077 = vmatprep.subr.mxu0 0.0
        %1078 = vmatpush1.msra.mxu0 0.0
        %1079 = vmatprep.subr.mxu0 0.0
        %1080 = vmatpush1.msra.mxu0 0.0
        %1081 = vmatprep.subr.mxu0 0.0
        %1082 = vmatpush1.msra.mxu0 0.0
        %1083 = vmatprep.subr.mxu0 0.0
        %1084 = vmatpush1.msra.mxu0 0.0
        %1085 = vmatprep.subr.mxu0 0.0
        %1086 = vmatpush1.msra.mxu0 0.0
        %1087 = vmatprep.subr.mxu0 0.0
        %1088 = vmatpush1.msra.mxu0 0.0
        %1089 = vmatprep.subr.mxu0 0.0
        %1090 = vmatpush1.msra.mxu0 0.0
        %1091 = vmatprep.subr.mxu0 0.0
        %1092 = vmatpush1.msra.mxu0 0.0
        %1093 = vmatprep.subr.mxu0 0.0
        %1094 = vmatpush1.msra.mxu0 0.0
        %1095 = vmatprep.subr.mxu0 0.0
        %1096 = vmatpush1.msra.mxu0 0.0
        %1097 = vmatprep.subr.mxu0 0.0
        %1098 = vmatpush1.msra.mxu0 0.0
        %1099 = vmatprep.subr.mxu0 0.0
        %1100 = vmatpush1.msra.mxu0 0.0
        %1101 = vmatprep.subr.mxu0 0.0
        %1102 = vmatpush1.msra.mxu0 0.0
        %1103 = vmatprep.subr.mxu0 0.0
        %1104 = vmatpush1.msra.mxu0 0.0
        %1105 = vmatprep.subr.mxu0 0.0
        %1106 = vmatpush1.msra.mxu0 0.0
        %1107 = vmatprep.subr.mxu0 0.0
        %1108 = vmatpush1.msra.mxu0 0.0
        %1109 = vmatprep.subr.mxu0 0.0
        %1110 = vmatpush1.msra.mxu0 0.0
        %1111 = vmatprep.subr.mxu0 0.0
        %1112 = vmatpush1.msra.mxu0 0.0
        %1113 = vmatprep.subr.mxu0 0.0
        %1114 = vmatpush1.msra.mxu0 0.0
        %1115 = vmatprep.mubr.f32.mxu0 0.0
        %1116 = vmatmul.mubr.f32.gmra.mrb[0].mxu0 %v1049
        %v1117 = vpop.f32.mrb[0].mxu0
        %v1118 = vadd.f32 %v1046, %v1117
        %v1119 = vpop.f32.mrb[0].mxu0
        %v1120 = vadd.f32 %v1046, %v1119
        %1121 = vdwg.mxu0
        %v1122 = vtanh.pop %v1118
        %v1123 = vtanh.pop %v1120
        %1125 = vset.pattern.permute.xlu0 0
        %1126 = vperm.xlu0 %1125, %v764
        %v1127 = vpop.permute.xlu0 %1126
        %v1129 = vmul.f32 %v1127, %v1122
        %v1130 = vmul.f32 %v1127, %v1123
        %v1131 = vmul.f32 %v1129, 1.442695
        %v1132 = vpow.pop %v1131
        %v1133 = vmul.f32 %v1130, 1.442695
        %v1134 = vpow.pop %v1133
        %v1137 = vrot.slane %v1132, 4
        %v1138 = vrot.slane %v1134, 4
        %v1141 = vmul.f32 %v752, %v1137
        %v1142 = vmul.f32 %v753, %v1138
        %v1143 = vadd.f32 %v1141, %v1118
        %v1144 = vadd.f32 %v1142, %v1120
        %v1145 = vsel %vm386, %v1129, 0.0
        %v1146 = vrot.slane %v1145, 4
        %v1147 = vadd.f32 %v1145, %v1146
        %v1148 = vrot.slane %v1147, 2
        %v1149 = vadd.f32 %v1147, %v1148
        %v1150 = vrot.slane %v1149, 1
        %v1151 = vadd.f32 %v1149, %v1150
        %v1152 = vsel %vm386, %v1130, 0.0
        %v1153 = vrot.slane %v1152, 4
        %v1154 = vadd.f32 %v1152, %v1153
        %v1155 = vrot.slane %v1154, 2
        %v1156 = vadd.f32 %v1154, %v1155
        %v1157 = vrot.slane %v1156, 1
        %v1158 = vadd.f32 %v1156, %v1157
        %v1159 = vsub.f32 %v734, %v1151
        %v1160 = vsub.f32 %v735, %v1158
        %1162 = vset.pattern.permute.xlu0 0
        %1163 = vperm.xlu0 %1162, %v765
        %v1164 = vpop.permute.xlu0 %1163
        %v1166 = vmul.f32 %v748, %v1164
        %v1167 = vmul.f32 %v749, %v1164
        %1169 = vset.pattern.permute.xlu0 0
        %1170 = vperm.xlu0 %1169, %v766
        %v1171 = vpop.permute.xlu0 %1170
        %v1173 = vadd.f32 %v1166, %v1171
        %v1174 = vadd.f32 %v1167, %v1171
        %v1175 = vmul.f32 %v1143, %v1164
        %v1176 = vmul.f32 %v1144, %v1164
        %v1177 = vadd.f32 %v1175, %v1171
        %v1178 = vadd.f32 %v1176, %v1171
        %s1179 = scalar_lea.vmem %s4, 192
        %v1180 = vld [vmem:[%s1179] sm:$0xff]
        %v1181 = vld [vmem:[%s1179 + $0x8] sm:$0xff]
        %v1182 = vld [vmem:[%s1179 + $0x10] sm:$0xff]
        %v1183 = vld [vmem:[%s1179 + $0x18] sm:$0xff]
        %v1184 = vld [vmem:[%s1179 + $0x20] sm:$0xff]
        %v1185 = vld [vmem:[%s1179 + $0x28] sm:$0xff]
        %v1186 = vld [vmem:[%s1179 + $0x30] sm:$0xff]
        %v1187 = vld [vmem:[%s1179 + $0x38] sm:$0xff]
        %v1188 = vld [vmem:[%s1179 + $0x40] sm:$0xff]
        %v1189 = vld [vmem:[%s1179 + $0x48] sm:$0xff]
        %v1190 = vld [vmem:[%s1179 + $0x50] sm:$0xff]
        %v1191 = vld [vmem:[%s1179 + $0x58] sm:$0xff]
        %s1192 = scalar_lea.vmem %s1, 64
        %v1193 = vld [vmem:[%s1192] sm:$0xff]
        %v1194 = vld [vmem:[%s1192 + $0x8] sm:$0xff]
        %v1195 = vld [vmem:[%s1192 + $0x10] sm:$0xff]
        %v1196 = vld [vmem:[%s1192 + $0x18] sm:$0xff]
        %s1197 = scalar_lea.vmem %s2, 64
        %v1198 = vld [vmem:[%s1197] sm:$0xff]
        %v1199 = vld [vmem:[%s1197 + $0x8] sm:$0xff]
        %v1200 = vld [vmem:[%s1197 + $0x10] sm:$0xff]
        %v1201 = vld [vmem:[%s1197 + $0x18] sm:$0xff]
        %s1202 = scalar_lea.vmem %s3, 16
        %v1203 = vld [vmem:[%s1202] sm:$0xff]
        %1205 = vset.pattern.permute.xlu0 0
        %1206 = vperm.xlu0 %1205, %v1180
        %v1207 = vpop.permute.xlu0 %1206
        %1210 = vset.pattern.permute.xlu0 0
        %1211 = vperm.xlu0 %1210, %v1181
        %v1212 = vpop.permute.xlu0 %1211
        %1215 = vset.pattern.permute.xlu0 0
        %1216 = vperm.xlu0 %1215, %v1182
        %v1217 = vpop.permute.xlu0 %1216
        %1220 = vset.pattern.permute.xlu0 0
        %1221 = vperm.xlu0 %1220, %v1183
        %v1222 = vpop.permute.xlu0 %1221
        %v1226 = vrot.slane %v1177, 4
        %v1227 = vrot.slane %v1178, 4
        %v1229 = vsel %vm373, %v1193, 0
        %v1232 = vsel %vm373, %v1194, 0
        %v1235 = vsel %vm373, %v1195, 0
        %v1238 = vsel %vm373, %v1196, 0
        %v1240 = vsel %vm386, %v1226, 0
        %v1242 = vsel %vm386, %v1227, 0
        %1244 = vmatprep.subr.mxu0 %v1242
        %1245 = vmatpush1.msra.mxu0 %v1240
        %1246 = vmatprep.subr.mxu0 0.0
        %1247 = vmatpush1.msra.mxu0 0.0
        %1248 = vmatprep.subr.mxu0 0.0
        %1249 = vmatpush1.msra.mxu0 0.0
        %1250 = vmatprep.subr.mxu0 0.0
        %1251 = vmatpush1.msra.mxu0 0.0
        %1252 = vmatprep.subr.mxu0 0.0
        %1253 = vmatpush1.msra.mxu0 0.0
        %1254 = vmatprep.subr.mxu0 0.0
        %1255 = vmatpush1.msra.mxu0 0.0
        %1256 = vmatprep.subr.mxu0 0.0
        %1257 = vmatpush1.msra.mxu0 0.0
        %1258 = vmatprep.subr.mxu0 0.0
        %1259 = vmatpush1.msra.mxu0 0.0
        %1260 = vmatprep.subr.mxu0 0.0
        %1261 = vmatpush1.msra.mxu0 0.0
        %1262 = vmatprep.subr.mxu0 0.0
        %1263 = vmatpush1.msra.mxu0 0.0
        %1264 = vmatprep.subr.mxu0 0.0
        %1265 = vmatpush1.msra.mxu0 0.0
        %1266 = vmatprep.subr.mxu0 0.0
        %1267 = vmatpush1.msra.mxu0 0.0
        %1268 = vmatprep.subr.mxu0 0.0
        %1269 = vmatpush1.msra.mxu0 0.0
        %1270 = vmatprep.subr.mxu0 0.0
        %1271 = vmatpush1.msra.mxu0 0.0
        %1272 = vmatprep.subr.mxu0 0.0
        %1273 = vmatpush1.msra.mxu0 0.0
        %1274 = vmatprep.subr.mxu0 0.0
        %1275 = vmatpush1.msra.mxu0 0.0
        %1276 = vmatprep.subr.mxu0 0.0
        %1277 = vmatpush1.msra.mxu0 0.0
        %1278 = vmatprep.subr.mxu0 0.0
        %1279 = vmatpush1.msra.mxu0 0.0
        %1280 = vmatprep.subr.mxu0 0.0
        %1281 = vmatpush1.msra.mxu0 0.0
        %1282 = vmatprep.subr.mxu0 0.0
        %1283 = vmatpush1.msra.mxu0 0.0
        %1284 = vmatprep.subr.mxu0 0.0
        %1285 = vmatpush1.msra.mxu0 0.0
        %1286 = vmatprep.subr.mxu0 0.0
        %1287 = vmatpush1.msra.mxu0 0.0
        %1288 = vmatprep.subr.mxu0 0.0
        %1289 = vmatpush1.msra.mxu0 0.0
        %1290 = vmatprep.subr.mxu0 0.0
        %1291 = vmatpush1.msra.mxu0 0.0
        %1292 = vmatprep.subr.mxu0 0.0
        %1293 = vmatpush1.msra.mxu0 0.0
        %1294 = vmatprep.subr.mxu0 0.0
        %1295 = vmatpush1.msra.mxu0 0.0
        %1296 = vmatprep.subr.mxu0 0.0
        %1297 = vmatpush1.msra.mxu0 0.0
        %1298 = vmatprep.subr.mxu0 0.0
        %1299 = vmatpush1.msra.mxu0 0.0
        %1300 = vmatprep.subr.mxu0 0.0
        %1301 = vmatpush1.msra.mxu0 0.0
        %1302 = vmatprep.subr.mxu0 0.0
        %1303 = vmatpush1.msra.mxu0 0.0
        %1304 = vmatprep.subr.mxu0 0.0
        %1305 = vmatpush1.msra.mxu0 0.0
        %1306 = vmatprep.subr.mxu0 0.0
        %1307 = vmatpush1.msra.mxu0 0.0
        %1308 = vmatprep.mubr.f32.mxu0 0.0
        %1309 = vmatmul.mubr.f32.gmra.mrb[0].mxu0 %v1229
        %v1310 = vpop.f32.mrb[0].mxu0
        %v1311 = vadd.f32 %v1207, %v1310
        %v1312 = vpop.f32.mrb[0].mxu0
        %v1313 = vadd.f32 %v1207, %v1312
        %1314 = vmatprep.mubr.f32.mxu0 0.0
        %1315 = vmatmul.mubr.f32.gmra.mrb[0].mxu0 %v1232
        %v1316 = vpop.f32.mrb[0].mxu0
        %v1317 = vadd.f32 %v1212, %v1316
        %v1318 = vpop.f32.mrb[0].mxu0
        %v1319 = vadd.f32 %v1212, %v1318
        %1320 = vmatprep.mubr.f32.mxu0 0.0
        %1321 = vmatmul.mubr.f32.gmra.mrb[0].mxu0 %v1235
        %v1322 = vpop.f32.mrb[0].mxu0
        %v1323 = vadd.f32 %v1217, %v1322
        %v1324 = vpop.f32.mrb[0].mxu0
        %v1325 = vadd.f32 %v1217, %v1324
        %1326 = vmatprep.mubr.f32.mxu0 0.0
        %1327 = vmatmul.mubr.f32.gmra.mrb[0].mxu0 %v1238
        %v1328 = vpop.f32.mrb[0].mxu0
        %v1329 = vadd.f32 %v1222, %v1328
        %v1330 = vpop.f32.mrb[0].mxu0
        %v1331 = vadd.f32 %v1222, %v1330
        %1332 = vdwg.mxu0
        %v1333 = vmax.f32 %v1311, 0.0
        %v1334 = vmax.f32 %v1313, 0.0
        %v1335 = vmax.f32 %v1317, 0.0
        %v1336 = vmax.f32 %v1319, 0.0
        %v1337 = vmax.f32 %v1323, 0.0
        %v1338 = vmax.f32 %v1325, 0.0
        %v1339 = vmax.f32 %v1329, 0.0
        %v1340 = vmax.f32 %v1331, 0.0
        %1342 = vset.pattern.permute.xlu0 0
        %1343 = vperm.xlu0 %1342, %v1184
        %v1344 = vpop.permute.xlu0 %1343
        %1347 = vset.pattern.permute.xlu0 0
        %1348 = vperm.xlu0 %1347, %v1185
        %v1349 = vpop.permute.xlu0 %1348
        %1352 = vset.pattern.permute.xlu0 0
        %1353 = vperm.xlu0 %1352, %v1186
        %v1354 = vpop.permute.xlu0 %1353
        %1357 = vset.pattern.permute.xlu0 0
        %1358 = vperm.xlu0 %1357, %v1187
        %v1359 = vpop.permute.xlu0 %1358
        %v1362 = vsel %vm508, %v1198, 0
        %v1365 = vsel %vm508, %v1199, 0
        %v1368 = vsel %vm508, %v1200, 0
        %v1371 = vsel %vm508, %v1201, 0
        %1373 = vmatprep.subr.mxu0 %v1334
        %1374 = vmatpush1.msra.mxu0 %v1333
        %1375 = vmatprep.subr.mxu0 %v1336
        %1376 = vmatpush1.msra.mxu0 %v1335
        %1377 = vmatprep.subr.mxu0 %v1338
        %1378 = vmatpush1.msra.mxu0 %v1337
        %1379 = vmatprep.subr.mxu0 %v1340
        %1380 = vmatpush1.msra.mxu0 %v1339
        %1381 = vmatprep.subr.mxu0 0.0
        %1382 = vmatpush1.msra.mxu0 0.0
        %1383 = vmatprep.subr.mxu0 0.0
        %1384 = vmatpush1.msra.mxu0 0.0
        %1385 = vmatprep.subr.mxu0 0.0
        %1386 = vmatpush1.msra.mxu0 0.0
        %1387 = vmatprep.subr.mxu0 0.0
        %1388 = vmatpush1.msra.mxu0 0.0
        %1389 = vmatprep.subr.mxu0 0.0
        %1390 = vmatpush1.msra.mxu0 0.0
        %1391 = vmatprep.subr.mxu0 0.0
        %1392 = vmatpush1.msra.mxu0 0.0
        %1393 = vmatprep.subr.mxu0 0.0
        %1394 = vmatpush1.msra.mxu0 0.0
        %1395 = vmatprep.subr.mxu0 0.0
        %1396 = vmatpush1.msra.mxu0 0.0
        %1397 = vmatprep.subr.mxu0 0.0
        %1398 = vmatpush1.msra.mxu0 0.0
        %1399 = vmatprep.subr.mxu0 0.0
        %1400 = vmatpush1.msra.mxu0 0.0
        %1401 = vmatprep.subr.mxu0 0.0
        %1402 = vmatpush1.msra.mxu0 0.0
        %1403 = vmatprep.subr.mxu0 0.0
        %1404 = vmatpush1.msra.mxu0 0.0
        %1405 = vmatprep.subr.mxu0 0.0
        %1406 = vmatpush1.msra.mxu0 0.0
        %1407 = vmatprep.subr.mxu0 0.0
        %1408 = vmatpush1.msra.mxu0 0.0
        %1409 = vmatprep.subr.mxu0 0.0
        %1410 = vmatpush1.msra.mxu0 0.0
        %1411 = vmatprep.subr.mxu0 0.0
        %1412 = vmatpush1.msra.mxu0 0.0
        %1413 = vmatprep.subr.mxu0 0.0
        %1414 = vmatpush1.msra.mxu0 0.0
        %1415 = vmatprep.subr.mxu0 0.0
        %1416 = vmatpush1.msra.mxu0 0.0
        %1417 = vmatprep.subr.mxu0 0.0
        %1418 = vmatpush1.msra.mxu0 0.0
        %1419 = vmatprep.subr.mxu0 0.0
        %1420 = vmatpush1.msra.mxu0 0.0
        %1421 = vmatprep.subr.mxu0 0.0
        %1422 = vmatpush1.msra.mxu0 0.0
        %1423 = vmatprep.subr.mxu0 0.0
        %1424 = vmatpush1.msra.mxu0 0.0
        %1425 = vmatprep.subr.mxu0 0.0
        %1426 = vmatpush1.msra.mxu0 0.0
        %1427 = vmatprep.subr.mxu0 0.0
        %1428 = vmatpush1.msra.mxu0 0.0
        %1429 = vmatprep.subr.mxu0 0.0
        %1430 = vmatpush1.msra.mxu0 0.0
        %1431 = vmatprep.subr.mxu0 0.0
        %1432 = vmatpush1.msra.mxu0 0.0
        %1433 = vmatprep.subr.mxu0 0.0
        %1434 = vmatpush1.msra.mxu0 0.0
        %1435 = vmatprep.subr.mxu0 0.0
        %1436 = vmatpush1.msra.mxu0 0.0
        %1437 = vmatprep.mubr.f32.mxu0 0.0
        %1438 = vmatmul.mubr.f32.gmra.mrb[0].mxu0 %v1362
        %v1439 = vpop.f32.mrb[0].mxu0
        %v1440 = vadd.f32 %v1344, %v1439
        %v1441 = vpop.f32.mrb[0].mxu0
        %v1442 = vadd.f32 %v1344, %v1441
        %1443 = vmatprep.mubr.f32.mxu0 0.0
        %1444 = vmatmul.mubr.f32.gmra.mrb[0].mxu0 %v1365
        %v1445 = vpop.f32.mrb[0].mxu0
        %v1446 = vadd.f32 %v1349, %v1445
        %v1447 = vpop.f32.mrb[0].mxu0
        %v1448 = vadd.f32 %v1349, %v1447
        %1449 = vmatprep.mubr.f32.mxu0 0.0
        %1450 = vmatmul.mubr.f32.gmra.mrb[0].mxu0 %v1368
        %v1451 = vpop.f32.mrb[0].mxu0
        %v1452 = vadd.f32 %v1354, %v1451
        %v1453 = vpop.f32.mrb[0].mxu0
        %v1454 = vadd.f32 %v1354, %v1453
        %1455 = vmatprep.mubr.f32.mxu0 0.0
        %1456 = vmatmul.mubr.f32.gmra.mrb[0].mxu0 %v1371
        %v1457 = vpop.f32.mrb[0].mxu0
        %v1458 = vadd.f32 %v1359, %v1457
        %v1459 = vpop.f32.mrb[0].mxu0
        %v1460 = vadd.f32 %v1359, %v1459
        %1461 = vdwg.mxu0
        %v1462 = vmax.f32 %v1440, 0.0
        %v1463 = vmax.f32 %v1442, 0.0
        %v1464 = vmax.f32 %v1446, 0.0
        %v1465 = vmax.f32 %v1448, 0.0
        %v1466 = vmax.f32 %v1452, 0.0
        %v1467 = vmax.f32 %v1454, 0.0
        %v1468 = vmax.f32 %v1458, 0.0
        %v1469 = vmax.f32 %v1460, 0.0
        %1471 = vset.pattern.permute.xlu0 0
        %1472 = vperm.xlu0 %1471, %v1188
        %v1473 = vpop.permute.xlu0 %1472
        %v1476 = vsel %vm508, %v1203, 0
        %1478 = vmatprep.subr.mxu0 %v1463
        %1479 = vmatpush1.msra.mxu0 %v1462
        %1480 = vmatprep.subr.mxu0 %v1465
        %1481 = vmatpush1.msra.mxu0 %v1464
        %1482 = vmatprep.subr.mxu0 %v1467
        %1483 = vmatpush1.msra.mxu0 %v1466
        %1484 = vmatprep.subr.mxu0 %v1469
        %1485 = vmatpush1.msra.mxu0 %v1468
        %1486 = vmatprep.subr.mxu0 0.0
        %1487 = vmatpush1.msra.mxu0 0.0
        %1488 = vmatprep.subr.mxu0 0.0
        %1489 = vmatpush1.msra.mxu0 0.0
        %1490 = vmatprep.subr.mxu0 0.0
        %1491 = vmatpush1.msra.mxu0 0.0
        %1492 = vmatprep.subr.mxu0 0.0
        %1493 = vmatpush1.msra.mxu0 0.0
        %1494 = vmatprep.subr.mxu0 0.0
        %1495 = vmatpush1.msra.mxu0 0.0
        %1496 = vmatprep.subr.mxu0 0.0
        %1497 = vmatpush1.msra.mxu0 0.0
        %1498 = vmatprep.subr.mxu0 0.0
        %1499 = vmatpush1.msra.mxu0 0.0
        %1500 = vmatprep.subr.mxu0 0.0
        %1501 = vmatpush1.msra.mxu0 0.0
        %1502 = vmatprep.subr.mxu0 0.0
        %1503 = vmatpush1.msra.mxu0 0.0
        %1504 = vmatprep.subr.mxu0 0.0
        %1505 = vmatpush1.msra.mxu0 0.0
        %1506 = vmatprep.subr.mxu0 0.0
        %1507 = vmatpush1.msra.mxu0 0.0
        %1508 = vmatprep.subr.mxu0 0.0
        %1509 = vmatpush1.msra.mxu0 0.0
        %1510 = vmatprep.subr.mxu0 0.0
        %1511 = vmatpush1.msra.mxu0 0.0
        %1512 = vmatprep.subr.mxu0 0.0
        %1513 = vmatpush1.msra.mxu0 0.0
        %1514 = vmatprep.subr.mxu0 0.0
        %1515 = vmatpush1.msra.mxu0 0.0
        %1516 = vmatprep.subr.mxu0 0.0
        %1517 = vmatpush1.msra.mxu0 0.0
        %1518 = vmatprep.subr.mxu0 0.0
        %1519 = vmatpush1.msra.mxu0 0.0
        %1520 = vmatprep.subr.mxu0 0.0
        %1521 = vmatpush1.msra.mxu0 0.0
        %1522 = vmatprep.subr.mxu0 0.0
        %1523 = vmatpush1.msra.mxu0 0.0
        %1524 = vmatprep.subr.mxu0 0.0
        %1525 = vmatpush1.msra.mxu0 0.0
        %1526 = vmatprep.subr.mxu0 0.0
        %1527 = vmatpush1.msra.mxu0 0.0
        %1528 = vmatprep.subr.mxu0 0.0
        %1529 = vmatpush1.msra.mxu0 0.0
        %1530 = vmatprep.subr.mxu0 0.0
        %1531 = vmatpush1.msra.mxu0 0.0
        %1532 = vmatprep.subr.mxu0 0.0
        %1533 = vmatpush1.msra.mxu0 0.0
        %1534 = vmatprep.subr.mxu0 0.0
        %1535 = vmatpush1.msra.mxu0 0.0
        %1536 = vmatprep.subr.mxu0 0.0
        %1537 = vmatpush1.msra.mxu0 0.0
        %1538 = vmatprep.subr.mxu0 0.0
        %1539 = vmatpush1.msra.mxu0 0.0
        %1540 = vmatprep.subr.mxu0 0.0
        %1541 = vmatpush1.msra.mxu0 0.0
        %1542 = vmatprep.mubr.f32.mxu0 0.0
        %1543 = vmatmul.mubr.f32.gmra.mrb[0].mxu0 %v1476
        %v1544 = vpop.f32.mrb[0].mxu0
        %v1545 = vadd.f32 %v1473, %v1544
        %v1546 = vpop.f32.mrb[0].mxu0
        %v1547 = vadd.f32 %v1473, %v1546
        %1548 = vdwg.mxu0
        %v1549 = vtanh.pop %v1545
        %v1550 = vtanh.pop %v1547
        %1552 = vset.pattern.permute.xlu0 0
        %1553 = vperm.xlu0 %1552, %v1189
        %v1554 = vpop.permute.xlu0 %1553
        %v1556 = vmul.f32 %v1554, %v1549
        %v1557 = vmul.f32 %v1554, %v1550
        %v1558 = vmul.f32 %v1556, 1.442695
        %v1559 = vpow.pop %v1558
        %v1560 = vmul.f32 %v1557, 1.442695
        %v1561 = vpow.pop %v1560
        %v1562 = vmul.f32 %v1173, %v1559
        %v1563 = vmul.f32 %v1174, %v1561
        %v1566 = vrot.slane %v1545, 4
        %v1567 = vrot.slane %v1547, 4
        %v1570 = vadd.f32 %v1562, %v1566
        %v1571 = vadd.f32 %v1563, %v1567
        %v1572 = vsel %vm386, %v1556, 0.0
        %v1573 = vrot.slane %v1572, 4
        %v1574 = vadd.f32 %v1572, %v1573
        %v1575 = vrot.slane %v1574, 2
        %v1576 = vadd.f32 %v1574, %v1575
        %v1577 = vrot.slane %v1576, 1
        %v1578 = vadd.f32 %v1576, %v1577
        %v1579 = vsel %vm386, %v1557, 0.0
        %v1580 = vrot.slane %v1579, 4
        %v1581 = vadd.f32 %v1579, %v1580
        %v1582 = vrot.slane %v1581, 2
        %v1583 = vadd.f32 %v1581, %v1582
        %v1584 = vrot.slane %v1583, 1
        %v1585 = vadd.f32 %v1583, %v1584
        %v1586 = vsub.f32 %v1159, %v1578
        %v1587 = vsub.f32 %v1160, %v1585
        %1589 = vset.pattern.permute.xlu0 0
        %1590 = vperm.xlu0 %1589, %v1190
        %v1591 = vpop.permute.xlu0 %1590
        %v1593 = vmul.f32 %v1570, %v1591
        %v1594 = vmul.f32 %v1571, %v1591
        %1596 = vset.pattern.permute.xlu0 0
        %1597 = vperm.xlu0 %1596, %v1191
        %v1598 = vpop.permute.xlu0 %1597
        %v1600 = vadd.f32 %v1593, %v1598
        %v1601 = vadd.f32 %v1594, %v1598
        %v1602 = vmul.f32 %v1177, %v1591
        %v1603 = vmul.f32 %v1178, %v1591
        %v1604 = vadd.f32 %v1602, %v1598
        %v1605 = vadd.f32 %v1603, %v1598
        %s1606 = scalar_lea.vmem %s4, 288
        %v1607 = vld [vmem:[%s1606] sm:$0xff]
        %v1608 = vld [vmem:[%s1606 + $0x8] sm:$0xff]
        %v1609 = vld [vmem:[%s1606 + $0x10] sm:$0xff]
        %v1610 = vld [vmem:[%s1606 + $0x18] sm:$0xff]
        %v1611 = vld [vmem:[%s1606 + $0x20] sm:$0xff]
        %v1612 = vld [vmem:[%s1606 + $0x28] sm:$0xff]
        %v1613 = vld [vmem:[%s1606 + $0x30] sm:$0xff]
        %v1614 = vld [vmem:[%s1606 + $0x38] sm:$0xff]
        %v1615 = vld [vmem:[%s1606 + $0x40] sm:$0xff]
        %v1616 = vld [vmem:[%s1606 + $0x48] sm:$0xff]
        %v1617 = vld [vmem:[%s1606 + $0x50] sm:$0xff]
        %v1618 = vld [vmem:[%s1606 + $0x58] sm:$0xff]
        %s1619 = scalar_lea.vmem %s1, 96
        %v1620 = vld [vmem:[%s1619] sm:$0xff]
        %v1621 = vld [vmem:[%s1619 + $0x8] sm:$0xff]
        %v1622 = vld [vmem:[%s1619 + $0x10] sm:$0xff]
        %v1623 = vld [vmem:[%s1619 + $0x18] sm:$0xff]
        %s1624 = scalar_lea.vmem %s2, 96
        %v1625 = vld [vmem:[%s1624] sm:$0xff]
        %v1626 = vld [vmem:[%s1624 + $0x8] sm:$0xff]
        %v1627 = vld [vmem:[%s1624 + $0x10] sm:$0xff]
        %v1628 = vld [vmem:[%s1624 + $0x18] sm:$0xff]
        %s1629 = scalar_lea.vmem %s3, 24
        %v1630 = vld [vmem:[%s1629] sm:$0xff]
        %1632 = vset.pattern.permute.xlu0 0
        %1633 = vperm.xlu0 %1632, %v1607
        %v1634 = vpop.permute.xlu0 %1633
        %1637 = vset.pattern.permute.xlu0 0
        %1638 = vperm.xlu0 %1637, %v1608
        %v1639 = vpop.permute.xlu0 %1638
        %1642 = vset.pattern.permute.xlu0 0
        %1643 = vperm.xlu0 %1642, %v1609
        %v1644 = vpop.permute.xlu0 %1643
        %1647 = vset.pattern.permute.xlu0 0
        %1648 = vperm.xlu0 %1647, %v1610
        %v1649 = vpop.permute.xlu0 %1648
        %v1652 = vsel %vm373, %v1620, 0
        %v1655 = vsel %vm373, %v1621, 0
        %v1658 = vsel %vm373, %v1622, 0
        %v1661 = vsel %vm373, %v1623, 0
        %v1664 = vsel %vm386, %v1600, 0
        %v1667 = vsel %vm386, %v1601, 0
        %1669 = vmatprep.subr.mxu0 %v1667
        %1670 = vmatpush1.msra.mxu0 %v1664
        %1671 = vmatprep.subr.mxu0 0.0
        %1672 = vmatpush1.msra.mxu0 0.0
        %1673 = vmatprep.subr.mxu0 0.0
        %1674 = vmatpush1.msra.mxu0 0.0
        %1675 = vmatprep.subr.mxu0 0.0
        %1676 = vmatpush1.msra.mxu0 0.0
        %1677 = vmatprep.subr.mxu0 0.0
        %1678 = vmatpush1.msra.mxu0 0.0
        %1679 = vmatprep.subr.mxu0 0.0
        %1680 = vmatpush1.msra.mxu0 0.0
        %1681 = vmatprep.subr.mxu0 0.0
        %1682 = vmatpush1.msra.mxu0 0.0
        %1683 = vmatprep.subr.mxu0 0.0
        %1684 = vmatpush1.msra.mxu0 0.0
        %1685 = vmatprep.subr.mxu0 0.0
        %1686 = vmatpush1.msra.mxu0 0.0
        %1687 = vmatprep.subr.mxu0 0.0
        %1688 = vmatpush1.msra.mxu0 0.0
        %1689 = vmatprep.subr.mxu0 0.0
        %1690 = vmatpush1.msra.mxu0 0.0
        %1691 = vmatprep.subr.mxu0 0.0
        %1692 = vmatpush1.msra.mxu0 0.0
        %1693 = vmatprep.subr.mxu0 0.0
        %1694 = vmatpush1.msra.mxu0 0.0
        %1695 = vmatprep.subr.mxu0 0.0
        %1696 = vmatpush1.msra.mxu0 0.0
        %1697 = vmatprep.subr.mxu0 0.0
        %1698 = vmatpush1.msra.mxu0 0.0
        %1699 = vmatprep.subr.mxu0 0.0
        %1700 = vmatpush1.msra.mxu0 0.0
        %1701 = vmatprep.subr.mxu0 0.0
        %1702 = vmatpush1.msra.mxu0 0.0
        %1703 = vmatprep.subr.mxu0 0.0
        %1704 = vmatpush1.msra.mxu0 0.0
        %1705 = vmatprep.subr.mxu0 0.0
        %1706 = vmatpush1.msra.mxu0 0.0
        %1707 = vmatprep.subr.mxu0 0.0
        %1708 = vmatpush1.msra.mxu0 0.0
        %1709 = vmatprep.subr.mxu0 0.0
        %1710 = vmatpush1.msra.mxu0 0.0
        %1711 = vmatprep.subr.mxu0 0.0
        %1712 = vmatpush1.msra.mxu0 0.0
        %1713 = vmatprep.subr.mxu0 0.0
        %1714 = vmatpush1.msra.mxu0 0.0
        %1715 = vmatprep.subr.mxu0 0.0
        %1716 = vmatpush1.msra.mxu0 0.0
        %1717 = vmatprep.subr.mxu0 0.0
        %1718 = vmatpush1.msra.mxu0 0.0
        %1719 = vmatprep.subr.mxu0 0.0
        %1720 = vmatpush1.msra.mxu0 0.0
        %1721 = vmatprep.subr.mxu0 0.0
        %1722 = vmatpush1.msra.mxu0 0.0
        %1723 = vmatprep.subr.mxu0 0.0
        %1724 = vmatpush1.msra.mxu0 0.0
        %1725 = vmatprep.subr.mxu0 0.0
        %1726 = vmatpush1.msra.mxu0 0.0
        %1727 = vmatprep.subr.mxu0 0.0
        %1728 = vmatpush1.msra.mxu0 0.0
        %1729 = vmatprep.subr.mxu0 0.0
        %1730 = vmatpush1.msra.mxu0 0.0
        %1731 = vmatprep.subr.mxu0 0.0
        %1732 = vmatpush1.msra.mxu0 0.0
        %1733 = vmatprep.mubr.f32.mxu0 0.0
        %1734 = vmatmul.mubr.f32.gmra.mrb[0].mxu0 %v1652
        %v1735 = vpop.f32.mrb[0].mxu0
        %v1736 = vadd.f32 %v1634, %v1735
        %v1737 = vpop.f32.mrb[0].mxu0
        %v1738 = vadd.f32 %v1634, %v1737
        %1739 = vmatprep.mubr.f32.mxu0 0.0
        %1740 = vmatmul.mubr.f32.gmra.mrb[0].mxu0 %v1655
        %v1741 = vpop.f32.mrb[0].mxu0
        %v1742 = vadd.f32 %v1639, %v1741
        %v1743 = vpop.f32.mrb[0].mxu0
        %v1744 = vadd.f32 %v1639, %v1743
        %1745 = vmatprep.mubr.f32.mxu0 0.0
        %1746 = vmatmul.mubr.f32.gmra.mrb[0].mxu0 %v1658
        %v1747 = vpop.f32.mrb[0].mxu0
        %v1748 = vadd.f32 %v1644, %v1747
        %v1749 = vpop.f32.mrb[0].mxu0
        %v1750 = vadd.f32 %v1644, %v1749
        %1751 = vmatprep.mubr.f32.mxu0 0.0
        %1752 = vmatmul.mubr.f32.gmra.mrb[0].mxu0 %v1661
        %v1753 = vpop.f32.mrb[0].mxu0
        %v1754 = vadd.f32 %v1649, %v1753
        %v1755 = vpop.f32.mrb[0].mxu0
        %v1756 = vadd.f32 %v1649, %v1755
        %1757 = vdwg.mxu0
        %v1758 = vmax.f32 %v1736, 0.0
        %v1759 = vmax.f32 %v1738, 0.0
        %v1760 = vmax.f32 %v1742, 0.0
        %v1761 = vmax.f32 %v1744, 0.0
        %v1762 = vmax.f32 %v1748, 0.0
        %v1763 = vmax.f32 %v1750, 0.0
        %v1764 = vmax.f32 %v1754, 0.0
        %v1765 = vmax.f32 %v1756, 0.0
        %1767 = vset.pattern.permute.xlu0 0
        %1768 = vperm.xlu0 %1767, %v1611
        %v1769 = vpop.permute.xlu0 %1768
        %1772 = vset.pattern.permute.xlu0 0
        %1773 = vperm.xlu0 %1772, %v1612
        %v1774 = vpop.permute.xlu0 %1773
        %1777 = vset.pattern.permute.xlu0 0
        %1778 = vperm.xlu0 %1777, %v1613
        %v1779 = vpop.permute.xlu0 %1778
        %1782 = vset.pattern.permute.xlu0 0
        %1783 = vperm.xlu0 %1782, %v1614
        %v1784 = vpop.permute.xlu0 %1783
        %v1787 = vsel %vm508, %v1625, 0
        %v1790 = vsel %vm508, %v1626, 0
        %v1793 = vsel %vm508, %v1627, 0
        %v1796 = vsel %vm508, %v1628, 0
        %1798 = vmatprep.subr.mxu0 %v1759
        %1799 = vmatpush1.msra.mxu0 %v1758
        %1800 = vmatprep.subr.mxu0 %v1761
        %1801 = vmatpush1.msra.mxu0 %v1760
        %1802 = vmatprep.subr.mxu0 %v1763
        %1803 = vmatpush1.msra.mxu0 %v1762
        %1804 = vmatprep.subr.mxu0 %v1765
        %1805 = vmatpush1.msra.mxu0 %v1764
        %1806 = vmatprep.subr.mxu0 0.0
        %1807 = vmatpush1.msra.mxu0 0.0
        %1808 = vmatprep.subr.mxu0 0.0
        %1809 = vmatpush1.msra.mxu0 0.0
        %1810 = vmatprep.subr.mxu0 0.0
        %1811 = vmatpush1.msra.mxu0 0.0
        %1812 = vmatprep.subr.mxu0 0.0
        %1813 = vmatpush1.msra.mxu0 0.0
        %1814 = vmatprep.subr.mxu0 0.0
        %1815 = vmatpush1.msra.mxu0 0.0
        %1816 = vmatprep.subr.mxu0 0.0
        %1817 = vmatpush1.msra.mxu0 0.0
        %1818 = vmatprep.subr.mxu0 0.0
        %1819 = vmatpush1.msra.mxu0 0.0
        %1820 = vmatprep.subr.mxu0 0.0
        %1821 = vmatpush1.msra.mxu0 0.0
        %1822 = vmatprep.subr.mxu0 0.0
        %1823 = vmatpush1.msra.mxu0 0.0
        %1824 = vmatprep.subr.mxu0 0.0
        %1825 = vmatpush1.msra.mxu0 0.0
        %1826 = vmatprep.subr.mxu0 0.0
        %1827 = vmatpush1.msra.mxu0 0.0
        %1828 = vmatprep.subr.mxu0 0.0
        %1829 = vmatpush1.msra.mxu0 0.0
        %1830 = vmatprep.subr.mxu0 0.0
        %1831 = vmatpush1.msra.mxu0 0.0
        %1832 = vmatprep.subr.mxu0 0.0
        %1833 = vmatpush1.msra.mxu0 0.0
        %1834 = vmatprep.subr.mxu0 0.0
        %1835 = vmatpush1.msra.mxu0 0.0
        %1836 = vmatprep.subr.mxu0 0.0
        %1837 = vmatpush1.msra.mxu0 0.0
        %1838 = vmatprep.subr.mxu0 0.0
        %1839 = vmatpush1.msra.mxu0 0.0
        %1840 = vmatprep.subr.mxu0 0.0
        %1841 = vmatpush1.msra.mxu0 0.0
        %1842 = vmatprep.subr.mxu0 0.0
        %1843 = vmatpush1.msra.mxu0 0.0
        %1844 = vmatprep.subr.mxu0 0.0
        %1845 = vmatpush1.msra.mxu0 0.0
        %1846 = vmatprep.subr.mxu0 0.0
        %1847 = vmatpush1.msra.mxu0 0.0
        %1848 = vmatprep.subr.mxu0 0.0
        %1849 = vmatpush1.msra.mxu0 0.0
        %1850 = vmatprep.subr.mxu0 0.0
        %1851 = vmatpush1.msra.mxu0 0.0
        %1852 = vmatprep.subr.mxu0 0.0
        %1853 = vmatpush1.msra.mxu0 0.0
        %1854 = vmatprep.subr.mxu0 0.0
        %1855 = vmatpush1.msra.mxu0 0.0
        %1856 = vmatprep.subr.mxu0 0.0
        %1857 = vmatpush1.msra.mxu0 0.0
        %1858 = vmatprep.subr.mxu0 0.0
        %1859 = vmatpush1.msra.mxu0 0.0
        %1860 = vmatprep.subr.mxu0 0.0
        %1861 = vmatpush1.msra.mxu0 0.0
        %1862 = vmatprep.mubr.f32.mxu0 0.0
        %1863 = vmatmul.mubr.f32.gmra.mrb[0].mxu0 %v1787
        %v1864 = vpop.f32.mrb[0].mxu0
        %v1865 = vadd.f32 %v1769, %v1864
        %v1866 = vpop.f32.mrb[0].mxu0
        %v1867 = vadd.f32 %v1769, %v1866
        %1868 = vmatprep.mubr.f32.mxu0 0.0
        %1869 = vmatmul.mubr.f32.gmra.mrb[0].mxu0 %v1790
        %v1870 = vpop.f32.mrb[0].mxu0
        %v1871 = vadd.f32 %v1774, %v1870
        %v1872 = vpop.f32.mrb[0].mxu0
        %v1873 = vadd.f32 %v1774, %v1872
        %1874 = vmatprep.mubr.f32.mxu0 0.0
        %1875 = vmatmul.mubr.f32.gmra.mrb[0].mxu0 %v1793
        %v1876 = vpop.f32.mrb[0].mxu0
        %v1877 = vadd.f32 %v1779, %v1876
        %v1878 = vpop.f32.mrb[0].mxu0
        %v1879 = vadd.f32 %v1779, %v1878
        %1880 = vmatprep.mubr.f32.mxu0 0.0
        %1881 = vmatmul.mubr.f32.gmra.mrb[0].mxu0 %v1796
        %v1882 = vpop.f32.mrb[0].mxu0
        %v1883 = vadd.f32 %v1784, %v1882
        %v1884 = vpop.f32.mrb[0].mxu0
        %v1885 = vadd.f32 %v1784, %v1884
        %1886 = vdwg.mxu0
        %v1887 = vmax.f32 %v1865, 0.0
        %v1888 = vmax.f32 %v1867, 0.0
        %v1889 = vmax.f32 %v1871, 0.0
        %v1890 = vmax.f32 %v1873, 0.0
        %v1891 = vmax.f32 %v1877, 0.0
        %v1892 = vmax.f32 %v1879, 0.0
        %v1893 = vmax.f32 %v1883, 0.0
        %v1894 = vmax.f32 %v1885, 0.0
        %1896 = vset.pattern.permute.xlu0 0
        %1897 = vperm.xlu0 %1896, %v1615
        %v1898 = vpop.permute.xlu0 %1897
        %v1901 = vsel %vm508, %v1630, 0
        %1903 = vmatprep.subr.mxu0 %v1888
        %1904 = vmatpush1.msra.mxu0 %v1887
        %1905 = vmatprep.subr.mxu0 %v1890
        %1906 = vmatpush1.msra.mxu0 %v1889
        %1907 = vmatprep.subr.mxu0 %v1892
        %1908 = vmatpush1.msra.mxu0 %v1891
        %1909 = vmatprep.subr.mxu0 %v1894
        %1910 = vmatpush1.msra.mxu0 %v1893
        %1911 = vmatprep.subr.mxu0 0.0
        %1912 = vmatpush1.msra.mxu0 0.0
        %1913 = vmatprep.subr.mxu0 0.0
        %1914 = vmatpush1.msra.mxu0 0.0
        %1915 = vmatprep.subr.mxu0 0.0
        %1916 = vmatpush1.msra.mxu0 0.0
        %1917 = vmatprep.subr.mxu0 0.0
        %1918 = vmatpush1.msra.mxu0 0.0
        %1919 = vmatprep.subr.mxu0 0.0
        %1920 = vmatpush1.msra.mxu0 0.0
        %1921 = vmatprep.subr.mxu0 0.0
        %1922 = vmatpush1.msra.mxu0 0.0
        %1923 = vmatprep.subr.mxu0 0.0
        %1924 = vmatpush1.msra.mxu0 0.0
        %1925 = vmatprep.subr.mxu0 0.0
        %1926 = vmatpush1.msra.mxu0 0.0
        %1927 = vmatprep.subr.mxu0 0.0
        %1928 = vmatpush1.msra.mxu0 0.0
        %1929 = vmatprep.subr.mxu0 0.0
        %1930 = vmatpush1.msra.mxu0 0.0
        %1931 = vmatprep.subr.mxu0 0.0
        %1932 = vmatpush1.msra.mxu0 0.0
        %1933 = vmatprep.subr.mxu0 0.0
        %1934 = vmatpush1.msra.mxu0 0.0
        %1935 = vmatprep.subr.mxu0 0.0
        %1936 = vmatpush1.msra.mxu0 0.0
        %1937 = vmatprep.subr.mxu0 0.0
        %1938 = vmatpush1.msra.mxu0 0.0
        %1939 = vmatprep.subr.mxu0 0.0
        %1940 = vmatpush1.msra.mxu0 0.0
        %1941 = vmatprep.subr.mxu0 0.0
        %1942 = vmatpush1.msra.mxu0 0.0
        %1943 = vmatprep.subr.mxu0 0.0
        %1944 = vmatpush1.msra.mxu0 0.0
        %1945 = vmatprep.subr.mxu0 0.0
        %1946 = vmatpush1.msra.mxu0 0.0
        %1947 = vmatprep.subr.mxu0 0.0
        %1948 = vmatpush1.msra.mxu0 0.0
        %1949 = vmatprep.subr.mxu0 0.0
        %1950 = vmatpush1.msra.mxu0 0.0
        %1951 = vmatprep.subr.mxu0 0.0
        %1952 = vmatpush1.msra.mxu0 0.0
        %1953 = vmatprep.subr.mxu0 0.0
        %1954 = vmatpush1.msra.mxu0 0.0
        %1955 = vmatprep.subr.mxu0 0.0
        %1956 = vmatpush1.msra.mxu0 0.0
        %1957 = vmatprep.subr.mxu0 0.0
        %1958 = vmatpush1.msra.mxu0 0.0
        %1959 = vmatprep.subr.mxu0 0.0
        %1960 = vmatpush1.msra.mxu0 0.0
        %1961 = vmatprep.subr.mxu0 0.0
        %1962 = vmatpush1.msra.mxu0 0.0
        %1963 = vmatprep.subr.mxu0 0.0
        %1964 = vmatpush1.msra.mxu0 0.0
        %1965 = vmatprep.subr.mxu0 0.0
        %1966 = vmatpush1.msra.mxu0 0.0
        %1967 = vmatprep.mubr.f32.mxu0 0.0
        %1968 = vmatmul.mubr.f32.gmra.mrb[0].mxu0 %v1901
        %v1969 = vpop.f32.mrb[0].mxu0
        %v1970 = vadd.f32 %v1898, %v1969
        %v1971 = vpop.f32.mrb[0].mxu0
        %v1972 = vadd.f32 %v1898, %v1971
        %1973 = vdwg.mxu0
        %v1974 = vtanh.pop %v1970
        %v1975 = vtanh.pop %v1972
        %1977 = vset.pattern.permute.xlu0 0
        %1978 = vperm.xlu0 %1977, %v1616
        %v1979 = vpop.permute.xlu0 %1978
        %v1981 = vmul.f32 %v1979, %v1974
        %v1982 = vmul.f32 %v1979, %v1975
        %v1983 = vmul.f32 %v1981, 1.442695
        %v1984 = vpow.pop %v1983
        %v1985 = vmul.f32 %v1982, 1.442695
        %v1986 = vpow.pop %v1985
        %v1989 = vrot.slane %v1984, 4
        %v1990 = vrot.slane %v1986, 4
        %v1993 = vmul.f32 %v1604, %v1989
        %v1994 = vmul.f32 %v1605, %v1990
        %v1995 = vadd.f32 %v1993, %v1970
        %v1996 = vadd.f32 %v1994, %v1972
        %v1997 = vsel %vm386, %v1981, 0.0
        %v1998 = vrot.slane %v1997, 4
        %v1999 = vadd.f32 %v1997, %v1998
        %v2000 = vrot.slane %v1999, 2
        %v2001 = vadd.f32 %v1999, %v2000
        %v2002 = vrot.slane %v2001, 1
        %v2003 = vadd.f32 %v2001, %v2002
        %v2004 = vsel %vm386, %v1982, 0.0
        %v2005 = vrot.slane %v2004, 4
        %v2006 = vadd.f32 %v2004, %v2005
        %v2007 = vrot.slane %v2006, 2
        %v2008 = vadd.f32 %v2006, %v2007
        %v2009 = vrot.slane %v2008, 1
        %v2010 = vadd.f32 %v2008, %v2009
        %v2011 = vsub.f32 %v1586, %v2003
        %v2012 = vsub.f32 %v1587, %v2010
        %2014 = vset.pattern.permute.xlu0 0
        %2015 = vperm.xlu0 %2014, %v1617
        %v2016 = vpop.permute.xlu0 %2015
        %v2018 = vmul.f32 %v1600, %v2016
        %v2019 = vmul.f32 %v1601, %v2016
        %2021 = vset.pattern.permute.xlu0 0
        %2022 = vperm.xlu0 %2021, %v1618
        %v2023 = vpop.permute.xlu0 %2022
        %v2025 = vadd.f32 %v2018, %v2023
        %v2026 = vadd.f32 %v2019, %v2023
        %v2027 = vmul.f32 %v1995, %v2016
        %v2028 = vmul.f32 %v1996, %v2016
        %v2029 = vadd.f32 %v2027, %v2023
        %v2030 = vadd.f32 %v2028, %v2023
        %s2031 = scalar_lea.vmem %s4, 384
        %v2032 = vld [vmem:[%s2031] sm:$0xff]
        %v2033 = vld [vmem:[%s2031 + $0x8] sm:$0xff]
        %v2034 = vld [vmem:[%s2031 + $0x10] sm:$0xff]
        %v2035 = vld [vmem:[%s2031 + $0x18] sm:$0xff]
        %v2036 = vld [vmem:[%s2031 + $0x20] sm:$0xff]
        %v2037 = vld [vmem:[%s2031 + $0x28] sm:$0xff]
        %v2038 = vld [vmem:[%s2031 + $0x30] sm:$0xff]
        %v2039 = vld [vmem:[%s2031 + $0x38] sm:$0xff]
        %v2040 = vld [vmem:[%s2031 + $0x40] sm:$0xff]
        %v2041 = vld [vmem:[%s2031 + $0x48] sm:$0xff]
        %v2042 = vld [vmem:[%s2031 + $0x50] sm:$0xff]
        %v2043 = vld [vmem:[%s2031 + $0x58] sm:$0xff]
        %s2044 = scalar_lea.vmem %s1, 128
        %v2045 = vld [vmem:[%s2044] sm:$0xff]
        %v2046 = vld [vmem:[%s2044 + $0x8] sm:$0xff]
        %v2047 = vld [vmem:[%s2044 + $0x10] sm:$0xff]
        %v2048 = vld [vmem:[%s2044 + $0x18] sm:$0xff]
        %s2049 = scalar_lea.vmem %s2, 128
        %v2050 = vld [vmem:[%s2049] sm:$0xff]
        %v2051 = vld [vmem:[%s2049 + $0x8] sm:$0xff]
        %v2052 = vld [vmem:[%s2049 + $0x10] sm:$0xff]
        %v2053 = vld [vmem:[%s2049 + $0x18] sm:$0xff]
        %s2054 = scalar_lea.vmem %s3, 32
        %v2055 = vld [vmem:[%s2054] sm:$0xff]
        %2057 = vset.pattern.permute.xlu0 0
        %2058 = vperm.xlu0 %2057, %v2032
        %v2059 = vpop.permute.xlu0 %2058
        %2062 = vset.pattern.permute.xlu0 0
        %2063 = vperm.xlu0 %2062, %v2033
        %v2064 = vpop.permute.xlu0 %2063
        %2067 = vset.pattern.permute.xlu0 0
        %2068 = vperm.xlu0 %2067, %v2034
        %v2069 = vpop.permute.xlu0 %2068
        %2072 = vset.pattern.permute.xlu0 0
        %2073 = vperm.xlu0 %2072, %v2035
        %v2074 = vpop.permute.xlu0 %2073
        %v2078 = vrot.slane %v2029, 4
        %v2079 = vrot.slane %v2030, 4
        %v2081 = vsel %vm373, %v2045, 0
        %v2084 = vsel %vm373, %v2046, 0
        %v2087 = vsel %vm373, %v2047, 0
        %v2090 = vsel %vm373, %v2048, 0
        %v2092 = vsel %vm386, %v2078, 0
        %v2094 = vsel %vm386, %v2079, 0
        %2096 = vmatprep.subr.mxu0 %v2094
        %2097 = vmatpush1.msra.mxu0 %v2092
        %2098 = vmatprep.subr.mxu0 0.0
        %2099 = vmatpush1.msra.mxu0 0.0
        %2100 = vmatprep.subr.mxu0 0.0
        %2101 = vmatpush1.msra.mxu0 0.0
        %2102 = vmatprep.subr.mxu0 0.0
        %2103 = vmatpush1.msra.mxu0 0.0
        %2104 = vmatprep.subr.mxu0 0.0
        %2105 = vmatpush1.msra.mxu0 0.0
        %2106 = vmatprep.subr.mxu0 0.0
        %2107 = vmatpush1.msra.mxu0 0.0
        %2108 = vmatprep.subr.mxu0 0.0
        %2109 = vmatpush1.msra.mxu0 0.0
        %2110 = vmatprep.subr.mxu0 0.0
        %2111 = vmatpush1.msra.mxu0 0.0
        %2112 = vmatprep.subr.mxu0 0.0
        %2113 = vmatpush1.msra.mxu0 0.0
        %2114 = vmatprep.subr.mxu0 0.0
        %2115 = vmatpush1.msra.mxu0 0.0
        %2116 = vmatprep.subr.mxu0 0.0
        %2117 = vmatpush1.msra.mxu0 0.0
        %2118 = vmatprep.subr.mxu0 0.0
        %2119 = vmatpush1.msra.mxu0 0.0
        %2120 = vmatprep.subr.mxu0 0.0
        %2121 = vmatpush1.msra.mxu0 0.0
        %2122 = vmatprep.subr.mxu0 0.0
        %2123 = vmatpush1.msra.mxu0 0.0
        %2124 = vmatprep.subr.mxu0 0.0
        %2125 = vmatpush1.msra.mxu0 0.0
        %2126 = vmatprep.subr.mxu0 0.0
        %2127 = vmatpush1.msra.mxu0 0.0
        %2128 = vmatprep.subr.mxu0 0.0
        %2129 = vmatpush1.msra.mxu0 0.0
        %2130 = vmatprep.subr.mxu0 0.0
        %2131 = vmatpush1.msra.mxu0 0.0
        %2132 = vmatprep.subr.mxu0 0.0
        %2133 = vmatpush1.msra.mxu0 0.0
        %2134 = vmatprep.subr.mxu0 0.0
        %2135 = vmatpush1.msra.mxu0 0.0
        %2136 = vmatprep.subr.mxu0 0.0
        %2137 = vmatpush1.msra.mxu0 0.0
        %2138 = vmatprep.subr.mxu0 0.0
        %2139 = vmatpush1.msra.mxu0 0.0
        %2140 = vmatprep.subr.mxu0 0.0
        %2141 = vmatpush1.msra.mxu0 0.0
        %2142 = vmatprep.subr.mxu0 0.0
        %2143 = vmatpush1.msra.mxu0 0.0
        %2144 = vmatprep.subr.mxu0 0.0
        %2145 = vmatpush1.msra.mxu0 0.0
        %2146 = vmatprep.subr.mxu0 0.0
        %2147 = vmatpush1.msra.mxu0 0.0
        %2148 = vmatprep.subr.mxu0 0.0
        %2149 = vmatpush1.msra.mxu0 0.0
        %2150 = vmatprep.subr.mxu0 0.0
        %2151 = vmatpush1.msra.mxu0 0.0
        %2152 = vmatprep.subr.mxu0 0.0
        %2153 = vmatpush1.msra.mxu0 0.0
        %2154 = vmatprep.subr.mxu0 0.0
        %2155 = vmatpush1.msra.mxu0 0.0
        %2156 = vmatprep.subr.mxu0 0.0
        %2157 = vmatpush1.msra.mxu0 0.0
        %2158 = vmatprep.subr.mxu0 0.0
        %2159 = vmatpush1.msra.mxu0 0.0
        %2160 = vmatprep.mubr.f32.mxu0 0.0
        %2161 = vmatmul.mubr.f32.gmra.mrb[0].mxu0 %v2081
        %v2162 = vpop.f32.mrb[0].mxu0
        %v2163 = vadd.f32 %v2059, %v2162
        %v2164 = vpop.f32.mrb[0].mxu0
        %v2165 = vadd.f32 %v2059, %v2164
        %2166 = vmatprep.mubr.f32.mxu0 0.0
        %2167 = vmatmul.mubr.f32.gmra.mrb[0].mxu0 %v2084
        %v2168 = vpop.f32.mrb[0].mxu0
        %v2169 = vadd.f32 %v2064, %v2168
        %v2170 = vpop.f32.mrb[0].mxu0
        %v2171 = vadd.f32 %v2064, %v2170
        %2172 = vmatprep.mubr.f32.mxu0 0.0
        %2173 = vmatmul.mubr.f32.gmra.mrb[0].mxu0 %v2087
        %v2174 = vpop.f32.mrb[0].mxu0
        %v2175 = vadd.f32 %v2069, %v2174
        %v2176 = vpop.f32.mrb[0].mxu0
        %v2177 = vadd.f32 %v2069, %v2176
        %2178 = vmatprep.mubr.f32.mxu0 0.0
        %2179 = vmatmul.mubr.f32.gmra.mrb[0].mxu0 %v2090
        %v2180 = vpop.f32.mrb[0].mxu0
        %v2181 = vadd.f32 %v2074, %v2180
        %v2182 = vpop.f32.mrb[0].mxu0
        %v2183 = vadd.f32 %v2074, %v2182
        %2184 = vdwg.mxu0
        %v2185 = vmax.f32 %v2163, 0.0
        %v2186 = vmax.f32 %v2165, 0.0
        %v2187 = vmax.f32 %v2169, 0.0
        %v2188 = vmax.f32 %v2171, 0.0
        %v2189 = vmax.f32 %v2175, 0.0
        %v2190 = vmax.f32 %v2177, 0.0
        %v2191 = vmax.f32 %v2181, 0.0
        %v2192 = vmax.f32 %v2183, 0.0
        %2194 = vset.pattern.permute.xlu0 0
        %2195 = vperm.xlu0 %2194, %v2036
        %v2196 = vpop.permute.xlu0 %2195
        %2199 = vset.pattern.permute.xlu0 0
        %2200 = vperm.xlu0 %2199, %v2037
        %v2201 = vpop.permute.xlu0 %2200
        %2204 = vset.pattern.permute.xlu0 0
        %2205 = vperm.xlu0 %2204, %v2038
        %v2206 = vpop.permute.xlu0 %2205
        %2209 = vset.pattern.permute.xlu0 0
        %2210 = vperm.xlu0 %2209, %v2039
        %v2211 = vpop.permute.xlu0 %2210
        %v2214 = vsel %vm508, %v2050, 0
        %v2217 = vsel %vm508, %v2051, 0
        %v2220 = vsel %vm508, %v2052, 0
        %v2223 = vsel %vm508, %v2053, 0
        %2225 = vmatprep.subr.mxu0 %v2186
        %2226 = vmatpush1.msra.mxu0 %v2185
        %2227 = vmatprep.subr.mxu0 %v2188
        %2228 = vmatpush1.msra.mxu0 %v2187
        %2229 = vmatprep.subr.mxu0 %v2190
        %2230 = vmatpush1.msra.mxu0 %v2189
        %2231 = vmatprep.subr.mxu0 %v2192
        %2232 = vmatpush1.msra.mxu0 %v2191
        %2233 = vmatprep.subr.mxu0 0.0
        %2234 = vmatpush1.msra.mxu0 0.0
        %2235 = vmatprep.subr.mxu0 0.0
        %2236 = vmatpush1.msra.mxu0 0.0
        %2237 = vmatprep.subr.mxu0 0.0
        %2238 = vmatpush1.msra.mxu0 0.0
        %2239 = vmatprep.subr.mxu0 0.0
        %2240 = vmatpush1.msra.mxu0 0.0
        %2241 = vmatprep.subr.mxu0 0.0
        %2242 = vmatpush1.msra.mxu0 0.0
        %2243 = vmatprep.subr.mxu0 0.0
        %2244 = vmatpush1.msra.mxu0 0.0
        %2245 = vmatprep.subr.mxu0 0.0
        %2246 = vmatpush1.msra.mxu0 0.0
        %2247 = vmatprep.subr.mxu0 0.0
        %2248 = vmatpush1.msra.mxu0 0.0
        %2249 = vmatprep.subr.mxu0 0.0
        %2250 = vmatpush1.msra.mxu0 0.0
        %2251 = vmatprep.subr.mxu0 0.0
        %2252 = vmatpush1.msra.mxu0 0.0
        %2253 = vmatprep.subr.mxu0 0.0
        %2254 = vmatpush1.msra.mxu0 0.0
        %2255 = vmatprep.subr.mxu0 0.0
        %2256 = vmatpush1.msra.mxu0 0.0
        %2257 = vmatprep.subr.mxu0 0.0
        %2258 = vmatpush1.msra.mxu0 0.0
        %2259 = vmatprep.subr.mxu0 0.0
        %2260 = vmatpush1.msra.mxu0 0.0
        %2261 = vmatprep.subr.mxu0 0.0
        %2262 = vmatpush1.msra.mxu0 0.0
        %2263 = vmatprep.subr.mxu0 0.0
        %2264 = vmatpush1.msra.mxu0 0.0
        %2265 = vmatprep.subr.mxu0 0.0
        %2266 = vmatpush1.msra.mxu0 0.0
        %2267 = vmatprep.subr.mxu0 0.0
        %2268 = vmatpush1.msra.mxu0 0.0
        %2269 = vmatprep.subr.mxu0 0.0
        %2270 = vmatpush1.msra.mxu0 0.0
        %2271 = vmatprep.subr.mxu0 0.0
        %2272 = vmatpush1.msra.mxu0 0.0
        %2273 = vmatprep.subr.mxu0 0.0
        %2274 = vmatpush1.msra.mxu0 0.0
        %2275 = vmatprep.subr.mxu0 0.0
        %2276 = vmatpush1.msra.mxu0 0.0
        %2277 = vmatprep.subr.mxu0 0.0
        %2278 = vmatpush1.msra.mxu0 0.0
        %2279 = vmatprep.subr.mxu0 0.0
        %2280 = vmatpush1.msra.mxu0 0.0
        %2281 = vmatprep.subr.mxu0 0.0
        %2282 = vmatpush1.msra.mxu0 0.0
        %2283 = vmatprep.subr.mxu0 0.0
        %2284 = vmatpush1.msra.mxu0 0.0
        %2285 = vmatprep.subr.mxu0 0.0
        %2286 = vmatpush1.msra.mxu0 0.0
        %2287 = vmatprep.subr.mxu0 0.0
        %2288 = vmatpush1.msra.mxu0 0.0
        %2289 = vmatprep.mubr.f32.mxu0 0.0
        %2290 = vmatmul.mubr.f32.gmra.mrb[0].mxu0 %v2214
        %v2291 = vpop.f32.mrb[0].mxu0
        %v2292 = vadd.f32 %v2196, %v2291
        %v2293 = vpop.f32.mrb[0].mxu0
        %v2294 = vadd.f32 %v2196, %v2293
        %2295 = vmatprep.mubr.f32.mxu0 0.0
        %2296 = vmatmul.mubr.f32.gmra.mrb[0].mxu0 %v2217
        %v2297 = vpop.f32.mrb[0].mxu0
        %v2298 = vadd.f32 %v2201, %v2297
        %v2299 = vpop.f32.mrb[0].mxu0
        %v2300 = vadd.f32 %v2201, %v2299
        %2301 = vmatprep.mubr.f32.mxu0 0.0
        %2302 = vmatmul.mubr.f32.gmra.mrb[0].mxu0 %v2220
        %v2303 = vpop.f32.mrb[0].mxu0
        %v2304 = vadd.f32 %v2206, %v2303
        %v2305 = vpop.f32.mrb[0].mxu0
        %v2306 = vadd.f32 %v2206, %v2305
        %2307 = vmatprep.mubr.f32.mxu0 0.0
        %2308 = vmatmul.mubr.f32.gmra.mrb[0].mxu0 %v2223
        %v2309 = vpop.f32.mrb[0].mxu0
        %v2310 = vadd.f32 %v2211, %v2309
        %v2311 = vpop.f32.mrb[0].mxu0
        %v2312 = vadd.f32 %v2211, %v2311
        %2313 = vdwg.mxu0
        %v2314 = vmax.f32 %v2292, 0.0
        %v2315 = vmax.f32 %v2294, 0.0
        %v2316 = vmax.f32 %v2298, 0.0
        %v2317 = vmax.f32 %v2300, 0.0
        %v2318 = vmax.f32 %v2304, 0.0
        %v2319 = vmax.f32 %v2306, 0.0
        %v2320 = vmax.f32 %v2310, 0.0
        %v2321 = vmax.f32 %v2312, 0.0
        %2323 = vset.pattern.permute.xlu0 0
        %2324 = vperm.xlu0 %2323, %v2040
        %v2325 = vpop.permute.xlu0 %2324
        %v2328 = vsel %vm508, %v2055, 0
        %2330 = vmatprep.subr.mxu0 %v2315
        %2331 = vmatpush1.msra.mxu0 %v2314
        %2332 = vmatprep.subr.mxu0 %v2317
        %2333 = vmatpush1.msra.mxu0 %v2316
        %2334 = vmatprep.subr.mxu0 %v2319
        %2335 = vmatpush1.msra.mxu0 %v2318
        %2336 = vmatprep.subr.mxu0 %v2321
        %2337 = vmatpush1.msra.mxu0 %v2320
        %2338 = vmatprep.subr.mxu0 0.0
        %2339 = vmatpush1.msra.mxu0 0.0
        %2340 = vmatprep.subr.mxu0 0.0
        %2341 = vmatpush1.msra.mxu0 0.0
        %2342 = vmatprep.subr.mxu0 0.0
        %2343 = vmatpush1.msra.mxu0 0.0
        %2344 = vmatprep.subr.mxu0 0.0
        %2345 = vmatpush1.msra.mxu0 0.0
        %2346 = vmatprep.subr.mxu0 0.0
        %2347 = vmatpush1.msra.mxu0 0.0
        %2348 = vmatprep.subr.mxu0 0.0
        %2349 = vmatpush1.msra.mxu0 0.0
        %2350 = vmatprep.subr.mxu0 0.0
        %2351 = vmatpush1.msra.mxu0 0.0
        %2352 = vmatprep.subr.mxu0 0.0
        %2353 = vmatpush1.msra.mxu0 0.0
        %2354 = vmatprep.subr.mxu0 0.0
        %2355 = vmatpush1.msra.mxu0 0.0
        %2356 = vmatprep.subr.mxu0 0.0
        %2357 = vmatpush1.msra.mxu0 0.0
        %2358 = vmatprep.subr.mxu0 0.0
        %2359 = vmatpush1.msra.mxu0 0.0
        %2360 = vmatprep.subr.mxu0 0.0
        %2361 = vmatpush1.msra.mxu0 0.0
        %2362 = vmatprep.subr.mxu0 0.0
        %2363 = vmatpush1.msra.mxu0 0.0
        %2364 = vmatprep.subr.mxu0 0.0
        %2365 = vmatpush1.msra.mxu0 0.0
        %2366 = vmatprep.subr.mxu0 0.0
        %2367 = vmatpush1.msra.mxu0 0.0
        %2368 = vmatprep.subr.mxu0 0.0
        %2369 = vmatpush1.msra.mxu0 0.0
        %2370 = vmatprep.subr.mxu0 0.0
        %2371 = vmatpush1.msra.mxu0 0.0
        %2372 = vmatprep.subr.mxu0 0.0
        %2373 = vmatpush1.msra.mxu0 0.0
        %2374 = vmatprep.subr.mxu0 0.0
        %2375 = vmatpush1.msra.mxu0 0.0
        %2376 = vmatprep.subr.mxu0 0.0
        %2377 = vmatpush1.msra.mxu0 0.0
        %2378 = vmatprep.subr.mxu0 0.0
        %2379 = vmatpush1.msra.mxu0 0.0
        %2380 = vmatprep.subr.mxu0 0.0
        %2381 = vmatpush1.msra.mxu0 0.0
        %2382 = vmatprep.subr.mxu0 0.0
        %2383 = vmatpush1.msra.mxu0 0.0
        %2384 = vmatprep.subr.mxu0 0.0
        %2385 = vmatpush1.msra.mxu0 0.0
        %2386 = vmatprep.subr.mxu0 0.0
        %2387 = vmatpush1.msra.mxu0 0.0
        %2388 = vmatprep.subr.mxu0 0.0
        %2389 = vmatpush1.msra.mxu0 0.0
        %2390 = vmatprep.subr.mxu0 0.0
        %2391 = vmatpush1.msra.mxu0 0.0
        %2392 = vmatprep.subr.mxu0 0.0
        %2393 = vmatpush1.msra.mxu0 0.0
        %2394 = vmatprep.mubr.f32.mxu0 0.0
        %2395 = vmatmul.mubr.f32.gmra.mrb[0].mxu0 %v2328
        %v2396 = vpop.f32.mrb[0].mxu0
        %v2397 = vadd.f32 %v2325, %v2396
        %v2398 = vpop.f32.mrb[0].mxu0
        %v2399 = vadd.f32 %v2325, %v2398
        %2400 = vdwg.mxu0
        %v2401 = vtanh.pop %v2397
        %v2402 = vtanh.pop %v2399
        %2404 = vset.pattern.permute.xlu0 0
        %2405 = vperm.xlu0 %2404, %v2041
        %v2406 = vpop.permute.xlu0 %2405
        %v2408 = vmul.f32 %v2406, %v2401
        %v2409 = vmul.f32 %v2406, %v2402
        %v2410 = vmul.f32 %v2408, 1.442695
        %v2411 = vpow.pop %v2410
        %v2412 = vmul.f32 %v2409, 1.442695
        %v2413 = vpow.pop %v2412
        %v2414 = vmul.f32 %v2025, %v2411
        %v2415 = vmul.f32 %v2026, %v2413
        %v2418 = vrot.slane %v2397, 4
        %v2419 = vrot.slane %v2399, 4
        %v2422 = vadd.f32 %v2414, %v2418
        %v2423 = vadd.f32 %v2415, %v2419
        %v2424 = vsel %vm386, %v2408, 0.0
        %v2425 = vrot.slane %v2424, 4
        %v2426 = vadd.f32 %v2424, %v2425
        %v2427 = vrot.slane %v2426, 2
        %v2428 = vadd.f32 %v2426, %v2427
        %v2429 = vrot.slane %v2428, 1
        %v2430 = vadd.f32 %v2428, %v2429
        %v2431 = vsel %vm386, %v2409, 0.0
        %v2432 = vrot.slane %v2431, 4
        %v2433 = vadd.f32 %v2431, %v2432
        %v2434 = vrot.slane %v2433, 2
        %v2435 = vadd.f32 %v2433, %v2434
        %v2436 = vrot.slane %v2435, 1
        %v2437 = vadd.f32 %v2435, %v2436
        %v2438 = vsub.f32 %v2011, %v2430
        %v2439 = vsub.f32 %v2012, %v2437
        %2441 = vset.pattern.permute.xlu0 0
        %2442 = vperm.xlu0 %2441, %v2042
        %v2443 = vpop.permute.xlu0 %2442
        %v2445 = vmul.f32 %v2422, %v2443
        %v2446 = vmul.f32 %v2423, %v2443
        %2448 = vset.pattern.permute.xlu0 0
        %2449 = vperm.xlu0 %2448, %v2043
        %v2450 = vpop.permute.xlu0 %2449
        %v2452 = vadd.f32 %v2445, %v2450
        %v2453 = vadd.f32 %v2446, %v2450
        %v2454 = vmul.f32 %v2029, %v2443
        %v2455 = vmul.f32 %v2030, %v2443
        %v2456 = vadd.f32 %v2454, %v2450
        %v2457 = vadd.f32 %v2455, %v2450
        %s2458 = scalar_lea.vmem %s4, 480
        %v2459 = vld [vmem:[%s2458] sm:$0xff]
        %v2460 = vld [vmem:[%s2458 + $0x8] sm:$0xff]
        %v2461 = vld [vmem:[%s2458 + $0x10] sm:$0xff]
        %v2462 = vld [vmem:[%s2458 + $0x18] sm:$0xff]
        %v2463 = vld [vmem:[%s2458 + $0x20] sm:$0xff]
        %v2464 = vld [vmem:[%s2458 + $0x28] sm:$0xff]
        %v2465 = vld [vmem:[%s2458 + $0x30] sm:$0xff]
        %v2466 = vld [vmem:[%s2458 + $0x38] sm:$0xff]
        %v2467 = vld [vmem:[%s2458 + $0x40] sm:$0xff]
        %v2468 = vld [vmem:[%s2458 + $0x48] sm:$0xff]
        %v2469 = vld [vmem:[%s2458 + $0x50] sm:$0xff]
        %v2470 = vld [vmem:[%s2458 + $0x58] sm:$0xff]
        %s2471 = scalar_lea.vmem %s1, 160
        %v2472 = vld [vmem:[%s2471] sm:$0xff]
        %v2473 = vld [vmem:[%s2471 + $0x8] sm:$0xff]
        %v2474 = vld [vmem:[%s2471 + $0x10] sm:$0xff]
        %v2475 = vld [vmem:[%s2471 + $0x18] sm:$0xff]
        %s2476 = scalar_lea.vmem %s2, 160
        %v2477 = vld [vmem:[%s2476] sm:$0xff]
        %v2478 = vld [vmem:[%s2476 + $0x8] sm:$0xff]
        %v2479 = vld [vmem:[%s2476 + $0x10] sm:$0xff]
        %v2480 = vld [vmem:[%s2476 + $0x18] sm:$0xff]
        %s2481 = scalar_lea.vmem %s3, 40
        %v2482 = vld [vmem:[%s2481] sm:$0xff]
        %2484 = vset.pattern.permute.xlu0 0
        %2485 = vperm.xlu0 %2484, %v2459
        %v2486 = vpop.permute.xlu0 %2485
        %2489 = vset.pattern.permute.xlu0 0
        %2490 = vperm.xlu0 %2489, %v2460
        %v2491 = vpop.permute.xlu0 %2490
        %2494 = vset.pattern.permute.xlu0 0
        %2495 = vperm.xlu0 %2494, %v2461
        %v2496 = vpop.permute.xlu0 %2495
        %2499 = vset.pattern.permute.xlu0 0
        %2500 = vperm.xlu0 %2499, %v2462
        %v2501 = vpop.permute.xlu0 %2500
        %v2504 = vsel %vm373, %v2472, 0
        %v2507 = vsel %vm373, %v2473, 0
        %v2510 = vsel %vm373, %v2474, 0
        %v2513 = vsel %vm373, %v2475, 0
        %v2516 = vsel %vm386, %v2452, 0
        %v2519 = vsel %vm386, %v2453, 0
        %2521 = vmatprep.subr.mxu0 %v2519
        %2522 = vmatpush1.msra.mxu0 %v2516
        %2523 = vmatprep.subr.mxu0 0.0
        %2524 = vmatpush1.msra.mxu0 0.0
        %2525 = vmatprep.subr.mxu0 0.0
        %2526 = vmatpush1.msra.mxu0 0.0
        %2527 = vmatprep.subr.mxu0 0.0
        %2528 = vmatpush1.msra.mxu0 0.0
        %2529 = vmatprep.subr.mxu0 0.0
        %2530 = vmatpush1.msra.mxu0 0.0
        %2531 = vmatprep.subr.mxu0 0.0
        %2532 = vmatpush1.msra.mxu0 0.0
        %2533 = vmatprep.subr.mxu0 0.0
        %2534 = vmatpush1.msra.mxu0 0.0
        %2535 = vmatprep.subr.mxu0 0.0
        %2536 = vmatpush1.msra.mxu0 0.0
        %2537 = vmatprep.subr.mxu0 0.0
        %2538 = vmatpush1.msra.mxu0 0.0
        %2539 = vmatprep.subr.mxu0 0.0
        %2540 = vmatpush1.msra.mxu0 0.0
        %2541 = vmatprep.subr.mxu0 0.0
        %2542 = vmatpush1.msra.mxu0 0.0
        %2543 = vmatprep.subr.mxu0 0.0
        %2544 = vmatpush1.msra.mxu0 0.0
        %2545 = vmatprep.subr.mxu0 0.0
        %2546 = vmatpush1.msra.mxu0 0.0
        %2547 = vmatprep.subr.mxu0 0.0
        %2548 = vmatpush1.msra.mxu0 0.0
        %2549 = vmatprep.subr.mxu0 0.0
        %2550 = vmatpush1.msra.mxu0 0.0
        %2551 = vmatprep.subr.mxu0 0.0
        %2552 = vmatpush1.msra.mxu0 0.0
        %2553 = vmatprep.subr.mxu0 0.0
        %2554 = vmatpush1.msra.mxu0 0.0
        %2555 = vmatprep.subr.mxu0 0.0
        %2556 = vmatpush1.msra.mxu0 0.0
        %2557 = vmatprep.subr.mxu0 0.0
        %2558 = vmatpush1.msra.mxu0 0.0
        %2559 = vmatprep.subr.mxu0 0.0
        %2560 = vmatpush1.msra.mxu0 0.0
        %2561 = vmatprep.subr.mxu0 0.0
        %2562 = vmatpush1.msra.mxu0 0.0
        %2563 = vmatprep.subr.mxu0 0.0
        %2564 = vmatpush1.msra.mxu0 0.0
        %2565 = vmatprep.subr.mxu0 0.0
        %2566 = vmatpush1.msra.mxu0 0.0
        %2567 = vmatprep.subr.mxu0 0.0
        %2568 = vmatpush1.msra.mxu0 0.0
        %2569 = vmatprep.subr.mxu0 0.0
        %2570 = vmatpush1.msra.mxu0 0.0
        %2571 = vmatprep.subr.mxu0 0.0
        %2572 = vmatpush1.msra.mxu0 0.0
        %2573 = vmatprep.subr.mxu0 0.0
        %2574 = vmatpush1.msra.mxu0 0.0
        %2575 = vmatprep.subr.mxu0 0.0
        %2576 = vmatpush1.msra.mxu0 0.0
        %2577 = vmatprep.subr.mxu0 0.0
        %2578 = vmatpush1.msra.mxu0 0.0
        %2579 = vmatprep.subr.mxu0 0.0
        %2580 = vmatpush1.msra.mxu0 0.0
        %2581 = vmatprep.subr.mxu0 0.0
        %2582 = vmatpush1.msra.mxu0 0.0
        %2583 = vmatprep.subr.mxu0 0.0
        %2584 = vmatpush1.msra.mxu0 0.0
        %2585 = vmatprep.mubr.f32.mxu0 0.0
        %2586 = vmatmul.mubr.f32.gmra.mrb[0].mxu0 %v2504
        %v2587 = vpop.f32.mrb[0].mxu0
        %v2588 = vadd.f32 %v2486, %v2587
        %v2589 = vpop.f32.mrb[0].mxu0
        %v2590 = vadd.f32 %v2486, %v2589
        %2591 = vmatprep.mubr.f32.mxu0 0.0
        %2592 = vmatmul.mubr.f32.gmra.mrb[0].mxu0 %v2507
        %v2593 = vpop.f32.mrb[0].mxu0
        %v2594 = vadd.f32 %v2491, %v2593
        %v2595 = vpop.f32.mrb[0].mxu0
        %v2596 = vadd.f32 %v2491, %v2595
        %2597 = vmatprep.mubr.f32.mxu0 0.0
        %2598 = vmatmul.mubr.f32.gmra.mrb[0].mxu0 %v2510
        %v2599 = vpop.f32.mrb[0].mxu0
        %v2600 = vadd.f32 %v2496, %v2599
        %v2601 = vpop.f32.mrb[0].mxu0
        %v2602 = vadd.f32 %v2496, %v2601
        %2603 = vmatprep.mubr.f32.mxu0 0.0
        %2604 = vmatmul.mubr.f32.gmra.mrb[0].mxu0 %v2513
        %v2605 = vpop.f32.mrb[0].mxu0
        %v2606 = vadd.f32 %v2501, %v2605
        %v2607 = vpop.f32.mrb[0].mxu0
        %v2608 = vadd.f32 %v2501, %v2607
        %2609 = vdwg.mxu0
        %v2610 = vmax.f32 %v2588, 0.0
        %v2611 = vmax.f32 %v2590, 0.0
        %v2612 = vmax.f32 %v2594, 0.0
        %v2613 = vmax.f32 %v2596, 0.0
        %v2614 = vmax.f32 %v2600, 0.0
        %v2615 = vmax.f32 %v2602, 0.0
        %v2616 = vmax.f32 %v2606, 0.0
        %v2617 = vmax.f32 %v2608, 0.0
        %2619 = vset.pattern.permute.xlu0 0
        %2620 = vperm.xlu0 %2619, %v2463
        %v2621 = vpop.permute.xlu0 %2620
        %2624 = vset.pattern.permute.xlu0 0
        %2625 = vperm.xlu0 %2624, %v2464
        %v2626 = vpop.permute.xlu0 %2625
        %2629 = vset.pattern.permute.xlu0 0
        %2630 = vperm.xlu0 %2629, %v2465
        %v2631 = vpop.permute.xlu0 %2630
        %2634 = vset.pattern.permute.xlu0 0
        %2635 = vperm.xlu0 %2634, %v2466
        %v2636 = vpop.permute.xlu0 %2635
        %v2639 = vsel %vm508, %v2477, 0
        %v2642 = vsel %vm508, %v2478, 0
        %v2645 = vsel %vm508, %v2479, 0
        %v2648 = vsel %vm508, %v2480, 0
        %2650 = vmatprep.subr.mxu0 %v2611
        %2651 = vmatpush1.msra.mxu0 %v2610
        %2652 = vmatprep.subr.mxu0 %v2613
        %2653 = vmatpush1.msra.mxu0 %v2612
        %2654 = vmatprep.subr.mxu0 %v2615
        %2655 = vmatpush1.msra.mxu0 %v2614
        %2656 = vmatprep.subr.mxu0 %v2617
        %2657 = vmatpush1.msra.mxu0 %v2616
        %2658 = vmatprep.subr.mxu0 0.0
        %2659 = vmatpush1.msra.mxu0 0.0
        %2660 = vmatprep.subr.mxu0 0.0
        %2661 = vmatpush1.msra.mxu0 0.0
        %2662 = vmatprep.subr.mxu0 0.0
        %2663 = vmatpush1.msra.mxu0 0.0
        %2664 = vmatprep.subr.mxu0 0.0
        %2665 = vmatpush1.msra.mxu0 0.0
        %2666 = vmatprep.subr.mxu0 0.0
        %2667 = vmatpush1.msra.mxu0 0.0
        %2668 = vmatprep.subr.mxu0 0.0
        %2669 = vmatpush1.msra.mxu0 0.0
        %2670 = vmatprep.subr.mxu0 0.0
        %2671 = vmatpush1.msra.mxu0 0.0
        %2672 = vmatprep.subr.mxu0 0.0
        %2673 = vmatpush1.msra.mxu0 0.0
        %2674 = vmatprep.subr.mxu0 0.0
        %2675 = vmatpush1.msra.mxu0 0.0
        %2676 = vmatprep.subr.mxu0 0.0
        %2677 = vmatpush1.msra.mxu0 0.0
        %2678 = vmatprep.subr.mxu0 0.0
        %2679 = vmatpush1.msra.mxu0 0.0
        %2680 = vmatprep.subr.mxu0 0.0
        %2681 = vmatpush1.msra.mxu0 0.0
        %2682 = vmatprep.subr.mxu0 0.0
        %2683 = vmatpush1.msra.mxu0 0.0
        %2684 = vmatprep.subr.mxu0 0.0
        %2685 = vmatpush1.msra.mxu0 0.0
        %2686 = vmatprep.subr.mxu0 0.0
        %2687 = vmatpush1.msra.mxu0 0.0
        %2688 = vmatprep.subr.mxu0 0.0
        %2689 = vmatpush1.msra.mxu0 0.0
        %2690 = vmatprep.subr.mxu0 0.0
        %2691 = vmatpush1.msra.mxu0 0.0
        %2692 = vmatprep.subr.mxu0 0.0
        %2693 = vmatpush1.msra.mxu0 0.0
        %2694 = vmatprep.subr.mxu0 0.0
        %2695 = vmatpush1.msra.mxu0 0.0
        %2696 = vmatprep.subr.mxu0 0.0
        %2697 = vmatpush1.msra.mxu0 0.0
        %2698 = vmatprep.subr.mxu0 0.0
        %2699 = vmatpush1.msra.mxu0 0.0
        %2700 = vmatprep.subr.mxu0 0.0
        %2701 = vmatpush1.msra.mxu0 0.0
        %2702 = vmatprep.subr.mxu0 0.0
        %2703 = vmatpush1.msra.mxu0 0.0
        %2704 = vmatprep.subr.mxu0 0.0
        %2705 = vmatpush1.msra.mxu0 0.0
        %2706 = vmatprep.subr.mxu0 0.0
        %2707 = vmatpush1.msra.mxu0 0.0
        %2708 = vmatprep.subr.mxu0 0.0
        %2709 = vmatpush1.msra.mxu0 0.0
        %2710 = vmatprep.subr.mxu0 0.0
        %2711 = vmatpush1.msra.mxu0 0.0
        %2712 = vmatprep.subr.mxu0 0.0
        %2713 = vmatpush1.msra.mxu0 0.0
        %2714 = vmatprep.mubr.f32.mxu0 0.0
        %2715 = vmatmul.mubr.f32.gmra.mrb[0].mxu0 %v2639
        %v2716 = vpop.f32.mrb[0].mxu0
        %v2717 = vadd.f32 %v2621, %v2716
        %v2718 = vpop.f32.mrb[0].mxu0
        %v2719 = vadd.f32 %v2621, %v2718
        %2720 = vmatprep.mubr.f32.mxu0 0.0
        %2721 = vmatmul.mubr.f32.gmra.mrb[0].mxu0 %v2642
        %v2722 = vpop.f32.mrb[0].mxu0
        %v2723 = vadd.f32 %v2626, %v2722
        %v2724 = vpop.f32.mrb[0].mxu0
        %v2725 = vadd.f32 %v2626, %v2724
        %2726 = vmatprep.mubr.f32.mxu0 0.0
        %2727 = vmatmul.mubr.f32.gmra.mrb[0].mxu0 %v2645
        %v2728 = vpop.f32.mrb[0].mxu0
        %v2729 = vadd.f32 %v2631, %v2728
        %v2730 = vpop.f32.mrb[0].mxu0
        %v2731 = vadd.f32 %v2631, %v2730
        %2732 = vmatprep.mubr.f32.mxu0 0.0
        %2733 = vmatmul.mubr.f32.gmra.mrb[0].mxu0 %v2648
        %v2734 = vpop.f32.mrb[0].mxu0
        %v2735 = vadd.f32 %v2636, %v2734
        %v2736 = vpop.f32.mrb[0].mxu0
        %v2737 = vadd.f32 %v2636, %v2736
        %2738 = vdwg.mxu0
        %v2739 = vmax.f32 %v2717, 0.0
        %v2740 = vmax.f32 %v2719, 0.0
        %v2741 = vmax.f32 %v2723, 0.0
        %v2742 = vmax.f32 %v2725, 0.0
        %v2743 = vmax.f32 %v2729, 0.0
        %v2744 = vmax.f32 %v2731, 0.0
        %v2745 = vmax.f32 %v2735, 0.0
        %v2746 = vmax.f32 %v2737, 0.0
        %2748 = vset.pattern.permute.xlu0 0
        %2749 = vperm.xlu0 %2748, %v2467
        %v2750 = vpop.permute.xlu0 %2749
        %v2753 = vsel %vm508, %v2482, 0
        %2755 = vmatprep.subr.mxu0 %v2740
        %2756 = vmatpush1.msra.mxu0 %v2739
        %2757 = vmatprep.subr.mxu0 %v2742
        %2758 = vmatpush1.msra.mxu0 %v2741
        %2759 = vmatprep.subr.mxu0 %v2744
        %2760 = vmatpush1.msra.mxu0 %v2743
        %2761 = vmatprep.subr.mxu0 %v2746
        %2762 = vmatpush1.msra.mxu0 %v2745
        %2763 = vmatprep.subr.mxu0 0.0
        %2764 = vmatpush1.msra.mxu0 0.0
        %2765 = vmatprep.subr.mxu0 0.0
        %2766 = vmatpush1.msra.mxu0 0.0
        %2767 = vmatprep.subr.mxu0 0.0
        %2768 = vmatpush1.msra.mxu0 0.0
        %2769 = vmatprep.subr.mxu0 0.0
        %2770 = vmatpush1.msra.mxu0 0.0
        %2771 = vmatprep.subr.mxu0 0.0
        %2772 = vmatpush1.msra.mxu0 0.0
        %2773 = vmatprep.subr.mxu0 0.0
        %2774 = vmatpush1.msra.mxu0 0.0
        %2775 = vmatprep.subr.mxu0 0.0
        %2776 = vmatpush1.msra.mxu0 0.0
        %2777 = vmatprep.subr.mxu0 0.0
        %2778 = vmatpush1.msra.mxu0 0.0
        %2779 = vmatprep.subr.mxu0 0.0
        %2780 = vmatpush1.msra.mxu0 0.0
        %2781 = vmatprep.subr.mxu0 0.0
        %2782 = vmatpush1.msra.mxu0 0.0
        %2783 = vmatprep.subr.mxu0 0.0
        %2784 = vmatpush1.msra.mxu0 0.0
        %2785 = vmatprep.subr.mxu0 0.0
        %2786 = vmatpush1.msra.mxu0 0.0
        %2787 = vmatprep.subr.mxu0 0.0
        %2788 = vmatpush1.msra.mxu0 0.0
        %2789 = vmatprep.subr.mxu0 0.0
        %2790 = vmatpush1.msra.mxu0 0.0
        %2791 = vmatprep.subr.mxu0 0.0
        %2792 = vmatpush1.msra.mxu0 0.0
        %2793 = vmatprep.subr.mxu0 0.0
        %2794 = vmatpush1.msra.mxu0 0.0
        %2795 = vmatprep.subr.mxu0 0.0
        %2796 = vmatpush1.msra.mxu0 0.0
        %2797 = vmatprep.subr.mxu0 0.0
        %2798 = vmatpush1.msra.mxu0 0.0
        %2799 = vmatprep.subr.mxu0 0.0
        %2800 = vmatpush1.msra.mxu0 0.0
        %2801 = vmatprep.subr.mxu0 0.0
        %2802 = vmatpush1.msra.mxu0 0.0
        %2803 = vmatprep.subr.mxu0 0.0
        %2804 = vmatpush1.msra.mxu0 0.0
        %2805 = vmatprep.subr.mxu0 0.0
        %2806 = vmatpush1.msra.mxu0 0.0
        %2807 = vmatprep.subr.mxu0 0.0
        %2808 = vmatpush1.msra.mxu0 0.0
        %2809 = vmatprep.subr.mxu0 0.0
        %2810 = vmatpush1.msra.mxu0 0.0
        %2811 = vmatprep.subr.mxu0 0.0
        %2812 = vmatpush1.msra.mxu0 0.0
        %2813 = vmatprep.subr.mxu0 0.0
        %2814 = vmatpush1.msra.mxu0 0.0
        %2815 = vmatprep.subr.mxu0 0.0
        %2816 = vmatpush1.msra.mxu0 0.0
        %2817 = vmatprep.subr.mxu0 0.0
        %2818 = vmatpush1.msra.mxu0 0.0
        %2819 = vmatprep.mubr.f32.mxu0 0.0
        %2820 = vmatmul.mubr.f32.gmra.mrb[0].mxu0 %v2753
        %v2821 = vpop.f32.mrb[0].mxu0
        %v2822 = vadd.f32 %v2750, %v2821
        %v2823 = vpop.f32.mrb[0].mxu0
        %v2824 = vadd.f32 %v2750, %v2823
        %2825 = vdwg.mxu0
        %v2826 = vtanh.pop %v2822
        %v2827 = vtanh.pop %v2824
        %2829 = vset.pattern.permute.xlu0 0
        %2830 = vperm.xlu0 %2829, %v2468
        %v2831 = vpop.permute.xlu0 %2830
        %v2833 = vmul.f32 %v2831, %v2826
        %v2834 = vmul.f32 %v2831, %v2827
        %v2835 = vmul.f32 %v2833, 1.442695
        %v2836 = vpow.pop %v2835
        %v2837 = vmul.f32 %v2834, 1.442695
        %v2838 = vpow.pop %v2837
        %v2841 = vrot.slane %v2836, 4
        %v2842 = vrot.slane %v2838, 4
        %v2845 = vmul.f32 %v2456, %v2841
        %v2846 = vmul.f32 %v2457, %v2842
        %v2847 = vadd.f32 %v2845, %v2822
        %v2848 = vadd.f32 %v2846, %v2824
        %v2849 = vsel %vm386, %v2833, 0.0
        %v2850 = vrot.slane %v2849, 4
        %v2851 = vadd.f32 %v2849, %v2850
        %v2852 = vrot.slane %v2851, 2
        %v2853 = vadd.f32 %v2851, %v2852
        %v2854 = vrot.slane %v2853, 1
        %v2855 = vadd.f32 %v2853, %v2854
        %v2856 = vsel %vm386, %v2834, 0.0
        %v2857 = vrot.slane %v2856, 4
        %v2858 = vadd.f32 %v2856, %v2857
        %v2859 = vrot.slane %v2858, 2
        %v2860 = vadd.f32 %v2858, %v2859
        %v2861 = vrot.slane %v2860, 1
        %v2862 = vadd.f32 %v2860, %v2861
        %v2863 = vsub.f32 %v2438, %v2855
        %v2864 = vsub.f32 %v2439, %v2862
        %2866 = vset.pattern.permute.xlu0 0
        %2867 = vperm.xlu0 %2866, %v2469
        %v2868 = vpop.permute.xlu0 %2867
        %v2870 = vmul.f32 %v2452, %v2868
        %v2871 = vmul.f32 %v2453, %v2868
        %2873 = vset.pattern.permute.xlu0 0
        %2874 = vperm.xlu0 %2873, %v2470
        %v2875 = vpop.permute.xlu0 %2874
        %v2877 = vadd.f32 %v2870, %v2875
        %v2878 = vadd.f32 %v2871, %v2875
        %v2879 = vmul.f32 %v2847, %v2868
        %v2880 = vmul.f32 %v2848, %v2868
        %v2881 = vadd.f32 %v2879, %v2875
        %v2882 = vadd.f32 %v2880, %v2875
        %s2883 = scalar_lea.vmem %s4, 576
        %v2884 = vld [vmem:[%s2883] sm:$0xff]
        %v2885 = vld [vmem:[%s2883 + $0x8] sm:$0xff]
        %v2886 = vld [vmem:[%s2883 + $0x10] sm:$0xff]
        %v2887 = vld [vmem:[%s2883 + $0x18] sm:$0xff]
        %v2888 = vld [vmem:[%s2883 + $0x20] sm:$0xff]
        %v2889 = vld [vmem:[%s2883 + $0x28] sm:$0xff]
        %v2890 = vld [vmem:[%s2883 + $0x30] sm:$0xff]
        %v2891 = vld [vmem:[%s2883 + $0x38] sm:$0xff]
        %v2892 = vld [vmem:[%s2883 + $0x40] sm:$0xff]
        %v2893 = vld [vmem:[%s2883 + $0x48] sm:$0xff]
        %v2894 = vld [vmem:[%s2883 + $0x50] sm:$0xff]
        %v2895 = vld [vmem:[%s2883 + $0x58] sm:$0xff]
        %s2896 = scalar_lea.vmem %s1, 192
        %v2897 = vld [vmem:[%s2896] sm:$0xff]
        %v2898 = vld [vmem:[%s2896 + $0x8] sm:$0xff]
        %v2899 = vld [vmem:[%s2896 + $0x10] sm:$0xff]
        %v2900 = vld [vmem:[%s2896 + $0x18] sm:$0xff]
        %s2901 = scalar_lea.vmem %s2, 192
        %v2902 = vld [vmem:[%s2901] sm:$0xff]
        %v2903 = vld [vmem:[%s2901 + $0x8] sm:$0xff]
        %v2904 = vld [vmem:[%s2901 + $0x10] sm:$0xff]
        %v2905 = vld [vmem:[%s2901 + $0x18] sm:$0xff]
        %s2906 = scalar_lea.vmem %s3, 48
        %v2907 = vld [vmem:[%s2906] sm:$0xff]
        %2909 = vset.pattern.permute.xlu0 0
        %2910 = vperm.xlu0 %2909, %v2884
        %v2911 = vpop.permute.xlu0 %2910
        %2914 = vset.pattern.permute.xlu0 0
        %2915 = vperm.xlu0 %2914, %v2885
        %v2916 = vpop.permute.xlu0 %2915
        %2919 = vset.pattern.permute.xlu0 0
        %2920 = vperm.xlu0 %2919, %v2886
        %v2921 = vpop.permute.xlu0 %2920
        %2924 = vset.pattern.permute.xlu0 0
        %2925 = vperm.xlu0 %2924, %v2887
        %v2926 = vpop.permute.xlu0 %2925
        %v2930 = vrot.slane %v2881, 4
        %v2931 = vrot.slane %v2882, 4
        %v2933 = vsel %vm373, %v2897, 0
        %v2936 = vsel %vm373, %v2898, 0
        %v2939 = vsel %vm373, %v2899, 0
        %v2942 = vsel %vm373, %v2900, 0
        %v2944 = vsel %vm386, %v2930, 0
        %v2946 = vsel %vm386, %v2931, 0
        %2948 = vmatprep.subr.mxu0 %v2946
        %2949 = vmatpush1.msra.mxu0 %v2944
        %2950 = vmatprep.subr.mxu0 0.0
        %2951 = vmatpush1.msra.mxu0 0.0
        %2952 = vmatprep.subr.mxu0 0.0
        %2953 = vmatpush1.msra.mxu0 0.0
        %2954 = vmatprep.subr.mxu0 0.0
        %2955 = vmatpush1.msra.mxu0 0.0
        %2956 = vmatprep.subr.mxu0 0.0
        %2957 = vmatpush1.msra.mxu0 0.0
        %2958 = vmatprep.subr.mxu0 0.0
        %2959 = vmatpush1.msra.mxu0 0.0
        %2960 = vmatprep.subr.mxu0 0.0
        %2961 = vmatpush1.msra.mxu0 0.0
        %2962 = vmatprep.subr.mxu0 0.0
        %2963 = vmatpush1.msra.mxu0 0.0
        %2964 = vmatprep.subr.mxu0 0.0
        %2965 = vmatpush1.msra.mxu0 0.0
        %2966 = vmatprep.subr.mxu0 0.0
        %2967 = vmatpush1.msra.mxu0 0.0
        %2968 = vmatprep.subr.mxu0 0.0
        %2969 = vmatpush1.msra.mxu0 0.0
        %2970 = vmatprep.subr.mxu0 0.0
        %2971 = vmatpush1.msra.mxu0 0.0
        %2972 = vmatprep.subr.mxu0 0.0
        %2973 = vmatpush1.msra.mxu0 0.0
        %2974 = vmatprep.subr.mxu0 0.0
        %2975 = vmatpush1.msra.mxu0 0.0
        %2976 = vmatprep.subr.mxu0 0.0
        %2977 = vmatpush1.msra.mxu0 0.0
        %2978 = vmatprep.subr.mxu0 0.0
        %2979 = vmatpush1.msra.mxu0 0.0
        %2980 = vmatprep.subr.mxu0 0.0
        %2981 = vmatpush1.msra.mxu0 0.0
        %2982 = vmatprep.subr.mxu0 0.0
        %2983 = vmatpush1.msra.mxu0 0.0
        %2984 = vmatprep.subr.mxu0 0.0
        %2985 = vmatpush1.msra.mxu0 0.0
        %2986 = vmatprep.subr.mxu0 0.0
        %2987 = vmatpush1.msra.mxu0 0.0
        %2988 = vmatprep.subr.mxu0 0.0
        %2989 = vmatpush1.msra.mxu0 0.0
        %2990 = vmatprep.subr.mxu0 0.0
        %2991 = vmatpush1.msra.mxu0 0.0
        %2992 = vmatprep.subr.mxu0 0.0
        %2993 = vmatpush1.msra.mxu0 0.0
        %2994 = vmatprep.subr.mxu0 0.0
        %2995 = vmatpush1.msra.mxu0 0.0
        %2996 = vmatprep.subr.mxu0 0.0
        %2997 = vmatpush1.msra.mxu0 0.0
        %2998 = vmatprep.subr.mxu0 0.0
        %2999 = vmatpush1.msra.mxu0 0.0
        %3000 = vmatprep.subr.mxu0 0.0
        %3001 = vmatpush1.msra.mxu0 0.0
        %3002 = vmatprep.subr.mxu0 0.0
        %3003 = vmatpush1.msra.mxu0 0.0
        %3004 = vmatprep.subr.mxu0 0.0
        %3005 = vmatpush1.msra.mxu0 0.0
        %3006 = vmatprep.subr.mxu0 0.0
        %3007 = vmatpush1.msra.mxu0 0.0
        %3008 = vmatprep.subr.mxu0 0.0
        %3009 = vmatpush1.msra.mxu0 0.0
        %3010 = vmatprep.subr.mxu0 0.0
        %3011 = vmatpush1.msra.mxu0 0.0
        %3012 = vmatprep.mubr.f32.mxu0 0.0
        %3013 = vmatmul.mubr.f32.gmra.mrb[0].mxu0 %v2933
        %v3014 = vpop.f32.mrb[0].mxu0
        %v3015 = vadd.f32 %v2911, %v3014
        %v3016 = vpop.f32.mrb[0].mxu0
        %v3017 = vadd.f32 %v2911, %v3016
        %3018 = vmatprep.mubr.f32.mxu0 0.0
        %3019 = vmatmul.mubr.f32.gmra.mrb[0].mxu0 %v2936
        %v3020 = vpop.f32.mrb[0].mxu0
        %v3021 = vadd.f32 %v2916, %v3020
        %v3022 = vpop.f32.mrb[0].mxu0
        %v3023 = vadd.f32 %v2916, %v3022
        %3024 = vmatprep.mubr.f32.mxu0 0.0
        %3025 = vmatmul.mubr.f32.gmra.mrb[0].mxu0 %v2939
        %v3026 = vpop.f32.mrb[0].mxu0
        %v3027 = vadd.f32 %v2921, %v3026
        %v3028 = vpop.f32.mrb[0].mxu0
        %v3029 = vadd.f32 %v2921, %v3028
        %3030 = vmatprep.mubr.f32.mxu0 0.0
        %3031 = vmatmul.mubr.f32.gmra.mrb[0].mxu0 %v2942
        %v3032 = vpop.f32.mrb[0].mxu0
        %v3033 = vadd.f32 %v2926, %v3032
        %v3034 = vpop.f32.mrb[0].mxu0
        %v3035 = vadd.f32 %v2926, %v3034
        %3036 = vdwg.mxu0
        %v3037 = vmax.f32 %v3015, 0.0
        %v3038 = vmax.f32 %v3017, 0.0
        %v3039 = vmax.f32 %v3021, 0.0
        %v3040 = vmax.f32 %v3023, 0.0
        %v3041 = vmax.f32 %v3027, 0.0
        %v3042 = vmax.f32 %v3029, 0.0
        %v3043 = vmax.f32 %v3033, 0.0
        %v3044 = vmax.f32 %v3035, 0.0
        %3046 = vset.pattern.permute.xlu0 0
        %3047 = vperm.xlu0 %3046, %v2888
        %v3048 = vpop.permute.xlu0 %3047
        %3051 = vset.pattern.permute.xlu0 0
        %3052 = vperm.xlu0 %3051, %v2889
        %v3053 = vpop.permute.xlu0 %3052
        %3056 = vset.pattern.permute.xlu0 0
        %3057 = vperm.xlu0 %3056, %v2890
        %v3058 = vpop.permute.xlu0 %3057
        %3061 = vset.pattern.permute.xlu0 0
        %3062 = vperm.xlu0 %3061, %v2891
        %v3063 = vpop.permute.xlu0 %3062
        %v3066 = vsel %vm508, %v2902, 0
        %v3069 = vsel %vm508, %v2903, 0
        %v3072 = vsel %vm508, %v2904, 0
        %v3075 = vsel %vm508, %v2905, 0
        %3077 = vmatprep.subr.mxu0 %v3038
        %3078 = vmatpush1.msra.mxu0 %v3037
        %3079 = vmatprep.subr.mxu0 %v3040
        %3080 = vmatpush1.msra.mxu0 %v3039
        %3081 = vmatprep.subr.mxu0 %v3042
        %3082 = vmatpush1.msra.mxu0 %v3041
        %3083 = vmatprep.subr.mxu0 %v3044
        %3084 = vmatpush1.msra.mxu0 %v3043
        %3085 = vmatprep.subr.mxu0 0.0
        %3086 = vmatpush1.msra.mxu0 0.0
        %3087 = vmatprep.subr.mxu0 0.0
        %3088 = vmatpush1.msra.mxu0 0.0
        %3089 = vmatprep.subr.mxu0 0.0
        %3090 = vmatpush1.msra.mxu0 0.0
        %3091 = vmatprep.subr.mxu0 0.0
        %3092 = vmatpush1.msra.mxu0 0.0
        %3093 = vmatprep.subr.mxu0 0.0
        %3094 = vmatpush1.msra.mxu0 0.0
        %3095 = vmatprep.subr.mxu0 0.0
        %3096 = vmatpush1.msra.mxu0 0.0
        %3097 = vmatprep.subr.mxu0 0.0
        %3098 = vmatpush1.msra.mxu0 0.0
        %3099 = vmatprep.subr.mxu0 0.0
        %3100 = vmatpush1.msra.mxu0 0.0
        %3101 = vmatprep.subr.mxu0 0.0
        %3102 = vmatpush1.msra.mxu0 0.0
        %3103 = vmatprep.subr.mxu0 0.0
        %3104 = vmatpush1.msra.mxu0 0.0
        %3105 = vmatprep.subr.mxu0 0.0
        %3106 = vmatpush1.msra.mxu0 0.0
        %3107 = vmatprep.subr.mxu0 0.0
        %3108 = vmatpush1.msra.mxu0 0.0
        %3109 = vmatprep.subr.mxu0 0.0
        %3110 = vmatpush1.msra.mxu0 0.0
        %3111 = vmatprep.subr.mxu0 0.0
        %3112 = vmatpush1.msra.mxu0 0.0
        %3113 = vmatprep.subr.mxu0 0.0
        %3114 = vmatpush1.msra.mxu0 0.0
        %3115 = vmatprep.subr.mxu0 0.0
        %3116 = vmatpush1.msra.mxu0 0.0
        %3117 = vmatprep.subr.mxu0 0.0
        %3118 = vmatpush1.msra.mxu0 0.0
        %3119 = vmatprep.subr.mxu0 0.0
        %3120 = vmatpush1.msra.mxu0 0.0
        %3121 = vmatprep.subr.mxu0 0.0
        %3122 = vmatpush1.msra.mxu0 0.0
        %3123 = vmatprep.subr.mxu0 0.0
        %3124 = vmatpush1.msra.mxu0 0.0
        %3125 = vmatprep.subr.mxu0 0.0
        %3126 = vmatpush1.msra.mxu0 0.0
        %3127 = vmatprep.subr.mxu0 0.0
        %3128 = vmatpush1.msra.mxu0 0.0
        %3129 = vmatprep.subr.mxu0 0.0
        %3130 = vmatpush1.msra.mxu0 0.0
        %3131 = vmatprep.subr.mxu0 0.0
        %3132 = vmatpush1.msra.mxu0 0.0
        %3133 = vmatprep.subr.mxu0 0.0
        %3134 = vmatpush1.msra.mxu0 0.0
        %3135 = vmatprep.subr.mxu0 0.0
        %3136 = vmatpush1.msra.mxu0 0.0
        %3137 = vmatprep.subr.mxu0 0.0
        %3138 = vmatpush1.msra.mxu0 0.0
        %3139 = vmatprep.subr.mxu0 0.0
        %3140 = vmatpush1.msra.mxu0 0.0
        %3141 = vmatprep.mubr.f32.mxu0 0.0
        %3142 = vmatmul.mubr.f32.gmra.mrb[0].mxu0 %v3066
        %v3143 = vpop.f32.mrb[0].mxu0
        %v3144 = vadd.f32 %v3048, %v3143
        %v3145 = vpop.f32.mrb[0].mxu0
        %v3146 = vadd.f32 %v3048, %v3145
        %3147 = vmatprep.mubr.f32.mxu0 0.0
        %3148 = vmatmul.mubr.f32.gmra.mrb[0].mxu0 %v3069
        %v3149 = vpop.f32.mrb[0].mxu0
        %v3150 = vadd.f32 %v3053, %v3149
        %v3151 = vpop.f32.mrb[0].mxu0
        %v3152 = vadd.f32 %v3053, %v3151
        %3153 = vmatprep.mubr.f32.mxu0 0.0
        %3154 = vmatmul.mubr.f32.gmra.mrb[0].mxu0 %v3072
        %v3155 = vpop.f32.mrb[0].mxu0
        %v3156 = vadd.f32 %v3058, %v3155
        %v3157 = vpop.f32.mrb[0].mxu0
        %v3158 = vadd.f32 %v3058, %v3157
        %3159 = vmatprep.mubr.f32.mxu0 0.0
        %3160 = vmatmul.mubr.f32.gmra.mrb[0].mxu0 %v3075
        %v3161 = vpop.f32.mrb[0].mxu0
        %v3162 = vadd.f32 %v3063, %v3161
        %v3163 = vpop.f32.mrb[0].mxu0
        %v3164 = vadd.f32 %v3063, %v3163
        %3165 = vdwg.mxu0
        %v3166 = vmax.f32 %v3144, 0.0
        %v3167 = vmax.f32 %v3146, 0.0
        %v3168 = vmax.f32 %v3150, 0.0
        %v3169 = vmax.f32 %v3152, 0.0
        %v3170 = vmax.f32 %v3156, 0.0
        %v3171 = vmax.f32 %v3158, 0.0
        %v3172 = vmax.f32 %v3162, 0.0
        %v3173 = vmax.f32 %v3164, 0.0
        %3175 = vset.pattern.permute.xlu0 0
        %3176 = vperm.xlu0 %3175, %v2892
        %v3177 = vpop.permute.xlu0 %3176
        %v3180 = vsel %vm508, %v2907, 0
        %3182 = vmatprep.subr.mxu0 %v3167
        %3183 = vmatpush1.msra.mxu0 %v3166
        %3184 = vmatprep.subr.mxu0 %v3169
        %3185 = vmatpush1.msra.mxu0 %v3168
        %3186 = vmatprep.subr.mxu0 %v3171
        %3187 = vmatpush1.msra.mxu0 %v3170
        %3188 = vmatprep.subr.mxu0 %v3173
        %3189 = vmatpush1.msra.mxu0 %v3172
        %3190 = vmatprep.subr.mxu0 0.0
        %3191 = vmatpush1.msra.mxu0 0.0
        %3192 = vmatprep.subr.mxu0 0.0
        %3193 = vmatpush1.msra.mxu0 0.0
        %3194 = vmatprep.subr.mxu0 0.0
        %3195 = vmatpush1.msra.mxu0 0.0
        %3196 = vmatprep.subr.mxu0 0.0
        %3197 = vmatpush1.msra.mxu0 0.0
        %3198 = vmatprep.subr.mxu0 0.0
        %3199 = vmatpush1.msra.mxu0 0.0
        %3200 = vmatprep.subr.mxu0 0.0
        %3201 = vmatpush1.msra.mxu0 0.0
        %3202 = vmatprep.subr.mxu0 0.0
        %3203 = vmatpush1.msra.mxu0 0.0
        %3204 = vmatprep.subr.mxu0 0.0
        %3205 = vmatpush1.msra.mxu0 0.0
        %3206 = vmatprep.subr.mxu0 0.0
        %3207 = vmatpush1.msra.mxu0 0.0
        %3208 = vmatprep.subr.mxu0 0.0
        %3209 = vmatpush1.msra.mxu0 0.0
        %3210 = vmatprep.subr.mxu0 0.0
        %3211 = vmatpush1.msra.mxu0 0.0
        %3212 = vmatprep.subr.mxu0 0.0
        %3213 = vmatpush1.msra.mxu0 0.0
        %3214 = vmatprep.subr.mxu0 0.0
        %3215 = vmatpush1.msra.mxu0 0.0
        %3216 = vmatprep.subr.mxu0 0.0
        %3217 = vmatpush1.msra.mxu0 0.0
        %3218 = vmatprep.subr.mxu0 0.0
        %3219 = vmatpush1.msra.mxu0 0.0
        %3220 = vmatprep.subr.mxu0 0.0
        %3221 = vmatpush1.msra.mxu0 0.0
        %3222 = vmatprep.subr.mxu0 0.0
        %3223 = vmatpush1.msra.mxu0 0.0
        %3224 = vmatprep.subr.mxu0 0.0
        %3225 = vmatpush1.msra.mxu0 0.0
        %3226 = vmatprep.subr.mxu0 0.0
        %3227 = vmatpush1.msra.mxu0 0.0
        %3228 = vmatprep.subr.mxu0 0.0
        %3229 = vmatpush1.msra.mxu0 0.0
        %3230 = vmatprep.subr.mxu0 0.0
        %3231 = vmatpush1.msra.mxu0 0.0
        %3232 = vmatprep.subr.mxu0 0.0
        %3233 = vmatpush1.msra.mxu0 0.0
        %3234 = vmatprep.subr.mxu0 0.0
        %3235 = vmatpush1.msra.mxu0 0.0
        %3236 = vmatprep.subr.mxu0 0.0
        %3237 = vmatpush1.msra.mxu0 0.0
        %3238 = vmatprep.subr.mxu0 0.0
        %3239 = vmatpush1.msra.mxu0 0.0
        %3240 = vmatprep.subr.mxu0 0.0
        %3241 = vmatpush1.msra.mxu0 0.0
        %3242 = vmatprep.subr.mxu0 0.0
        %3243 = vmatpush1.msra.mxu0 0.0
        %3244 = vmatprep.subr.mxu0 0.0
        %3245 = vmatpush1.msra.mxu0 0.0
        %3246 = vmatprep.mubr.f32.mxu0 0.0
        %3247 = vmatmul.mubr.f32.gmra.mrb[0].mxu0 %v3180
        %v3248 = vpop.f32.mrb[0].mxu0
        %v3249 = vadd.f32 %v3177, %v3248
        %v3250 = vpop.f32.mrb[0].mxu0
        %v3251 = vadd.f32 %v3177, %v3250
        %3252 = vdwg.mxu0
        %v3253 = vtanh.pop %v3249
        %v3254 = vtanh.pop %v3251
        %3256 = vset.pattern.permute.xlu0 0
        %3257 = vperm.xlu0 %3256, %v2893
        %v3258 = vpop.permute.xlu0 %3257
        %v3260 = vmul.f32 %v3258, %v3253
        %v3261 = vmul.f32 %v3258, %v3254
        %v3262 = vmul.f32 %v3260, 1.442695
        %v3263 = vpow.pop %v3262
        %v3264 = vmul.f32 %v3261, 1.442695
        %v3265 = vpow.pop %v3264
        %v3266 = vmul.f32 %v2877, %v3263
        %v3267 = vmul.f32 %v2878, %v3265
        %v3270 = vrot.slane %v3249, 4
        %v3271 = vrot.slane %v3251, 4
        %v3274 = vadd.f32 %v3266, %v3270
        %v3275 = vadd.f32 %v3267, %v3271
        %v3276 = vsel %vm386, %v3260, 0.0
        %v3277 = vrot.slane %v3276, 4
        %v3278 = vadd.f32 %v3276, %v3277
        %v3279 = vrot.slane %v3278, 2
        %v3280 = vadd.f32 %v3278, %v3279
        %v3281 = vrot.slane %v3280, 1
        %v3282 = vadd.f32 %v3280, %v3281
        %v3283 = vsel %vm386, %v3261, 0.0
        %v3284 = vrot.slane %v3283, 4
        %v3285 = vadd.f32 %v3283, %v3284
        %v3286 = vrot.slane %v3285, 2
        %v3287 = vadd.f32 %v3285, %v3286
        %v3288 = vrot.slane %v3287, 1
        %v3289 = vadd.f32 %v3287, %v3288
        %v3290 = vsub.f32 %v2863, %v3282
        %v3291 = vsub.f32 %v2864, %v3289
        %3293 = vset.pattern.permute.xlu0 0
        %3294 = vperm.xlu0 %3293, %v2894
        %v3295 = vpop.permute.xlu0 %3294
        %v3297 = vmul.f32 %v3274, %v3295
        %v3298 = vmul.f32 %v3275, %v3295
        %3300 = vset.pattern.permute.xlu0 0
        %3301 = vperm.xlu0 %3300, %v2895
        %v3302 = vpop.permute.xlu0 %3301
        %v3304 = vadd.f32 %v3297, %v3302
        %v3305 = vadd.f32 %v3298, %v3302
        %v3306 = vmul.f32 %v2881, %v3295
        %v3307 = vmul.f32 %v2882, %v3295
        %v3308 = vadd.f32 %v3306, %v3302
        %v3309 = vadd.f32 %v3307, %v3302
        %s3310 = scalar_lea.vmem %s4, 672
        %v3311 = vld [vmem:[%s3310] sm:$0xff]
        %v3312 = vld [vmem:[%s3310 + $0x8] sm:$0xff]
        %v3313 = vld [vmem:[%s3310 + $0x10] sm:$0xff]
        %v3314 = vld [vmem:[%s3310 + $0x18] sm:$0xff]
        %v3315 = vld [vmem:[%s3310 + $0x20] sm:$0xff]
        %v3316 = vld [vmem:[%s3310 + $0x28] sm:$0xff]
        %v3317 = vld [vmem:[%s3310 + $0x30] sm:$0xff]
        %v3318 = vld [vmem:[%s3310 + $0x38] sm:$0xff]
        %v3319 = vld [vmem:[%s3310 + $0x40] sm:$0xff]
        %v3320 = vld [vmem:[%s3310 + $0x48] sm:$0xff]
        %v3321 = vld [vmem:[%s3310 + $0x50] sm:$0xff]
        %v3322 = vld [vmem:[%s3310 + $0x58] sm:$0xff]
        %s3323 = scalar_lea.vmem %s1, 224
        %v3324 = vld [vmem:[%s3323] sm:$0xff]
        %v3325 = vld [vmem:[%s3323 + $0x8] sm:$0xff]
        %v3326 = vld [vmem:[%s3323 + $0x10] sm:$0xff]
        %v3327 = vld [vmem:[%s3323 + $0x18] sm:$0xff]
        %s3328 = scalar_lea.vmem %s2, 224
        %v3329 = vld [vmem:[%s3328] sm:$0xff]
        %v3330 = vld [vmem:[%s3328 + $0x8] sm:$0xff]
        %v3331 = vld [vmem:[%s3328 + $0x10] sm:$0xff]
        %v3332 = vld [vmem:[%s3328 + $0x18] sm:$0xff]
        %s3333 = scalar_lea.vmem %s3, 56
        %v3334 = vld [vmem:[%s3333] sm:$0xff]
        %3336 = vset.pattern.permute.xlu0 0
        %3337 = vperm.xlu0 %3336, %v3311
        %v3338 = vpop.permute.xlu0 %3337
        %3341 = vset.pattern.permute.xlu0 0
        %3342 = vperm.xlu0 %3341, %v3312
        %v3343 = vpop.permute.xlu0 %3342
        %3346 = vset.pattern.permute.xlu0 0
        %3347 = vperm.xlu0 %3346, %v3313
        %v3348 = vpop.permute.xlu0 %3347
        %3351 = vset.pattern.permute.xlu0 0
        %3352 = vperm.xlu0 %3351, %v3314
        %v3353 = vpop.permute.xlu0 %3352
        %v3356 = vsel %vm373, %v3324, 0
        %v3359 = vsel %vm373, %v3325, 0
        %v3362 = vsel %vm373, %v3326, 0
        %v3365 = vsel %vm373, %v3327, 0
        %v3368 = vsel %vm386, %v3304, 0
        %v3371 = vsel %vm386, %v3305, 0
        %3373 = vmatprep.subr.mxu0 %v3371
        %3374 = vmatpush1.msra.mxu0 %v3368
        %3375 = vmatprep.subr.mxu0 0.0
        %3376 = vmatpush1.msra.mxu0 0.0
        %3377 = vmatprep.subr.mxu0 0.0
        %3378 = vmatpush1.msra.mxu0 0.0
        %3379 = vmatprep.subr.mxu0 0.0
        %3380 = vmatpush1.msra.mxu0 0.0
        %3381 = vmatprep.subr.mxu0 0.0
        %3382 = vmatpush1.msra.mxu0 0.0
        %3383 = vmatprep.subr.mxu0 0.0
        %3384 = vmatpush1.msra.mxu0 0.0
        %3385 = vmatprep.subr.mxu0 0.0
        %3386 = vmatpush1.msra.mxu0 0.0
        %3387 = vmatprep.subr.mxu0 0.0
        %3388 = vmatpush1.msra.mxu0 0.0
        %3389 = vmatprep.subr.mxu0 0.0
        %3390 = vmatpush1.msra.mxu0 0.0
        %3391 = vmatprep.subr.mxu0 0.0
        %3392 = vmatpush1.msra.mxu0 0.0
        %3393 = vmatprep.subr.mxu0 0.0
        %3394 = vmatpush1.msra.mxu0 0.0
        %3395 = vmatprep.subr.mxu0 0.0
        %3396 = vmatpush1.msra.mxu0 0.0
        %3397 = vmatprep.subr.mxu0 0.0
        %3398 = vmatpush1.msra.mxu0 0.0
        %3399 = vmatprep.subr.mxu0 0.0
        %3400 = vmatpush1.msra.mxu0 0.0
        %3401 = vmatprep.subr.mxu0 0.0
        %3402 = vmatpush1.msra.mxu0 0.0
        %3403 = vmatprep.subr.mxu0 0.0
        %3404 = vmatpush1.msra.mxu0 0.0
        %3405 = vmatprep.subr.mxu0 0.0
        %3406 = vmatpush1.msra.mxu0 0.0
        %3407 = vmatprep.subr.mxu0 0.0
        %3408 = vmatpush1.msra.mxu0 0.0
        %3409 = vmatprep.subr.mxu0 0.0
        %3410 = vmatpush1.msra.mxu0 0.0
        %3411 = vmatprep.subr.mxu0 0.0
        %3412 = vmatpush1.msra.mxu0 0.0
        %3413 = vmatprep.subr.mxu0 0.0
        %3414 = vmatpush1.msra.mxu0 0.0
        %3415 = vmatprep.subr.mxu0 0.0
        %3416 = vmatpush1.msra.mxu0 0.0
        %3417 = vmatprep.subr.mxu0 0.0
        %3418 = vmatpush1.msra.mxu0 0.0
        %3419 = vmatprep.subr.mxu0 0.0
        %3420 = vmatpush1.msra.mxu0 0.0
        %3421 = vmatprep.subr.mxu0 0.0
        %3422 = vmatpush1.msra.mxu0 0.0
        %3423 = vmatprep.subr.mxu0 0.0
        %3424 = vmatpush1.msra.mxu0 0.0
        %3425 = vmatprep.subr.mxu0 0.0
        %3426 = vmatpush1.msra.mxu0 0.0
        %3427 = vmatprep.subr.mxu0 0.0
        %3428 = vmatpush1.msra.mxu0 0.0
        %3429 = vmatprep.subr.mxu0 0.0
        %3430 = vmatpush1.msra.mxu0 0.0
        %3431 = vmatprep.subr.mxu0 0.0
        %3432 = vmatpush1.msra.mxu0 0.0
        %3433 = vmatprep.subr.mxu0 0.0
        %3434 = vmatpush1.msra.mxu0 0.0
        %3435 = vmatprep.subr.mxu0 0.0
        %3436 = vmatpush1.msra.mxu0 0.0
        %3437 = vmatprep.mubr.f32.mxu0 0.0
        %3438 = vmatmul.mubr.f32.gmra.mrb[0].mxu0 %v3356
        %v3439 = vpop.f32.mrb[0].mxu0
        %v3440 = vadd.f32 %v3338, %v3439
        %v3441 = vpop.f32.mrb[0].mxu0
        %v3442 = vadd.f32 %v3338, %v3441
        %3443 = vmatprep.mubr.f32.mxu0 0.0
        %3444 = vmatmul.mubr.f32.gmra.mrb[0].mxu0 %v3359
        %v3445 = vpop.f32.mrb[0].mxu0
        %v3446 = vadd.f32 %v3343, %v3445
        %v3447 = vpop.f32.mrb[0].mxu0
        %v3448 = vadd.f32 %v3343, %v3447
        %3449 = vmatprep.mubr.f32.mxu0 0.0
        %3450 = vmatmul.mubr.f32.gmra.mrb[0].mxu0 %v3362
        %v3451 = vpop.f32.mrb[0].mxu0
        %v3452 = vadd.f32 %v3348, %v3451
        %v3453 = vpop.f32.mrb[0].mxu0
        %v3454 = vadd.f32 %v3348, %v3453
        %3455 = vmatprep.mubr.f32.mxu0 0.0
        %3456 = vmatmul.mubr.f32.gmra.mrb[0].mxu0 %v3365
        %v3457 = vpop.f32.mrb[0].mxu0
        %v3458 = vadd.f32 %v3353, %v3457
        %v3459 = vpop.f32.mrb[0].mxu0
        %v3460 = vadd.f32 %v3353, %v3459
        %3461 = vdwg.mxu0
        %v3462 = vmax.f32 %v3440, 0.0
        %v3463 = vmax.f32 %v3442, 0.0
        %v3464 = vmax.f32 %v3446, 0.0
        %v3465 = vmax.f32 %v3448, 0.0
        %v3466 = vmax.f32 %v3452, 0.0
        %v3467 = vmax.f32 %v3454, 0.0
        %v3468 = vmax.f32 %v3458, 0.0
        %v3469 = vmax.f32 %v3460, 0.0
        %3471 = vset.pattern.permute.xlu0 0
        %3472 = vperm.xlu0 %3471, %v3315
        %v3473 = vpop.permute.xlu0 %3472
        %3476 = vset.pattern.permute.xlu0 0
        %3477 = vperm.xlu0 %3476, %v3316
        %v3478 = vpop.permute.xlu0 %3477
        %3481 = vset.pattern.permute.xlu0 0
        %3482 = vperm.xlu0 %3481, %v3317
        %v3483 = vpop.permute.xlu0 %3482
        %3486 = vset.pattern.permute.xlu0 0
        %3487 = vperm.xlu0 %3486, %v3318
        %v3488 = vpop.permute.xlu0 %3487
        %v3491 = vsel %vm508, %v3329, 0
        %v3494 = vsel %vm508, %v3330, 0
        %v3497 = vsel %vm508, %v3331, 0
        %v3500 = vsel %vm508, %v3332, 0
        %3502 = vmatprep.subr.mxu0 %v3463
        %3503 = vmatpush1.msra.mxu0 %v3462
        %3504 = vmatprep.subr.mxu0 %v3465
        %3505 = vmatpush1.msra.mxu0 %v3464
        %3506 = vmatprep.subr.mxu0 %v3467
        %3507 = vmatpush1.msra.mxu0 %v3466
        %3508 = vmatprep.subr.mxu0 %v3469
        %3509 = vmatpush1.msra.mxu0 %v3468
        %3510 = vmatprep.subr.mxu0 0.0
        %3511 = vmatpush1.msra.mxu0 0.0
        %3512 = vmatprep.subr.mxu0 0.0
        %3513 = vmatpush1.msra.mxu0 0.0
        %3514 = vmatprep.subr.mxu0 0.0
        %3515 = vmatpush1.msra.mxu0 0.0
        %3516 = vmatprep.subr.mxu0 0.0
        %3517 = vmatpush1.msra.mxu0 0.0
        %3518 = vmatprep.subr.mxu0 0.0
        %3519 = vmatpush1.msra.mxu0 0.0
        %3520 = vmatprep.subr.mxu0 0.0
        %3521 = vmatpush1.msra.mxu0 0.0
        %3522 = vmatprep.subr.mxu0 0.0
        %3523 = vmatpush1.msra.mxu0 0.0
        %3524 = vmatprep.subr.mxu0 0.0
        %3525 = vmatpush1.msra.mxu0 0.0
        %3526 = vmatprep.subr.mxu0 0.0
        %3527 = vmatpush1.msra.mxu0 0.0
        %3528 = vmatprep.subr.mxu0 0.0
        %3529 = vmatpush1.msra.mxu0 0.0
        %3530 = vmatprep.subr.mxu0 0.0
        %3531 = vmatpush1.msra.mxu0 0.0
        %3532 = vmatprep.subr.mxu0 0.0
        %3533 = vmatpush1.msra.mxu0 0.0
        %3534 = vmatprep.subr.mxu0 0.0
        %3535 = vmatpush1.msra.mxu0 0.0
        %3536 = vmatprep.subr.mxu0 0.0
        %3537 = vmatpush1.msra.mxu0 0.0
        %3538 = vmatprep.subr.mxu0 0.0
        %3539 = vmatpush1.msra.mxu0 0.0
        %3540 = vmatprep.subr.mxu0 0.0
        %3541 = vmatpush1.msra.mxu0 0.0
        %3542 = vmatprep.subr.mxu0 0.0
        %3543 = vmatpush1.msra.mxu0 0.0
        %3544 = vmatprep.subr.mxu0 0.0
        %3545 = vmatpush1.msra.mxu0 0.0
        %3546 = vmatprep.subr.mxu0 0.0
        %3547 = vmatpush1.msra.mxu0 0.0
        %3548 = vmatprep.subr.mxu0 0.0
        %3549 = vmatpush1.msra.mxu0 0.0
        %3550 = vmatprep.subr.mxu0 0.0
        %3551 = vmatpush1.msra.mxu0 0.0
        %3552 = vmatprep.subr.mxu0 0.0
        %3553 = vmatpush1.msra.mxu0 0.0
        %3554 = vmatprep.subr.mxu0 0.0
        %3555 = vmatpush1.msra.mxu0 0.0
        %3556 = vmatprep.subr.mxu0 0.0
        %3557 = vmatpush1.msra.mxu0 0.0
        %3558 = vmatprep.subr.mxu0 0.0
        %3559 = vmatpush1.msra.mxu0 0.0
        %3560 = vmatprep.subr.mxu0 0.0
        %3561 = vmatpush1.msra.mxu0 0.0
        %3562 = vmatprep.subr.mxu0 0.0
        %3563 = vmatpush1.msra.mxu0 0.0
        %3564 = vmatprep.subr.mxu0 0.0
        %3565 = vmatpush1.msra.mxu0 0.0
        %3566 = vmatprep.mubr.f32.mxu0 0.0
        %3567 = vmatmul.mubr.f32.gmra.mrb[0].mxu0 %v3491
        %v3568 = vpop.f32.mrb[0].mxu0
        %v3569 = vadd.f32 %v3473, %v3568
        %v3570 = vpop.f32.mrb[0].mxu0
        %v3571 = vadd.f32 %v3473, %v3570
        %3572 = vmatprep.mubr.f32.mxu0 0.0
        %3573 = vmatmul.mubr.f32.gmra.mrb[0].mxu0 %v3494
        %v3574 = vpop.f32.mrb[0].mxu0
        %v3575 = vadd.f32 %v3478, %v3574
        %v3576 = vpop.f32.mrb[0].mxu0
        %v3577 = vadd.f32 %v3478, %v3576
        %3578 = vmatprep.mubr.f32.mxu0 0.0
        %3579 = vmatmul.mubr.f32.gmra.mrb[0].mxu0 %v3497
        %v3580 = vpop.f32.mrb[0].mxu0
        %v3581 = vadd.f32 %v3483, %v3580
        %v3582 = vpop.f32.mrb[0].mxu0
        %v3583 = vadd.f32 %v3483, %v3582
        %3584 = vmatprep.mubr.f32.mxu0 0.0
        %3585 = vmatmul.mubr.f32.gmra.mrb[0].mxu0 %v3500
        %v3586 = vpop.f32.mrb[0].mxu0
        %v3587 = vadd.f32 %v3488, %v3586
        %v3588 = vpop.f32.mrb[0].mxu0
        %v3589 = vadd.f32 %v3488, %v3588
        %3590 = vdwg.mxu0
        %v3591 = vmax.f32 %v3569, 0.0
        %v3592 = vmax.f32 %v3571, 0.0
        %v3593 = vmax.f32 %v3575, 0.0
        %v3594 = vmax.f32 %v3577, 0.0
        %v3595 = vmax.f32 %v3581, 0.0
        %v3596 = vmax.f32 %v3583, 0.0
        %v3597 = vmax.f32 %v3587, 0.0
        %v3598 = vmax.f32 %v3589, 0.0
        %3600 = vset.pattern.permute.xlu0 0
        %3601 = vperm.xlu0 %3600, %v3319
        %v3602 = vpop.permute.xlu0 %3601
        %v3605 = vsel %vm508, %v3334, 0
        %3607 = vmatprep.subr.mxu0 %v3592
        %3608 = vmatpush1.msra.mxu0 %v3591
        %3609 = vmatprep.subr.mxu0 %v3594
        %3610 = vmatpush1.msra.mxu0 %v3593
        %3611 = vmatprep.subr.mxu0 %v3596
        %3612 = vmatpush1.msra.mxu0 %v3595
        %3613 = vmatprep.subr.mxu0 %v3598
        %3614 = vmatpush1.msra.mxu0 %v3597
        %3615 = vmatprep.subr.mxu0 0.0
        %3616 = vmatpush1.msra.mxu0 0.0
        %3617 = vmatprep.subr.mxu0 0.0
        %3618 = vmatpush1.msra.mxu0 0.0
        %3619 = vmatprep.subr.mxu0 0.0
        %3620 = vmatpush1.msra.mxu0 0.0
        %3621 = vmatprep.subr.mxu0 0.0
        %3622 = vmatpush1.msra.mxu0 0.0
        %3623 = vmatprep.subr.mxu0 0.0
        %3624 = vmatpush1.msra.mxu0 0.0
        %3625 = vmatprep.subr.mxu0 0.0
        %3626 = vmatpush1.msra.mxu0 0.0
        %3627 = vmatprep.subr.mxu0 0.0
        %3628 = vmatpush1.msra.mxu0 0.0
        %3629 = vmatprep.subr.mxu0 0.0
        %3630 = vmatpush1.msra.mxu0 0.0
        %3631 = vmatprep.subr.mxu0 0.0
        %3632 = vmatpush1.msra.mxu0 0.0
        %3633 = vmatprep.subr.mxu0 0.0
        %3634 = vmatpush1.msra.mxu0 0.0
        %3635 = vmatprep.subr.mxu0 0.0
        %3636 = vmatpush1.msra.mxu0 0.0
        %3637 = vmatprep.subr.mxu0 0.0
        %3638 = vmatpush1.msra.mxu0 0.0
        %3639 = vmatprep.subr.mxu0 0.0
        %3640 = vmatpush1.msra.mxu0 0.0
        %3641 = vmatprep.subr.mxu0 0.0
        %3642 = vmatpush1.msra.mxu0 0.0
        %3643 = vmatprep.subr.mxu0 0.0
        %3644 = vmatpush1.msra.mxu0 0.0
        %3645 = vmatprep.subr.mxu0 0.0
        %3646 = vmatpush1.msra.mxu0 0.0
        %3647 = vmatprep.subr.mxu0 0.0
        %3648 = vmatpush1.msra.mxu0 0.0
        %3649 = vmatprep.subr.mxu0 0.0
        %3650 = vmatpush1.msra.mxu0 0.0
        %3651 = vmatprep.subr.mxu0 0.0
        %3652 = vmatpush1.msra.mxu0 0.0
        %3653 = vmatprep.subr.mxu0 0.0
        %3654 = vmatpush1.msra.mxu0 0.0
        %3655 = vmatprep.subr.mxu0 0.0
        %3656 = vmatpush1.msra.mxu0 0.0
        %3657 = vmatprep.subr.mxu0 0.0
        %3658 = vmatpush1.msra.mxu0 0.0
        %3659 = vmatprep.subr.mxu0 0.0
        %3660 = vmatpush1.msra.mxu0 0.0
        %3661 = vmatprep.subr.mxu0 0.0
        %3662 = vmatpush1.msra.mxu0 0.0
        %3663 = vmatprep.subr.mxu0 0.0
        %3664 = vmatpush1.msra.mxu0 0.0
        %3665 = vmatprep.subr.mxu0 0.0
        %3666 = vmatpush1.msra.mxu0 0.0
        %3667 = vmatprep.subr.mxu0 0.0
        %3668 = vmatpush1.msra.mxu0 0.0
        %3669 = vmatprep.subr.mxu0 0.0
        %3670 = vmatpush1.msra.mxu0 0.0
        %3671 = vmatprep.mubr.f32.mxu0 0.0
        %3672 = vmatmul.mubr.f32.gmra.mrb[0].mxu0 %v3605
        %v3673 = vpop.f32.mrb[0].mxu0
        %v3674 = vadd.f32 %v3602, %v3673
        %v3675 = vpop.f32.mrb[0].mxu0
        %v3676 = vadd.f32 %v3602, %v3675
        %3677 = vdwg.mxu0
        %v3678 = vtanh.pop %v3674
        %v3679 = vtanh.pop %v3676
        %3681 = vset.pattern.permute.xlu0 0
        %3682 = vperm.xlu0 %3681, %v3320
        %v3683 = vpop.permute.xlu0 %3682
        %v3685 = vmul.f32 %v3683, %v3678
        %v3686 = vmul.f32 %v3683, %v3679
        %v3687 = vmul.f32 %v3685, 1.442695
        %v3688 = vpow.pop %v3687
        %v3689 = vmul.f32 %v3686, 1.442695
        %v3690 = vpow.pop %v3689
        %v3693 = vrot.slane %v3688, 4
        %v3694 = vrot.slane %v3690, 4
        %v3697 = vmul.f32 %v3308, %v3693
        %v3698 = vmul.f32 %v3309, %v3694
        %v3699 = vadd.f32 %v3697, %v3674
        %v3700 = vadd.f32 %v3698, %v3676
        %v3701 = vsel %vm386, %v3685, 0.0
        %v3702 = vrot.slane %v3701, 4
        %v3703 = vadd.f32 %v3701, %v3702
        %v3704 = vrot.slane %v3703, 2
        %v3705 = vadd.f32 %v3703, %v3704
        %v3706 = vrot.slane %v3705, 1
        %v3707 = vadd.f32 %v3705, %v3706
        %v3708 = vsel %vm386, %v3686, 0.0
        %v3709 = vrot.slane %v3708, 4
        %v3710 = vadd.f32 %v3708, %v3709
        %v3711 = vrot.slane %v3710, 2
        %v3712 = vadd.f32 %v3710, %v3711
        %v3713 = vrot.slane %v3712, 1
        %v3714 = vadd.f32 %v3712, %v3713
        %v3715 = vsub.f32 %v3290, %v3707
        %v3716 = vsub.f32 %v3291, %v3714
        %3718 = vset.pattern.permute.xlu0 0
        %3719 = vperm.xlu0 %3718, %v3321
        %v3720 = vpop.permute.xlu0 %3719
        %v3722 = vmul.f32 %v3304, %v3720
        %v3723 = vmul.f32 %v3305, %v3720
        %3725 = vset.pattern.permute.xlu0 0
        %3726 = vperm.xlu0 %3725, %v3322
        %v3727 = vpop.permute.xlu0 %3726
        %v3729 = vadd.f32 %v3722, %v3727
        %v3730 = vadd.f32 %v3723, %v3727
        %v3731 = vmul.f32 %v3699, %v3720
        %v3732 = vmul.f32 %v3700, %v3720
        %v3733 = vadd.f32 %v3731, %v3727
        %v3734 = vadd.f32 %v3732, %v3727
        %s3735 = scalar_lea.vmem %s4, 768
        %v3736 = vld [vmem:[%s3735] sm:$0xff]
        %v3737 = vld [vmem:[%s3735 + $0x8] sm:$0xff]
        %v3738 = vld [vmem:[%s3735 + $0x10] sm:$0xff]
        %v3739 = vld [vmem:[%s3735 + $0x18] sm:$0xff]
        %v3740 = vld [vmem:[%s3735 + $0x20] sm:$0xff]
        %v3741 = vld [vmem:[%s3735 + $0x28] sm:$0xff]
        %v3742 = vld [vmem:[%s3735 + $0x30] sm:$0xff]
        %v3743 = vld [vmem:[%s3735 + $0x38] sm:$0xff]
        %v3744 = vld [vmem:[%s3735 + $0x40] sm:$0xff]
        %v3745 = vld [vmem:[%s3735 + $0x48] sm:$0xff]
        %v3746 = vld [vmem:[%s3735 + $0x50] sm:$0xff]
        %v3747 = vld [vmem:[%s3735 + $0x58] sm:$0xff]
        %s3748 = scalar_lea.vmem %s1, 256
        %v3749 = vld [vmem:[%s3748] sm:$0xff]
        %v3750 = vld [vmem:[%s3748 + $0x8] sm:$0xff]
        %v3751 = vld [vmem:[%s3748 + $0x10] sm:$0xff]
        %v3752 = vld [vmem:[%s3748 + $0x18] sm:$0xff]
        %s3753 = scalar_lea.vmem %s2, 256
        %v3754 = vld [vmem:[%s3753] sm:$0xff]
        %v3755 = vld [vmem:[%s3753 + $0x8] sm:$0xff]
        %v3756 = vld [vmem:[%s3753 + $0x10] sm:$0xff]
        %v3757 = vld [vmem:[%s3753 + $0x18] sm:$0xff]
        %s3758 = scalar_lea.vmem %s3, 64
        %v3759 = vld [vmem:[%s3758] sm:$0xff]
        %3761 = vset.pattern.permute.xlu0 0
        %3762 = vperm.xlu0 %3761, %v3736
        %v3763 = vpop.permute.xlu0 %3762
        %3766 = vset.pattern.permute.xlu0 0
        %3767 = vperm.xlu0 %3766, %v3737
        %v3768 = vpop.permute.xlu0 %3767
        %3771 = vset.pattern.permute.xlu0 0
        %3772 = vperm.xlu0 %3771, %v3738
        %v3773 = vpop.permute.xlu0 %3772
        %3776 = vset.pattern.permute.xlu0 0
        %3777 = vperm.xlu0 %3776, %v3739
        %v3778 = vpop.permute.xlu0 %3777
        %v3782 = vrot.slane %v3733, 4
        %v3783 = vrot.slane %v3734, 4
        %v3785 = vsel %vm373, %v3749, 0
        %v3788 = vsel %vm373, %v3750, 0
        %v3791 = vsel %vm373, %v3751, 0
        %v3794 = vsel %vm373, %v3752, 0
        %v3796 = vsel %vm386, %v3782, 0
        %v3798 = vsel %vm386, %v3783, 0
        %3800 = vmatprep.subr.mxu0 %v3798
        %3801 = vmatpush1.msra.mxu0 %v3796
        %3802 = vmatprep.subr.mxu0 0.0
        %3803 = vmatpush1.msra.mxu0 0.0
        %3804 = vmatprep.subr.mxu0 0.0
        %3805 = vmatpush1.msra.mxu0 0.0
        %3806 = vmatprep.subr.mxu0 0.0
        %3807 = vmatpush1.msra.mxu0 0.0
        %3808 = vmatprep.subr.mxu0 0.0
        %3809 = vmatpush1.msra.mxu0 0.0
        %3810 = vmatprep.subr.mxu0 0.0
        %3811 = vmatpush1.msra.mxu0 0.0
        %3812 = vmatprep.subr.mxu0 0.0
        %3813 = vmatpush1.msra.mxu0 0.0
        %3814 = vmatprep.subr.mxu0 0.0
        %3815 = vmatpush1.msra.mxu0 0.0
        %3816 = vmatprep.subr.mxu0 0.0
        %3817 = vmatpush1.msra.mxu0 0.0
        %3818 = vmatprep.subr.mxu0 0.0
        %3819 = vmatpush1.msra.mxu0 0.0
        %3820 = vmatprep.subr.mxu0 0.0
        %3821 = vmatpush1.msra.mxu0 0.0
        %3822 = vmatprep.subr.mxu0 0.0
        %3823 = vmatpush1.msra.mxu0 0.0
        %3824 = vmatprep.subr.mxu0 0.0
        %3825 = vmatpush1.msra.mxu0 0.0
        %3826 = vmatprep.subr.mxu0 0.0
        %3827 = vmatpush1.msra.mxu0 0.0
        %3828 = vmatprep.subr.mxu0 0.0
        %3829 = vmatpush1.msra.mxu0 0.0
        %3830 = vmatprep.subr.mxu0 0.0
        %3831 = vmatpush1.msra.mxu0 0.0
        %3832 = vmatprep.subr.mxu0 0.0
        %3833 = vmatpush1.msra.mxu0 0.0
        %3834 = vmatprep.subr.mxu0 0.0
        %3835 = vmatpush1.msra.mxu0 0.0
        %3836 = vmatprep.subr.mxu0 0.0
        %3837 = vmatpush1.msra.mxu0 0.0
        %3838 = vmatprep.subr.mxu0 0.0
        %3839 = vmatpush1.msra.mxu0 0.0
        %3840 = vmatprep.subr.mxu0 0.0
        %3841 = vmatpush1.msra.mxu0 0.0
        %3842 = vmatprep.subr.mxu0 0.0
        %3843 = vmatpush1.msra.mxu0 0.0
        %3844 = vmatprep.subr.mxu0 0.0
        %3845 = vmatpush1.msra.mxu0 0.0
        %3846 = vmatprep.subr.mxu0 0.0
        %3847 = vmatpush1.msra.mxu0 0.0
        %3848 = vmatprep.subr.mxu0 0.0
        %3849 = vmatpush1.msra.mxu0 0.0
        %3850 = vmatprep.subr.mxu0 0.0
        %3851 = vmatpush1.msra.mxu0 0.0
        %3852 = vmatprep.subr.mxu0 0.0
        %3853 = vmatpush1.msra.mxu0 0.0
        %3854 = vmatprep.subr.mxu0 0.0
        %3855 = vmatpush1.msra.mxu0 0.0
        %3856 = vmatprep.subr.mxu0 0.0
        %3857 = vmatpush1.msra.mxu0 0.0
        %3858 = vmatprep.subr.mxu0 0.0
        %3859 = vmatpush1.msra.mxu0 0.0
        %3860 = vmatprep.subr.mxu0 0.0
        %3861 = vmatpush1.msra.mxu0 0.0
        %3862 = vmatprep.subr.mxu0 0.0
        %3863 = vmatpush1.msra.mxu0 0.0
        %3864 = vmatprep.mubr.f32.mxu0 0.0
        %3865 = vmatmul.mubr.f32.gmra.mrb[0].mxu0 %v3785
        %v3866 = vpop.f32.mrb[0].mxu0
        %v3867 = vadd.f32 %v3763, %v3866
        %v3868 = vpop.f32.mrb[0].mxu0
        %v3869 = vadd.f32 %v3763, %v3868
        %3870 = vmatprep.mubr.f32.mxu0 0.0
        %3871 = vmatmul.mubr.f32.gmra.mrb[0].mxu0 %v3788
        %v3872 = vpop.f32.mrb[0].mxu0
        %v3873 = vadd.f32 %v3768, %v3872
        %v3874 = vpop.f32.mrb[0].mxu0
        %v3875 = vadd.f32 %v3768, %v3874
        %3876 = vmatprep.mubr.f32.mxu0 0.0
        %3877 = vmatmul.mubr.f32.gmra.mrb[0].mxu0 %v3791
        %v3878 = vpop.f32.mrb[0].mxu0
        %v3879 = vadd.f32 %v3773, %v3878
        %v3880 = vpop.f32.mrb[0].mxu0
        %v3881 = vadd.f32 %v3773, %v3880
        %3882 = vmatprep.mubr.f32.mxu0 0.0
        %3883 = vmatmul.mubr.f32.gmra.mrb[0].mxu0 %v3794
        %v3884 = vpop.f32.mrb[0].mxu0
        %v3885 = vadd.f32 %v3778, %v3884
        %v3886 = vpop.f32.mrb[0].mxu0
        %v3887 = vadd.f32 %v3778, %v3886
        %3888 = vdwg.mxu0
        %v3889 = vmax.f32 %v3867, 0.0
        %v3890 = vmax.f32 %v3869, 0.0
        %v3891 = vmax.f32 %v3873, 0.0
        %v3892 = vmax.f32 %v3875, 0.0
        %v3893 = vmax.f32 %v3879, 0.0
        %v3894 = vmax.f32 %v3881, 0.0
        %v3895 = vmax.f32 %v3885, 0.0
        %v3896 = vmax.f32 %v3887, 0.0
        %3898 = vset.pattern.permute.xlu0 0
        %3899 = vperm.xlu0 %3898, %v3740
        %v3900 = vpop.permute.xlu0 %3899
        %3903 = vset.pattern.permute.xlu0 0
        %3904 = vperm.xlu0 %3903, %v3741
        %v3905 = vpop.permute.xlu0 %3904
        %3908 = vset.pattern.permute.xlu0 0
        %3909 = vperm.xlu0 %3908, %v3742
        %v3910 = vpop.permute.xlu0 %3909
        %3913 = vset.pattern.permute.xlu0 0
        %3914 = vperm.xlu0 %3913, %v3743
        %v3915 = vpop.permute.xlu0 %3914
        %v3918 = vsel %vm508, %v3754, 0
        %v3921 = vsel %vm508, %v3755, 0
        %v3924 = vsel %vm508, %v3756, 0
        %v3927 = vsel %vm508, %v3757, 0
        %3929 = vmatprep.subr.mxu0 %v3890
        %3930 = vmatpush1.msra.mxu0 %v3889
        %3931 = vmatprep.subr.mxu0 %v3892
        %3932 = vmatpush1.msra.mxu0 %v3891
        %3933 = vmatprep.subr.mxu0 %v3894
        %3934 = vmatpush1.msra.mxu0 %v3893
        %3935 = vmatprep.subr.mxu0 %v3896
        %3936 = vmatpush1.msra.mxu0 %v3895
        %3937 = vmatprep.subr.mxu0 0.0
        %3938 = vmatpush1.msra.mxu0 0.0
        %3939 = vmatprep.subr.mxu0 0.0
        %3940 = vmatpush1.msra.mxu0 0.0
        %3941 = vmatprep.subr.mxu0 0.0
        %3942 = vmatpush1.msra.mxu0 0.0
        %3943 = vmatprep.subr.mxu0 0.0
        %3944 = vmatpush1.msra.mxu0 0.0
        %3945 = vmatprep.subr.mxu0 0.0
        %3946 = vmatpush1.msra.mxu0 0.0
        %3947 = vmatprep.subr.mxu0 0.0
        %3948 = vmatpush1.msra.mxu0 0.0
        %3949 = vmatprep.subr.mxu0 0.0
        %3950 = vmatpush1.msra.mxu0 0.0
        %3951 = vmatprep.subr.mxu0 0.0
        %3952 = vmatpush1.msra.mxu0 0.0
        %3953 = vmatprep.subr.mxu0 0.0
        %3954 = vmatpush1.msra.mxu0 0.0
        %3955 = vmatprep.subr.mxu0 0.0
        %3956 = vmatpush1.msra.mxu0 0.0
        %3957 = vmatprep.subr.mxu0 0.0
        %3958 = vmatpush1.msra.mxu0 0.0
        %3959 = vmatprep.subr.mxu0 0.0
        %3960 = vmatpush1.msra.mxu0 0.0
        %3961 = vmatprep.subr.mxu0 0.0
        %3962 = vmatpush1.msra.mxu0 0.0
        %3963 = vmatprep.subr.mxu0 0.0
        %3964 = vmatpush1.msra.mxu0 0.0
        %3965 = vmatprep.subr.mxu0 0.0
        %3966 = vmatpush1.msra.mxu0 0.0
        %3967 = vmatprep.subr.mxu0 0.0
        %3968 = vmatpush1.msra.mxu0 0.0
        %3969 = vmatprep.subr.mxu0 0.0
        %3970 = vmatpush1.msra.mxu0 0.0
        %3971 = vmatprep.subr.mxu0 0.0
        %3972 = vmatpush1.msra.mxu0 0.0
        %3973 = vmatprep.subr.mxu0 0.0
        %3974 = vmatpush1.msra.mxu0 0.0
        %3975 = vmatprep.subr.mxu0 0.0
        %3976 = vmatpush1.msra.mxu0 0.0
        %3977 = vmatprep.subr.mxu0 0.0
        %3978 = vmatpush1.msra.mxu0 0.0
        %3979 = vmatprep.subr.mxu0 0.0
        %3980 = vmatpush1.msra.mxu0 0.0
        %3981 = vmatprep.subr.mxu0 0.0
        %3982 = vmatpush1.msra.mxu0 0.0
        %3983 = vmatprep.subr.mxu0 0.0
        %3984 = vmatpush1.msra.mxu0 0.0
        %3985 = vmatprep.subr.mxu0 0.0
        %3986 = vmatpush1.msra.mxu0 0.0
        %3987 = vmatprep.subr.mxu0 0.0
        %3988 = vmatpush1.msra.mxu0 0.0
        %3989 = vmatprep.subr.mxu0 0.0
        %3990 = vmatpush1.msra.mxu0 0.0
        %3991 = vmatprep.subr.mxu0 0.0
        %3992 = vmatpush1.msra.mxu0 0.0
        %3993 = vmatprep.mubr.f32.mxu0 0.0
        %3994 = vmatmul.mubr.f32.gmra.mrb[0].mxu0 %v3918
        %v3995 = vpop.f32.mrb[0].mxu0
        %v3996 = vadd.f32 %v3900, %v3995
        %v3997 = vpop.f32.mrb[0].mxu0
        %v3998 = vadd.f32 %v3900, %v3997
        %3999 = vmatprep.mubr.f32.mxu0 0.0
        %4000 = vmatmul.mubr.f32.gmra.mrb[0].mxu0 %v3921
        %v4001 = vpop.f32.mrb[0].mxu0
        %v4002 = vadd.f32 %v3905, %v4001
        %v4003 = vpop.f32.mrb[0].mxu0
        %v4004 = vadd.f32 %v3905, %v4003
        %4005 = vmatprep.mubr.f32.mxu0 0.0
        %4006 = vmatmul.mubr.f32.gmra.mrb[0].mxu0 %v3924
        %v4007 = vpop.f32.mrb[0].mxu0
        %v4008 = vadd.f32 %v3910, %v4007
        %v4009 = vpop.f32.mrb[0].mxu0
        %v4010 = vadd.f32 %v3910, %v4009
        %4011 = vmatprep.mubr.f32.mxu0 0.0
        %4012 = vmatmul.mubr.f32.gmra.mrb[0].mxu0 %v3927
        %v4013 = vpop.f32.mrb[0].mxu0
        %v4014 = vadd.f32 %v3915, %v4013
        %v4015 = vpop.f32.mrb[0].mxu0
        %v4016 = vadd.f32 %v3915, %v4015
        %4017 = vdwg.mxu0
        %v4018 = vmax.f32 %v3996, 0.0
        %v4019 = vmax.f32 %v3998, 0.0
        %v4020 = vmax.f32 %v4002, 0.0
        %v4021 = vmax.f32 %v4004, 0.0
        %v4022 = vmax.f32 %v4008, 0.0
        %v4023 = vmax.f32 %v4010, 0.0
        %v4024 = vmax.f32 %v4014, 0.0
        %v4025 = vmax.f32 %v4016, 0.0
        %4027 = vset.pattern.permute.xlu0 0
        %4028 = vperm.xlu0 %4027, %v3744
        %v4029 = vpop.permute.xlu0 %4028
        %v4032 = vsel %vm508, %v3759, 0
        %4034 = vmatprep.subr.mxu0 %v4019
        %4035 = vmatpush1.msra.mxu0 %v4018
        %4036 = vmatprep.subr.mxu0 %v4021
        %4037 = vmatpush1.msra.mxu0 %v4020
        %4038 = vmatprep.subr.mxu0 %v4023
        %4039 = vmatpush1.msra.mxu0 %v4022
        %4040 = vmatprep.subr.mxu0 %v4025
        %4041 = vmatpush1.msra.mxu0 %v4024
        %4042 = vmatprep.subr.mxu0 0.0
        %4043 = vmatpush1.msra.mxu0 0.0
        %4044 = vmatprep.subr.mxu0 0.0
        %4045 = vmatpush1.msra.mxu0 0.0
        %4046 = vmatprep.subr.mxu0 0.0
        %4047 = vmatpush1.msra.mxu0 0.0
        %4048 = vmatprep.subr.mxu0 0.0
        %4049 = vmatpush1.msra.mxu0 0.0
        %4050 = vmatprep.subr.mxu0 0.0
        %4051 = vmatpush1.msra.mxu0 0.0
        %4052 = vmatprep.subr.mxu0 0.0
        %4053 = vmatpush1.msra.mxu0 0.0
        %4054 = vmatprep.subr.mxu0 0.0
        %4055 = vmatpush1.msra.mxu0 0.0
        %4056 = vmatprep.subr.mxu0 0.0
        %4057 = vmatpush1.msra.mxu0 0.0
        %4058 = vmatprep.subr.mxu0 0.0
        %4059 = vmatpush1.msra.mxu0 0.0
        %4060 = vmatprep.subr.mxu0 0.0
        %4061 = vmatpush1.msra.mxu0 0.0
        %4062 = vmatprep.subr.mxu0 0.0
        %4063 = vmatpush1.msra.mxu0 0.0
        %4064 = vmatprep.subr.mxu0 0.0
        %4065 = vmatpush1.msra.mxu0 0.0
        %4066 = vmatprep.subr.mxu0 0.0
        %4067 = vmatpush1.msra.mxu0 0.0
        %4068 = vmatprep.subr.mxu0 0.0
        %4069 = vmatpush1.msra.mxu0 0.0
        %4070 = vmatprep.subr.mxu0 0.0
        %4071 = vmatpush1.msra.mxu0 0.0
        %4072 = vmatprep.subr.mxu0 0.0
        %4073 = vmatpush1.msra.mxu0 0.0
        %4074 = vmatprep.subr.mxu0 0.0
        %4075 = vmatpush1.msra.mxu0 0.0
        %4076 = vmatprep.subr.mxu0 0.0
        %4077 = vmatpush1.msra.mxu0 0.0
        %4078 = vmatprep.subr.mxu0 0.0
        %4079 = vmatpush1.msra.mxu0 0.0
        %4080 = vmatprep.subr.mxu0 0.0
        %4081 = vmatpush1.msra.mxu0 0.0
        %4082 = vmatprep.subr.mxu0 0.0
        %4083 = vmatpush1.msra.mxu0 0.0
        %4084 = vmatprep.subr.mxu0 0.0
        %4085 = vmatpush1.msra.mxu0 0.0
        %4086 = vmatprep.subr.mxu0 0.0
        %4087 = vmatpush1.msra.mxu0 0.0
        %4088 = vmatprep.subr.mxu0 0.0
        %4089 = vmatpush1.msra.mxu0 0.0
        %4090 = vmatprep.subr.mxu0 0.0
        %4091 = vmatpush1.msra.mxu0 0.0
        %4092 = vmatprep.subr.mxu0 0.0
        %4093 = vmatpush1.msra.mxu0 0.0
        %4094 = vmatprep.subr.mxu0 0.0
        %4095 = vmatpush1.msra.mxu0 0.0
        %4096 = vmatprep.subr.mxu0 0.0
        %4097 = vmatpush1.msra.mxu0 0.0
        %4098 = vmatprep.mubr.f32.mxu0 0.0
        %4099 = vmatmul.mubr.f32.gmra.mrb[0].mxu0 %v4032
        %v4100 = vpop.f32.mrb[0].mxu0
        %v4101 = vadd.f32 %v4029, %v4100
        %v4102 = vpop.f32.mrb[0].mxu0
        %v4103 = vadd.f32 %v4029, %v4102
        %4104 = vdwg.mxu0
        %v4105 = vtanh.pop %v4101
        %v4106 = vtanh.pop %v4103
        %4108 = vset.pattern.permute.xlu0 0
        %4109 = vperm.xlu0 %4108, %v3745
        %v4110 = vpop.permute.xlu0 %4109
        %v4112 = vmul.f32 %v4110, %v4105
        %v4113 = vmul.f32 %v4110, %v4106
        %v4114 = vmul.f32 %v4112, 1.442695
        %v4115 = vpow.pop %v4114
        %v4116 = vmul.f32 %v4113, 1.442695
        %v4117 = vpow.pop %v4116
        %v4118 = vmul.f32 %v3729, %v4115
        %v4119 = vmul.f32 %v3730, %v4117
        %v4122 = vrot.slane %v4101, 4
        %v4123 = vrot.slane %v4103, 4
        %v4126 = vadd.f32 %v4118, %v4122
        %v4127 = vadd.f32 %v4119, %v4123
        %v4128 = vsel %vm386, %v4112, 0.0
        %v4129 = vrot.slane %v4128, 4
        %v4130 = vadd.f32 %v4128, %v4129
        %v4131 = vrot.slane %v4130, 2
        %v4132 = vadd.f32 %v4130, %v4131
        %v4133 = vrot.slane %v4132, 1
        %v4134 = vadd.f32 %v4132, %v4133
        %v4135 = vsel %vm386, %v4113, 0.0
        %v4136 = vrot.slane %v4135, 4
        %v4137 = vadd.f32 %v4135, %v4136
        %v4138 = vrot.slane %v4137, 2
        %v4139 = vadd.f32 %v4137, %v4138
        %v4140 = vrot.slane %v4139, 1
        %v4141 = vadd.f32 %v4139, %v4140
        %v4142 = vsub.f32 %v3715, %v4134
        %v4143 = vsub.f32 %v3716, %v4141
        %4145 = vset.pattern.permute.xlu0 0
        %4146 = vperm.xlu0 %4145, %v3746
        %v4147 = vpop.permute.xlu0 %4146
        %v4149 = vmul.f32 %v4126, %v4147
        %v4150 = vmul.f32 %v4127, %v4147
        %4152 = vset.pattern.permute.xlu0 0
        %4153 = vperm.xlu0 %4152, %v3747
        %v4154 = vpop.permute.xlu0 %4153
        %v4156 = vadd.f32 %v4149, %v4154
        %v4157 = vadd.f32 %v4150, %v4154
        %v4158 = vmul.f32 %v3733, %v4147
        %v4159 = vmul.f32 %v3734, %v4147
        %v4160 = vadd.f32 %v4158, %v4154
        %v4161 = vadd.f32 %v4159, %v4154
        %s4162 = scalar_lea.vmem %s4, 864
        %v4163 = vld [vmem:[%s4162] sm:$0xff]
        %v4164 = vld [vmem:[%s4162 + $0x8] sm:$0xff]
        %v4165 = vld [vmem:[%s4162 + $0x10] sm:$0xff]
        %v4166 = vld [vmem:[%s4162 + $0x18] sm:$0xff]
        %v4167 = vld [vmem:[%s4162 + $0x20] sm:$0xff]
        %v4168 = vld [vmem:[%s4162 + $0x28] sm:$0xff]
        %v4169 = vld [vmem:[%s4162 + $0x30] sm:$0xff]
        %v4170 = vld [vmem:[%s4162 + $0x38] sm:$0xff]
        %v4171 = vld [vmem:[%s4162 + $0x40] sm:$0xff]
        %v4172 = vld [vmem:[%s4162 + $0x48] sm:$0xff]
        %v4173 = vld [vmem:[%s4162 + $0x50] sm:$0xff]
        %v4174 = vld [vmem:[%s4162 + $0x58] sm:$0xff]
        %s4175 = scalar_lea.vmem %s1, 288
        %v4176 = vld [vmem:[%s4175] sm:$0xff]
        %v4177 = vld [vmem:[%s4175 + $0x8] sm:$0xff]
        %v4178 = vld [vmem:[%s4175 + $0x10] sm:$0xff]
        %v4179 = vld [vmem:[%s4175 + $0x18] sm:$0xff]
        %s4180 = scalar_lea.vmem %s2, 288
        %v4181 = vld [vmem:[%s4180] sm:$0xff]
        %v4182 = vld [vmem:[%s4180 + $0x8] sm:$0xff]
        %v4183 = vld [vmem:[%s4180 + $0x10] sm:$0xff]
        %v4184 = vld [vmem:[%s4180 + $0x18] sm:$0xff]
        %s4185 = scalar_lea.vmem %s3, 72
        %v4186 = vld [vmem:[%s4185] sm:$0xff]
        %4188 = vset.pattern.permute.xlu0 0
        %4189 = vperm.xlu0 %4188, %v4163
        %v4190 = vpop.permute.xlu0 %4189
        %4193 = vset.pattern.permute.xlu0 0
        %4194 = vperm.xlu0 %4193, %v4164
        %v4195 = vpop.permute.xlu0 %4194
        %4198 = vset.pattern.permute.xlu0 0
        %4199 = vperm.xlu0 %4198, %v4165
        %v4200 = vpop.permute.xlu0 %4199
        %4203 = vset.pattern.permute.xlu0 0
        %4204 = vperm.xlu0 %4203, %v4166
        %v4205 = vpop.permute.xlu0 %4204
        %v4208 = vsel %vm373, %v4176, 0
        %v4211 = vsel %vm373, %v4177, 0
        %v4214 = vsel %vm373, %v4178, 0
        %v4217 = vsel %vm373, %v4179, 0
        %v4220 = vsel %vm386, %v4156, 0
        %v4223 = vsel %vm386, %v4157, 0
        %4225 = vmatprep.subr.mxu0 %v4223
        %4226 = vmatpush1.msra.mxu0 %v4220
        %4227 = vmatprep.subr.mxu0 0.0
        %4228 = vmatpush1.msra.mxu0 0.0
        %4229 = vmatprep.subr.mxu0 0.0
        %4230 = vmatpush1.msra.mxu0 0.0
        %4231 = vmatprep.subr.mxu0 0.0
        %4232 = vmatpush1.msra.mxu0 0.0
        %4233 = vmatprep.subr.mxu0 0.0
        %4234 = vmatpush1.msra.mxu0 0.0
        %4235 = vmatprep.subr.mxu0 0.0
        %4236 = vmatpush1.msra.mxu0 0.0
        %4237 = vmatprep.subr.mxu0 0.0
        %4238 = vmatpush1.msra.mxu0 0.0
        %4239 = vmatprep.subr.mxu0 0.0
        %4240 = vmatpush1.msra.mxu0 0.0
        %4241 = vmatprep.subr.mxu0 0.0
        %4242 = vmatpush1.msra.mxu0 0.0
        %4243 = vmatprep.subr.mxu0 0.0
        %4244 = vmatpush1.msra.mxu0 0.0
        %4245 = vmatprep.subr.mxu0 0.0
        %4246 = vmatpush1.msra.mxu0 0.0
        %4247 = vmatprep.subr.mxu0 0.0
        %4248 = vmatpush1.msra.mxu0 0.0
        %4249 = vmatprep.subr.mxu0 0.0
        %4250 = vmatpush1.msra.mxu0 0.0
        %4251 = vmatprep.subr.mxu0 0.0
        %4252 = vmatpush1.msra.mxu0 0.0
        %4253 = vmatprep.subr.mxu0 0.0
        %4254 = vmatpush1.msra.mxu0 0.0
        %4255 = vmatprep.subr.mxu0 0.0
        %4256 = vmatpush1.msra.mxu0 0.0
        %4257 = vmatprep.subr.mxu0 0.0
        %4258 = vmatpush1.msra.mxu0 0.0
        %4259 = vmatprep.subr.mxu0 0.0
        %4260 = vmatpush1.msra.mxu0 0.0
        %4261 = vmatprep.subr.mxu0 0.0
        %4262 = vmatpush1.msra.mxu0 0.0
        %4263 = vmatprep.subr.mxu0 0.0
        %4264 = vmatpush1.msra.mxu0 0.0
        %4265 = vmatprep.subr.mxu0 0.0
        %4266 = vmatpush1.msra.mxu0 0.0
        %4267 = vmatprep.subr.mxu0 0.0
        %4268 = vmatpush1.msra.mxu0 0.0
        %4269 = vmatprep.subr.mxu0 0.0
        %4270 = vmatpush1.msra.mxu0 0.0
        %4271 = vmatprep.subr.mxu0 0.0
        %4272 = vmatpush1.msra.mxu0 0.0
        %4273 = vmatprep.subr.mxu0 0.0
        %4274 = vmatpush1.msra.mxu0 0.0
        %4275 = vmatprep.subr.mxu0 0.0
        %4276 = vmatpush1.msra.mxu0 0.0
        %4277 = vmatprep.subr.mxu0 0.0
        %4278 = vmatpush1.msra.mxu0 0.0
        %4279 = vmatprep.subr.mxu0 0.0
        %4280 = vmatpush1.msra.mxu0 0.0
        %4281 = vmatprep.subr.mxu0 0.0
        %4282 = vmatpush1.msra.mxu0 0.0
        %4283 = vmatprep.subr.mxu0 0.0
        %4284 = vmatpush1.msra.mxu0 0.0
        %4285 = vmatprep.subr.mxu0 0.0
        %4286 = vmatpush1.msra.mxu0 0.0
        %4287 = vmatprep.subr.mxu0 0.0
        %4288 = vmatpush1.msra.mxu0 0.0
        %4289 = vmatprep.mubr.f32.mxu0 0.0
        %4290 = vmatmul.mubr.f32.gmra.mrb[0].mxu0 %v4208
        %v4291 = vpop.f32.mrb[0].mxu0
        %v4292 = vadd.f32 %v4190, %v4291
        %v4293 = vpop.f32.mrb[0].mxu0
        %v4294 = vadd.f32 %v4190, %v4293
        %4295 = vmatprep.mubr.f32.mxu0 0.0
        %4296 = vmatmul.mubr.f32.gmra.mrb[0].mxu0 %v4211
        %v4297 = vpop.f32.mrb[0].mxu0
        %v4298 = vadd.f32 %v4195, %v4297
        %v4299 = vpop.f32.mrb[0].mxu0
        %v4300 = vadd.f32 %v4195, %v4299
        %4301 = vmatprep.mubr.f32.mxu0 0.0
        %4302 = vmatmul.mubr.f32.gmra.mrb[0].mxu0 %v4214
        %v4303 = vpop.f32.mrb[0].mxu0
        %v4304 = vadd.f32 %v4200, %v4303
        %v4305 = vpop.f32.mrb[0].mxu0
        %v4306 = vadd.f32 %v4200, %v4305
        %4307 = vmatprep.mubr.f32.mxu0 0.0
        %4308 = vmatmul.mubr.f32.gmra.mrb[0].mxu0 %v4217
        %v4309 = vpop.f32.mrb[0].mxu0
        %v4310 = vadd.f32 %v4205, %v4309
        %v4311 = vpop.f32.mrb[0].mxu0
        %v4312 = vadd.f32 %v4205, %v4311
        %4313 = vdwg.mxu0
        %v4314 = vmax.f32 %v4292, 0.0
        %v4315 = vmax.f32 %v4294, 0.0
        %v4316 = vmax.f32 %v4298, 0.0
        %v4317 = vmax.f32 %v4300, 0.0
        %v4318 = vmax.f32 %v4304, 0.0
        %v4319 = vmax.f32 %v4306, 0.0
        %v4320 = vmax.f32 %v4310, 0.0
        %v4321 = vmax.f32 %v4312, 0.0
        %4323 = vset.pattern.permute.xlu0 0
        %4324 = vperm.xlu0 %4323, %v4167
        %v4325 = vpop.permute.xlu0 %4324
        %4328 = vset.pattern.permute.xlu0 0
        %4329 = vperm.xlu0 %4328, %v4168
        %v4330 = vpop.permute.xlu0 %4329
        %4333 = vset.pattern.permute.xlu0 0
        %4334 = vperm.xlu0 %4333, %v4169
        %v4335 = vpop.permute.xlu0 %4334
        %4338 = vset.pattern.permute.xlu0 0
        %4339 = vperm.xlu0 %4338, %v4170
        %v4340 = vpop.permute.xlu0 %4339
        %v4343 = vsel %vm508, %v4181, 0
        %v4346 = vsel %vm508, %v4182, 0
        %v4349 = vsel %vm508, %v4183, 0
        %v4352 = vsel %vm508, %v4184, 0
        %4354 = vmatprep.subr.mxu0 %v4315
        %4355 = vmatpush1.msra.mxu0 %v4314
        %4356 = vmatprep.subr.mxu0 %v4317
        %4357 = vmatpush1.msra.mxu0 %v4316
        %4358 = vmatprep.subr.mxu0 %v4319
        %4359 = vmatpush1.msra.mxu0 %v4318
        %4360 = vmatprep.subr.mxu0 %v4321
        %4361 = vmatpush1.msra.mxu0 %v4320
        %4362 = vmatprep.subr.mxu0 0.0
        %4363 = vmatpush1.msra.mxu0 0.0
        %4364 = vmatprep.subr.mxu0 0.0
        %4365 = vmatpush1.msra.mxu0 0.0
        %4366 = vmatprep.subr.mxu0 0.0
        %4367 = vmatpush1.msra.mxu0 0.0
        %4368 = vmatprep.subr.mxu0 0.0
        %4369 = vmatpush1.msra.mxu0 0.0
        %4370 = vmatprep.subr.mxu0 0.0
        %4371 = vmatpush1.msra.mxu0 0.0
        %4372 = vmatprep.subr.mxu0 0.0
        %4373 = vmatpush1.msra.mxu0 0.0
        %4374 = vmatprep.subr.mxu0 0.0
        %4375 = vmatpush1.msra.mxu0 0.0
        %4376 = vmatprep.subr.mxu0 0.0
        %4377 = vmatpush1.msra.mxu0 0.0
        %4378 = vmatprep.subr.mxu0 0.0
        %4379 = vmatpush1.msra.mxu0 0.0
        %4380 = vmatprep.subr.mxu0 0.0
        %4381 = vmatpush1.msra.mxu0 0.0
        %4382 = vmatprep.subr.mxu0 0.0
        %4383 = vmatpush1.msra.mxu0 0.0
        %4384 = vmatprep.subr.mxu0 0.0
        %4385 = vmatpush1.msra.mxu0 0.0
        %4386 = vmatprep.subr.mxu0 0.0
        %4387 = vmatpush1.msra.mxu0 0.0
        %4388 = vmatprep.subr.mxu0 0.0
        %4389 = vmatpush1.msra.mxu0 0.0
        %4390 = vmatprep.subr.mxu0 0.0
        %4391 = vmatpush1.msra.mxu0 0.0
        %4392 = vmatprep.subr.mxu0 0.0
        %4393 = vmatpush1.msra.mxu0 0.0
        %4394 = vmatprep.subr.mxu0 0.0
        %4395 = vmatpush1.msra.mxu0 0.0
        %4396 = vmatprep.subr.mxu0 0.0
        %4397 = vmatpush1.msra.mxu0 0.0
        %4398 = vmatprep.subr.mxu0 0.0
        %4399 = vmatpush1.msra.mxu0 0.0
        %4400 = vmatprep.subr.mxu0 0.0
        %4401 = vmatpush1.msra.mxu0 0.0
        %4402 = vmatprep.subr.mxu0 0.0
        %4403 = vmatpush1.msra.mxu0 0.0
        %4404 = vmatprep.subr.mxu0 0.0
        %4405 = vmatpush1.msra.mxu0 0.0
        %4406 = vmatprep.subr.mxu0 0.0
        %4407 = vmatpush1.msra.mxu0 0.0
        %4408 = vmatprep.subr.mxu0 0.0
        %4409 = vmatpush1.msra.mxu0 0.0
        %4410 = vmatprep.subr.mxu0 0.0
        %4411 = vmatpush1.msra.mxu0 0.0
        %4412 = vmatprep.subr.mxu0 0.0
        %4413 = vmatpush1.msra.mxu0 0.0
        %4414 = vmatprep.subr.mxu0 0.0
        %4415 = vmatpush1.msra.mxu0 0.0
        %4416 = vmatprep.subr.mxu0 0.0
        %4417 = vmatpush1.msra.mxu0 0.0
        %4418 = vmatprep.mubr.f32.mxu0 0.0
        %4419 = vmatmul.mubr.f32.gmra.mrb[0].mxu0 %v4343
        %v4420 = vpop.f32.mrb[0].mxu0
        %v4421 = vadd.f32 %v4325, %v4420
        %v4422 = vpop.f32.mrb[0].mxu0
        %v4423 = vadd.f32 %v4325, %v4422
        %4424 = vmatprep.mubr.f32.mxu0 0.0
        %4425 = vmatmul.mubr.f32.gmra.mrb[0].mxu0 %v4346
        %v4426 = vpop.f32.mrb[0].mxu0
        %v4427 = vadd.f32 %v4330, %v4426
        %v4428 = vpop.f32.mrb[0].mxu0
        %v4429 = vadd.f32 %v4330, %v4428
        %4430 = vmatprep.mubr.f32.mxu0 0.0
        %4431 = vmatmul.mubr.f32.gmra.mrb[0].mxu0 %v4349
        %v4432 = vpop.f32.mrb[0].mxu0
        %v4433 = vadd.f32 %v4335, %v4432
        %v4434 = vpop.f32.mrb[0].mxu0
        %v4435 = vadd.f32 %v4335, %v4434
        %4436 = vmatprep.mubr.f32.mxu0 0.0
        %4437 = vmatmul.mubr.f32.gmra.mrb[0].mxu0 %v4352
        %v4438 = vpop.f32.mrb[0].mxu0
        %v4439 = vadd.f32 %v4340, %v4438
        %v4440 = vpop.f32.mrb[0].mxu0
        %v4441 = vadd.f32 %v4340, %v4440
        %4442 = vdwg.mxu0
        %v4443 = vmax.f32 %v4421, 0.0
        %v4444 = vmax.f32 %v4423, 0.0
        %v4445 = vmax.f32 %v4427, 0.0
        %v4446 = vmax.f32 %v4429, 0.0
        %v4447 = vmax.f32 %v4433, 0.0
        %v4448 = vmax.f32 %v4435, 0.0
        %v4449 = vmax.f32 %v4439, 0.0
        %v4450 = vmax.f32 %v4441, 0.0
        %4452 = vset.pattern.permute.xlu0 0
        %4453 = vperm.xlu0 %4452, %v4171
        %v4454 = vpop.permute.xlu0 %4453
        %v4457 = vsel %vm508, %v4186, 0
        %4459 = vmatprep.subr.mxu0 %v4444
        %4460 = vmatpush1.msra.mxu0 %v4443
        %4461 = vmatprep.subr.mxu0 %v4446
        %4462 = vmatpush1.msra.mxu0 %v4445
        %4463 = vmatprep.subr.mxu0 %v4448
        %4464 = vmatpush1.msra.mxu0 %v4447
        %4465 = vmatprep.subr.mxu0 %v4450
        %4466 = vmatpush1.msra.mxu0 %v4449
        %4467 = vmatprep.subr.mxu0 0.0
        %4468 = vmatpush1.msra.mxu0 0.0
        %4469 = vmatprep.subr.mxu0 0.0
        %4470 = vmatpush1.msra.mxu0 0.0
        %4471 = vmatprep.subr.mxu0 0.0
        %4472 = vmatpush1.msra.mxu0 0.0
        %4473 = vmatprep.subr.mxu0 0.0
        %4474 = vmatpush1.msra.mxu0 0.0
        %4475 = vmatprep.subr.mxu0 0.0
        %4476 = vmatpush1.msra.mxu0 0.0
        %4477 = vmatprep.subr.mxu0 0.0
        %4478 = vmatpush1.msra.mxu0 0.0
        %4479 = vmatprep.subr.mxu0 0.0
        %4480 = vmatpush1.msra.mxu0 0.0
        %4481 = vmatprep.subr.mxu0 0.0
        %4482 = vmatpush1.msra.mxu0 0.0
        %4483 = vmatprep.subr.mxu0 0.0
        %4484 = vmatpush1.msra.mxu0 0.0
        %4485 = vmatprep.subr.mxu0 0.0
        %4486 = vmatpush1.msra.mxu0 0.0
        %4487 = vmatprep.subr.mxu0 0.0
        %4488 = vmatpush1.msra.mxu0 0.0
        %4489 = vmatprep.subr.mxu0 0.0
        %4490 = vmatpush1.msra.mxu0 0.0
        %4491 = vmatprep.subr.mxu0 0.0
        %4492 = vmatpush1.msra.mxu0 0.0
        %4493 = vmatprep.subr.mxu0 0.0
        %4494 = vmatpush1.msra.mxu0 0.0
        %4495 = vmatprep.subr.mxu0 0.0
        %4496 = vmatpush1.msra.mxu0 0.0
        %4497 = vmatprep.subr.mxu0 0.0
        %4498 = vmatpush1.msra.mxu0 0.0
        %4499 = vmatprep.subr.mxu0 0.0
        %4500 = vmatpush1.msra.mxu0 0.0
        %4501 = vmatprep.subr.mxu0 0.0
        %4502 = vmatpush1.msra.mxu0 0.0
        %4503 = vmatprep.subr.mxu0 0.0
        %4504 = vmatpush1.msra.mxu0 0.0
        %4505 = vmatprep.subr.mxu0 0.0
        %4506 = vmatpush1.msra.mxu0 0.0
        %4507 = vmatprep.subr.mxu0 0.0
        %4508 = vmatpush1.msra.mxu0 0.0
        %4509 = vmatprep.subr.mxu0 0.0
        %4510 = vmatpush1.msra.mxu0 0.0
        %4511 = vmatprep.subr.mxu0 0.0
        %4512 = vmatpush1.msra.mxu0 0.0
        %4513 = vmatprep.subr.mxu0 0.0
        %4514 = vmatpush1.msra.mxu0 0.0
        %4515 = vmatprep.subr.mxu0 0.0
        %4516 = vmatpush1.msra.mxu0 0.0
        %4517 = vmatprep.subr.mxu0 0.0
        %4518 = vmatpush1.msra.mxu0 0.0
        %4519 = vmatprep.subr.mxu0 0.0
        %4520 = vmatpush1.msra.mxu0 0.0
        %4521 = vmatprep.subr.mxu0 0.0
        %4522 = vmatpush1.msra.mxu0 0.0
        %4523 = vmatprep.mubr.f32.mxu0 0.0
        %4524 = vmatmul.mubr.f32.gmra.mrb[0].mxu0 %v4457
        %v4525 = vpop.f32.mrb[0].mxu0
        %v4526 = vadd.f32 %v4454, %v4525
        %v4527 = vpop.f32.mrb[0].mxu0
        %v4528 = vadd.f32 %v4454, %v4527
        %4529 = vdwg.mxu0
        %v4530 = vtanh.pop %v4526
        %v4531 = vtanh.pop %v4528
        %4533 = vset.pattern.permute.xlu0 0
        %4534 = vperm.xlu0 %4533, %v4172
        %v4535 = vpop.permute.xlu0 %4534
        %v4537 = vmul.f32 %v4535, %v4530
        %v4538 = vmul.f32 %v4535, %v4531
        %v4539 = vmul.f32 %v4537, 1.442695
        %v4540 = vpow.pop %v4539
        %v4541 = vmul.f32 %v4538, 1.442695
        %v4542 = vpow.pop %v4541
        %v4545 = vrot.slane %v4540, 4
        %v4546 = vrot.slane %v4542, 4
        %v4549 = vmul.f32 %v4160, %v4545
        %v4550 = vmul.f32 %v4161, %v4546
        %v4551 = vadd.f32 %v4549, %v4526
        %v4552 = vadd.f32 %v4550, %v4528
        %v4553 = vsel %vm386, %v4537, 0.0
        %v4554 = vrot.slane %v4553, 4
        %v4555 = vadd.f32 %v4553, %v4554
        %v4556 = vrot.slane %v4555, 2
        %v4557 = vadd.f32 %v4555, %v4556
        %v4558 = vrot.slane %v4557, 1
        %v4559 = vadd.f32 %v4557, %v4558
        %v4560 = vsel %vm386, %v4538, 0.0
        %v4561 = vrot.slane %v4560, 4
        %v4562 = vadd.f32 %v4560, %v4561
        %v4563 = vrot.slane %v4562, 2
        %v4564 = vadd.f32 %v4562, %v4563
        %v4565 = vrot.slane %v4564, 1
        %v4566 = vadd.f32 %v4564, %v4565
        %v4567 = vsub.f32 %v4142, %v4559
        %v4568 = vsub.f32 %v4143, %v4566
        %4570 = vset.pattern.permute.xlu0 0
        %4571 = vperm.xlu0 %4570, %v4173
        %v4572 = vpop.permute.xlu0 %4571
        %v4574 = vmul.f32 %v4156, %v4572
        %v4575 = vmul.f32 %v4157, %v4572
        %4577 = vset.pattern.permute.xlu0 0
        %4578 = vperm.xlu0 %4577, %v4174
        %v4579 = vpop.permute.xlu0 %4578
        %v4581 = vadd.f32 %v4574, %v4579
        %v4582 = vadd.f32 %v4575, %v4579
        %v4583 = vmul.f32 %v4551, %v4572
        %v4584 = vmul.f32 %v4552, %v4572
        %v4585 = vadd.f32 %v4583, %v4579
        %v4586 = vadd.f32 %v4584, %v4579
        %s4587 = sld [smem:[#allocation2]]
        %v4588 = vsel %vm386, %v4581, %v4585
        %v4589 = vsel %vm386, %v4582, %v4586
        %v4590 = vstv %s4587
        %v4591 = vmul.f32 %v4588, %v4590
        %v4592 = vmul.f32 %v4589, %v4590
        %4593 = vst [vmem:[%s290] sm:$0xff] %v4591
        %4594 = vst [vmem:[%s290 + $0x8] sm:$0xff] %v4592
        %v4597 = vcombine.low %v4567, %v4568
        %v4599 = vunpack.c.l.s4 1966171168
        %v4600 = vunpack.c.0.s8 %v4599
        %v4601 = vlaneseq
        %v4602 = vshrl.u32 %v4601, 7
        %v4603 = vsub.s32 %v4600, %v4602
        %v4604 = vrot.slane %v4597, %v4603
        %v4606 = vunpack.c.l.s4 1966171168
        %v4607 = vunpack.c.0.s8 %v4606
        %v4608 = vlaneseq
        %v4609 = vshrl.u32 %v4608, 7
        %v4610 = vsub.s32 %v4607, %v4609
        %v4611 = vrot.slane %v4604, %v4610
        %v4613 = vlaneseq
        %vm4614 = vcmp.ge.s32.totalorder %v4613, 0
        %vm4615 = vcmp.lt.s32.totalorder %v4613, 256
        %vm4616 = vmand %vm4614, %vm4615
        %4617 = vst.msk [vmem:[%s297] sm:$0x3] %vm4616, %v4611
        %s4618 = sand.u32 %s165, 1
        %s4619 = scalar_lea.sflag [#allocation3], %s4618
        %s4620 = sand.u32 %s165, 1
        %s4621 = smul.addr %s4620, 16
        %s4622 = scalar_lea.vmem [#allocation5], %s4621
        %s4623 = sand.u32 %s191, 1
        %s4624 = scalar_lea.sflag [#allocation7], %s4623
        %s4625 = sand.u32 %s191, 1
        %s4626 = smul.addr %s4625, 2
        %s4627 = scalar_lea.vmem [#allocation6], %s4626
        // Predicated region
        $region49: #{tpu_custom_call.1} parent=43 // pred_check
          %p4628 = pneg %p175
        $region50: #{tpu_custom_call.1} parent=43 // pred_check_branch
          %4630 = sbr.rel (%p4628) target = $region52
        $region51: #{tpu_custom_call.1} parent=43 // pred_region
          %s4631 = smul.u32 2, %s26
          %s4633 = ssub.s32 256, 256
          %4634 = vsyncadd %s4619, %s4633
          %s4635 = smul.addr %s4631, 128
          %s4636 = scalar_lea.hbm %s6, %s4635
          %s4638 = sshll.u32 %s4622, 4
          %s4639 = int_to_ptr.vmem [resolvable:$true] %s4638
          %4641 = dma.vmem_to_hbm [thread:$0]  %s4639, 256, %s4636, %s4619
        $region52: #{tpu_custom_call.1} parent=43 // pred_fallthru
          _
        // Predicated region
        $region53: #{tpu_custom_call.1} parent=43 // pred_check
          %p4642 = pneg %p201
        $region54: #{tpu_custom_call.1} parent=43 // pred_check_branch
          %4644 = sbr.rel (%p4642) target = $region56
        $region55: #{tpu_custom_call.1} parent=43 // pred_region
          %s4645 = smul.u32 2, %s26
          %s4647 = ssub.s32 32, 32
          %4648 = vsyncadd %s4624, %s4647
          %s4649 = smul.addr %s4645, 16
          %s4650 = scalar_lea.hbm %s7, %s4649
          %s4652 = sshll.u32 %s4627, 4
          %s4653 = int_to_ptr.vmem [resolvable:$true] %s4652
          %4655 = dma.vmem_to_hbm [thread:$0]  %s4653, 32, %s4650, %s4624
        $region56: #{tpu_custom_call.1} parent=43 // pred_fallthru
          _
      $region44: #{tpu_custom_call.1} parent=5 // pred_fallthru
        _
      %p4656 = scmp.le.s32.totalorder 2, %s21
      // Predicated region
      $region57: #{tpu_custom_call.1} parent=5 // pred_check
        %p4657 = pneg %p4656
      $region58: #{tpu_custom_call.1} parent=5 // pred_check_branch
        %4659 = sbr.rel (%p4657) target = $region60
      $region59: #{tpu_custom_call.1} parent=5 // pred_region
        %s4660 = ssub.s32 %s21, 2
        // Predicated region
        $region61: #{tpu_custom_call.1} parent=59 // pred_check
          %p4661 = pneg %p181
        $region62: #{tpu_custom_call.1} parent=59 // pred_check_branch
          %4663 = sbr.rel (%p4661) target = $region64
        $region63: #{tpu_custom_call.1} parent=59 // pred_region
          %s4664 = sand.u32 %s166, 1
          %s4665 = scalar_lea.sflag [#allocation3], %s4664
          %s4666 = sand.u32 %s166, 1
          %s4667 = smul.addr %s4666, 16
          %s4668 = scalar_lea.vmem [#allocation5], %s4667
          %4669 = dma.done %s4665, 256
        $region64: #{tpu_custom_call.1} parent=59 // pred_fallthru
          _
        // Predicated region
        $region65: #{tpu_custom_call.1} parent=59 // pred_check
          %p4670 = pneg %p207
        $region66: #{tpu_custom_call.1} parent=59 // pred_check_branch
          %4672 = sbr.rel (%p4670) target = $region68
        $region67: #{tpu_custom_call.1} parent=59 // pred_region
          %s4673 = sand.u32 %s192, 1
          %s4674 = scalar_lea.sflag [#allocation7], %s4673
          %s4675 = sand.u32 %s192, 1
          %s4676 = smul.addr %s4675, 2
          %s4677 = scalar_lea.vmem [#allocation6], %s4676
          %4678 = dma.done %s4674, 32
        $region68: #{tpu_custom_call.1} parent=59 // pred_fallthru
          _
      $region60: #{tpu_custom_call.1} parent=5 // pred_fallthru
        _
    $region6: #{tpu_custom_call.1} parent=1 // loop_footer
      %s25 = sadd.s32 1, %s21
    $region7: #{tpu_custom_call.1} parent=1 // loop_footer_branch
      %20 = sbr.rel target = $region3
    $region8: #{tpu_custom_call.1} parent=1 // loop_exit
      _
    %4679 = vsyncpa [#allocation3], 1
    %s4680 = scalar_lea.sflag [#allocation3], 1
    %4681 = vsyncpa %s4680, 1
    %4682 = vsyncpa [#allocation7], 1
    %s4683 = scalar_lea.sflag [#allocation7], 1
    %4684 = vsyncpa %s4683, 1
    %4685 = vsyncpa [#allocation4], 1
    %s4686 = scalar_lea.sflag [#allocation4], 1
    %4687 = vsyncpa %s4686, 1

</llo_original>
